<compile_context>
chip_gen: v5e
topology: v5e:2x2
jax: 0.10.0
libtpu: 0.0.40
codegen_flags: <defaults>
</compile_context>

<pallas_src>
import functools

import jax
import jax.numpy as jnp
from jax import lax
from jax.experimental import pallas as pl
from jax.experimental.pallas import tpu as pltpu

KH = KW = 5      # LeNet conv kernel size
LANE = 128       # TPU lane width

_VMEM = pl.BlockSpec(memory_space=pltpu.MemorySpace.VMEM)


def _round_up(x, m):
    return (x + m - 1) // m * m


# ---------------------------------------------------------------------------
# Fused forward kernel
# ---------------------------------------------------------------------------
def _lenet_kernel(x_ref, w1_ref, b1_ref, w2_ref, b2_ref,
                  wf1_ref, bf1_ref, wf2_ref, bf2_ref,
                  o_ref,
                  out1_s, p1_s, out2_s, p2_s, rowbuf_s, flat_s):
    f32 = jnp.float32
    B = x_ref.shape[0]

    def conv_relu(src, dst, w_ref, b_ref):
        # valid 5x5 convolution + bias + ReLU
        # src: (B, h_in, w_in, cin)   dst: (B, h_out, w_out, cout)
        _, h_in, w_in, cin = src.shape
        h_out, w_out, cout = dst.shape[1], dst.shape[2], dst.shape[3]
        kwid = KH * cin
        bias = b_ref[...]                                    # (1, cout)

        for b in range(B):
            def row_body(i, carry):
                # on-chip im2col: pack the KH shifted input rows side by side
                # on lanes -> patch[j, kh*cin + ci] = src[b, i+kh, j, ci]
                for kh in range(KH):
                    rowbuf_s[0:w_in, kh * cin:(kh + 1) * cin] = src[b, i + kh]
                patch = rowbuf_s[0:w_in, 0:kwid]             # (w_in, KH*cin)
                acc = jnp.zeros((w_out, cout), f32)
                for kw in range(KW):                         # one MXU matmul per tap
                    acc = acc + jnp.dot(patch[kw:kw + w_out, :], w_ref[kw],
                                        preferred_element_type=f32)
                dst[b, i] = jnp.maximum(acc + bias, 0.0)
                return carry

            lax.fori_loop(0, h_out, row_body, 0)

    def maxpool2x2(src, dst):
        # src: (B, 2*h_out, 2*w_out, c)   dst: (B, h_out, w_out, c)
        h_out, w_out = dst.shape[1], dst.shape[2]
        w_in = src.shape[2]
        # 0/1 selection matrices pick even/odd columns; the stride-2 reduction
        # is then a plain MXU matmul (no strided vector slices needed).
        rr = lax.broadcasted_iota(jnp.int32, (w_out, w_in), 0)
        cc = lax.broadcasted_iota(jnp.int32, (w_out, w_in), 1)
        sel_even = (cc == 2 * rr).astype(f32)
        sel_odd = (cc == 2 * rr + 1).astype(f32)

        for b in range(B):
            def row_body(r, carry):
                m = jnp.maximum(src[b, 2 * r], src[b, 2 * r + 1])   # (w_in, c)
                dst[b, r] = jnp.maximum(
                    jnp.dot(sel_even, m, preferred_element_type=f32),
                    jnp.dot(sel_odd, m, preferred_element_type=f32))
                return carry

            lax.fori_loop(0, h_out, row_body, 0)

    # conv1 -> relu -> pool -> conv2 -> relu -> pool (all intermediates in VMEM)
    conv_relu(x_ref, out1_s, w1_ref, b1_ref)
    maxpool2x2(out1_s, p1_s)
    conv_relu(p1_s, out2_s, w2_ref, b2_ref)
    maxpool2x2(out2_s, p2_s)

    # Flatten: PyTorch's (c, h, w) flatten order is absorbed into the fc1 weight
    # permutation at prep time; here we lay the 5x5xC block out as (h, w, c).
    p2h, p2w, c2 = p2_s.shape[1], p2_s.shape[2], p2_s.shape[3]
    for b in range(B):
        for h in range(p2h):
            blk = p2_s[b, h]                                 # (p2w, c2)
            for w in range(p2w):
                col = (h * p2w + w) * c2
                flat_s[b:b + 1, col:col + c2] = blk[w:w + 1, :]

    feats = flat_s[...]                                      # (B, p2h*p2w*c2)
    hid = jnp.maximum(
        jnp.dot(feats, wf1_ref[...], preferred_element_type=f32) + bf1_ref[...],
        0.0)                                                 # (B, 128)
    logits = (jnp.dot(hid, wf2_ref[...], preferred_element_type=f32)
              + bf2_ref[...])                                # (B, 128) lane-dense
    o_ref[...] = logits.astype(o_ref.dtype)


# ---------------------------------------------------------------------------
# One-time weight repacking (outside the jitted hot path)
# ---------------------------------------------------------------------------
def prepare_params(params):
    """Repack PyTorch-layout weights:
       * conv weights -> (kw, KH*cin_pad, cout_pad) per-tap matmul matrices,
       * fc1 rows permuted to the kernel's (h, w, c) flatten order (absorbs the
         NCHW flatten + .T), fc2 pre-transposed,
       * channel dims zero-padded to multiples of 8, fc outputs to 128 lanes."""
    conv1_w, conv1_b = params["conv1_w"], params["conv1_b"]
    conv2_w, conv2_b = params["conv2_w"], params["conv2_b"]
    fc1_w, fc1_b = params["fc1_w"], params["fc1_b"]
    fc2_w, fc2_b = params["fc2_w"], params["fc2_b"]

    c1, cin = conv1_w.shape[0], conv1_w.shape[1]
    c2 = conv2_w.shape[0]
    f1, nc = fc1_w.shape[0], fc2_w.shape[0]
    cin_p, c1_p, c2_p = _round_up(cin, 8), _round_up(c1, 8), _round_up(c2, 8)
    f1_p, nc_p = _round_up(f1, LANE), _round_up(nc, LANE)

    def conv_mat(w, ci_pad, co_pad):
        co, ci = w.shape[0], w.shape[1]
        t = jnp.transpose(w, (3, 2, 1, 0))                   # (kw, kh, ci, co)
        t = jnp.pad(t, ((0, 0), (0, 0), (0, ci_pad - ci), (0, co_pad - co)))
        return t.reshape(KW, KH * ci_pad, co_pad)

    w1 = conv_mat(conv1_w, cin_p, c1_p)
    w2 = conv_mat(conv2_w, c1_p, c2_p)
    b1 = jnp.pad(conv1_b, (0, c1_p - c1)).reshape(1, c1_p)
    b2 = jnp.pad(conv2_b, (0, c2_p - c2)).reshape(1, c2_p)

    # fc1: torch flattens (c, h, w); the kernel flattens (h, w, c) -> permute rows.
    sp = int(round((fc1_w.shape[1] // c2) ** 0.5))           # 5
    wf1 = fc1_w.reshape(f1, c2, sp, sp)                      # (n, c, h, w)
    wf1 = jnp.transpose(wf1, (2, 3, 1, 0))                   # (h, w, c, n)
    wf1 = jnp.pad(wf1, ((0, 0), (0, 0), (0, c2_p - c2), (0, f1_p - f1)))
    wf1 = wf1.reshape(sp * sp * c2_p, f1_p)
    bf1 = jnp.pad(fc1_b, (0, f1_p - f1)).reshape(1, f1_p)

    wf2 = jnp.pad(fc2_w.T, ((0, f1_p - f1), (0, nc_p - nc)))
    bf2 = jnp.pad(fc2_b, (0, nc_p - nc)).reshape(1, nc_p)

    return {"w1": w1, "b1": b1, "w2": w2, "b2": b2,
            "wf1": wf1, "bf1": bf1, "wf2": wf2, "bf2": bf2}


# ---------------------------------------------------------------------------
# Public forward (wrapper around the single fused pallas_call)
# ---------------------------------------------------------------------------
def lenet_forward(x_nchw, prep, *, num_classes):
    w1, b1 = prep["w1"], prep["b1"]
    w2, b2 = prep["w2"], prep["b2"]
    wf1, bf1 = prep["wf1"], prep["bf1"]
    wf2, bf2 = prep["wf2"], prep["bf2"]

    B, cin, H, W = x_nchw.shape
    cin_p = w1.shape[1] // KH
    c1_p, c2_p = w1.shape[2], w2.shape[2]
    nc_p = wf2.shape[1]

    # NCHW -> NHWC (channels on lanes) + zero-pad channels to a multiple of 8.
    # This is the only XLA-side layout op left in the jitted hot path.
    x = jnp.transpose(x_nchw, (0, 2, 3, 1))
    if cin_p != cin:
        x = jnp.pad(x, ((0, 0), (0, 0), (0, 0), (0, cin_p - cin)))

    h1, w1o = H - KH + 1, W - KW + 1
    p1h, p1w = h1 // 2, w1o // 2
    h2, w2o = p1h - KH + 1, p1w - KW + 1
    p2h, p2w = h2 // 2, w2o // 2

    out = pl.pallas_call(
        _lenet_kernel,
        out_shape=jax.ShapeDtypeStruct((B, nc_p), jnp.float32),
        in_specs=[_VMEM] * 9,
        out_specs=_VMEM,
        scratch_shapes=[
            pltpu.VMEM((B, h1, w1o, c1_p), jnp.float32),          # conv1 + relu
            pltpu.VMEM((B, p1h, p1w, c1_p), jnp.float32),         # pool1
            pltpu.VMEM((B, h2, w2o, c2_p), jnp.float32),          # conv2 + relu
            pltpu.VMEM((B, p2h, p2w, c2_p), jnp.float32),         # pool2
            pltpu.VMEM((W, KH * max(cin_p, c1_p)), jnp.float32),  # im2col row buf
            pltpu.VMEM((B, p2h * p2w * c2_p), jnp.float32),       # flattened feats
        ],
    )(x, w1, b1, w2, b2, wf1, bf1, wf2, bf2)

    return out[:, :num_classes]


# ---------------------------------------------------------------------------
# Pure-JAX reference (for correctness check)
# ---------------------------------------------------------------------------
def lenet_reference(x_nchw, p):
    def conv(x, w, b):
        y = lax.conv_general_dilated(x, w, (1, 1), "VALID",
                                     dimension_numbers=("NCHW", "OIHW", "NCHW"))
        return jnp.maximum(y + b[None, :, None, None], 0.0)

    def pool(x):
        return lax.reduce_window(x, -jnp.inf, lax.max,
                                 (1, 1, 2, 2), (1, 1, 2, 2), "VALID")

    y = pool(conv(x_nchw, p["conv1_w"], p["conv1_b"]))
    y = pool(conv(y, p["conv2_w"], p["conv2_b"]))
    y = y.reshape(y.shape[0], -1)
    y = jnp.maximum(y @ p["fc1_w"].T + p["fc1_b"], 0.0)
    return y @ p["fc2_w"].T + p["fc2_b"]


if __name__ == "__main__":
    num_classes, num_channels = 10, 3
    B, HW = 2, 32  # fc1 expects 16*5*5 features -> input spatial must be 32x32

    key = jax.random.PRNGKey(0)
    ks = jax.random.split(key, 9)
    params = {
        "conv1_w": 0.1 * jax.random.normal(ks[0], (6, num_channels, 5, 5), jnp.float32),
        "conv1_b": 0.1 * jax.random.normal(ks[1], (6,), jnp.float32),
        "conv2_w": 0.1 * jax.random.normal(ks[2], (16, 6, 5, 5), jnp.float32),
        "conv2_b": 0.1 * jax.random.normal(ks[3], (16,), jnp.float32),
        "fc1_w": 0.1 * jax.random.normal(ks[4], (100, 16 * 5 * 5), jnp.float32),
        "fc1_b": 0.1 * jax.random.normal(ks[5], (100,), jnp.float32),
        "fc2_w": 0.1 * jax.random.normal(ks[6], (num_classes, 100), jnp.float32),
        "fc2_b": 0.1 * jax.random.normal(ks[7], (num_classes,), jnp.float32),
    }
    x = jax.random.normal(ks[8], (B, num_channels, HW, HW), jnp.float32)

    prep = prepare_params(params)                 # one-time weight repacking
    fwd = jax.jit(functools.partial(lenet_forward, num_classes=num_classes))

    out = jax.block_until_ready(fwd(x, prep))
    ref = lenet_reference(x, params)

    assert out.shape == (B, num_classes), out.shape
    assert bool(jnp.all(jnp.isfinite(out)))
    assert bool(jnp.allclose(out, ref, atol=2e-3, rtol=2e-3)), (out, ref)
    print("KERNEL_OK")
</pallas_src>

<mosaic_0001>
module attributes {stable_mosaic.version = 11 : i64} {
  func.func @_lenet_kernel(%arg0: memref<2x32x32x8xf32, #tpu.memory_space<vmem>>, %arg1: memref<5x40x8xf32, #tpu.memory_space<vmem>>, %arg2: memref<1x8xf32, #tpu.memory_space<vmem>>, %arg3: memref<5x40x16xf32, #tpu.memory_space<vmem>>, %arg4: memref<1x16xf32, #tpu.memory_space<vmem>>, %arg5: memref<400x128xf32, #tpu.memory_space<vmem>>, %arg6: memref<1x128xf32, #tpu.memory_space<vmem>>, %arg7: memref<128x128xf32, #tpu.memory_space<vmem>>, %arg8: memref<1x128xf32, #tpu.memory_space<vmem>>, %arg9: memref<2x128xf32, #tpu.memory_space<vmem>>, %arg10: memref<2x28x28x8xf32, #tpu.memory_space<vmem>>, %arg11: memref<2x14x14x8xf32, #tpu.memory_space<vmem>>, %arg12: memref<2x10x10x16xf32, #tpu.memory_space<vmem>>, %arg13: memref<2x5x5x16xf32, #tpu.memory_space<vmem>>, %arg14: memref<32x40xf32, #tpu.memory_space<vmem>>, %arg15: memref<2x400xf32, #tpu.memory_space<vmem>>) attributes {dimension_semantics = [], scalar_prefetch = 0 : i64, scratch_operands = 6 : i64, tpu.core_type = #tpu.core_type<tc>} {
    %c0 = arith.constant 0 : index
    %c0_0 = arith.constant 0 : index
    %0 = vector.load %arg2[%c0, %c0_0] : memref<1x8xf32, #tpu.memory_space<vmem>>, vector<1x8xf32>
    %c0_i32 = arith.constant 0 : i32
    %c28_i32 = arith.constant 28 : i32
    %1 = arith.addi %c0_i32, %c28_i32 : i32
    %c1_i32 = arith.constant 1 : i32
    scf.for %arg16 = %c0_i32 to %1 step %c1_i32  : i32 {
      %c0_i32_160 = arith.constant 0 : i32
      %172 = arith.addi %arg16, %c0_i32_160 : i32
      %c0_161 = arith.constant 0 : index
      %173 = arith.index_cast %172 : i32 to index
      %c0_162 = arith.constant 0 : index
      %c0_163 = arith.constant 0 : index
      %174 = vector.load %arg0[%c0_161, %173, %c0_162, %c0_163] : memref<2x32x32x8xf32, #tpu.memory_space<vmem>>, vector<1x1x32x8xf32>
      %175 = vector.shape_cast %174 : vector<1x1x32x8xf32> to vector<32x8xf32>
      %c0_164 = arith.constant 0 : index
      %c0_165 = arith.constant 0 : index
      %176 = vector.load %arg14[%c0_164, %c0_165] : memref<32x40xf32, #tpu.memory_space<vmem>>, vector<32x8xf32>
      tpu.vector_store %arg14[%c0_164, %c0_165], %175 {strides = array<i32>} : memref<32x40xf32, #tpu.memory_space<vmem>>, vector<32x8xf32>,
      %c1_i32_166 = arith.constant 1 : i32
      %177 = arith.addi %arg16, %c1_i32_166 : i32
      %c0_167 = arith.constant 0 : index
      %178 = arith.index_cast %177 : i32 to index
      %c0_168 = arith.constant 0 : index
      %c0_169 = arith.constant 0 : index
      %179 = vector.load %arg0[%c0_167, %178, %c0_168, %c0_169] : memref<2x32x32x8xf32, #tpu.memory_space<vmem>>, vector<1x1x32x8xf32>
      %180 = vector.shape_cast %179 : vector<1x1x32x8xf32> to vector<32x8xf32>
      %c0_170 = arith.constant 0 : index
      %c8 = arith.constant 8 : index
      %181 = vector.load %arg14[%c0_170, %c8] : memref<32x40xf32, #tpu.memory_space<vmem>>, vector<32x8xf32>
      tpu.vector_store %arg14[%c0_170, %c8], %180 {strides = array<i32>} : memref<32x40xf32, #tpu.memory_space<vmem>>, vector<32x8xf32>,
      %c2_i32_171 = arith.constant 2 : i32
      %182 = arith.addi %arg16, %c2_i32_171 : i32
      %c0_172 = arith.constant 0 : index
      %183 = arith.index_cast %182 : i32 to index
      %c0_173 = arith.constant 0 : index
      %c0_174 = arith.constant 0 : index
      %184 = vector.load %arg0[%c0_172, %183, %c0_173, %c0_174] : memref<2x32x32x8xf32, #tpu.memory_space<vmem>>, vector<1x1x32x8xf32>
      %185 = vector.shape_cast %184 : vector<1x1x32x8xf32> to vector<32x8xf32>
      %c0_175 = arith.constant 0 : index
      %c16_176 = arith.constant 16 : index
      %186 = vector.load %arg14[%c0_175, %c16_176] : memref<32x40xf32, #tpu.memory_space<vmem>>, vector<32x8xf32>
      tpu.vector_store %arg14[%c0_175, %c16_176], %185 {strides = array<i32>} : memref<32x40xf32, #tpu.memory_space<vmem>>, vector<32x8xf32>,
      %c3_i32 = arith.constant 3 : i32
      %187 = arith.addi %arg16, %c3_i32 : i32
      %c0_177 = arith.constant 0 : index
      %188 = arith.index_cast %187 : i32 to index
      %c0_178 = arith.constant 0 : index
      %c0_179 = arith.constant 0 : index
      %189 = vector.load %arg0[%c0_177, %188, %c0_178, %c0_179] : memref<2x32x32x8xf32, #tpu.memory_space<vmem>>, vector<1x1x32x8xf32>
      %190 = vector.shape_cast %189 : vector<1x1x32x8xf32> to vector<32x8xf32>
      %c0_180 = arith.constant 0 : index
      %c24 = arith.constant 24 : index
      %191 = vector.load %arg14[%c0_180, %c24] : memref<32x40xf32, #tpu.memory_space<vmem>>, vector<32x8xf32>
      tpu.vector_store %arg14[%c0_180, %c24], %190 {strides = array<i32>} : memref<32x40xf32, #tpu.memory_space<vmem>>, vector<32x8xf32>,
      %c4_i32 = arith.constant 4 : i32
      %192 = arith.addi %arg16, %c4_i32 : i32
      %c0_181 = arith.constant 0 : index
      %193 = arith.index_cast %192 : i32 to index
      %c0_182 = arith.constant 0 : index
      %c0_183 = arith.constant 0 : index
      %194 = vector.load %arg0[%c0_181, %193, %c0_182, %c0_183] : memref<2x32x32x8xf32, #tpu.memory_space<vmem>>, vector<1x1x32x8xf32>
      %195 = vector.shape_cast %194 : vector<1x1x32x8xf32> to vector<32x8xf32>
      %c0_184 = arith.constant 0 : index
      %c32_185 = arith.constant 32 : index
      %196 = vector.load %arg14[%c0_184, %c32_185] : memref<32x40xf32, #tpu.memory_space<vmem>>, vector<32x8xf32>
      tpu.vector_store %arg14[%c0_184, %c32_185], %195 {strides = array<i32>} : memref<32x40xf32, #tpu.memory_space<vmem>>, vector<32x8xf32>,
      %c0_186 = arith.constant 0 : index
      %c0_187 = arith.constant 0 : index
      %197 = vector.load %arg14[%c0_186, %c0_187] : memref<32x40xf32, #tpu.memory_space<vmem>>, vector<32x40xf32>
      %cst_188 = arith.constant 0.000000e+00 : f32
      %198 = vector.broadcast %cst_188 : f32 to vector<28x8xf32>
      %199 = vector.extract_strided_slice %197 {offsets = [0, 0], sizes = [28, 40], strides = [1, 1]} : vector<32x40xf32> to vector<28x40xf32>
      %c0_189 = arith.constant 0 : index
      %c0_190 = arith.constant 0 : index
      %c0_191 = arith.constant 0 : index
      %200 = vector.load %arg1[%c0_189, %c0_190, %c0_191] : memref<5x40x8xf32, #tpu.memory_space<vmem>>, vector<1x40x8xf32>
      %201 = vector.shape_cast %200 : vector<1x40x8xf32> to vector<40x8xf32>
      %cst_192 = arith.constant dense<0.000000e+00> : vector<28x8xf32>
      %202 = tpu.matmul %199, %201, %cst_192 {dimension_numbers = #tpu.dot_dimension_numbers<[1], [0], [0], [1], [0, 0, 1, 1], [], []>} : vector<28x40xf32>, vector<40x8xf32>, vector<28x8xf32> -> vector<28x8xf32>
      %203 = arith.addf %198, %202 : vector<28x8xf32>
      %204 = vector.extract_strided_slice %197 {offsets = [1, 0], sizes = [28, 40], strides = [1, 1]} : vector<32x40xf32> to vector<28x40xf32>
      %c1_193 = arith.constant 1 : index
      %c0_194 = arith.constant 0 : index
      %c0_195 = arith.constant 0 : index
      %205 = vector.load %arg1[%c1_193, %c0_194, %c0_195] : memref<5x40x8xf32, #tpu.memory_space<vmem>>, vector<1x40x8xf32>
      %206 = vector.shape_cast %205 : vector<1x40x8xf32> to vector<40x8xf32>
      %cst_196 = arith.constant dense<0.000000e+00> : vector<28x8xf32>
      %207 = tpu.matmul %204, %206, %cst_196 {dimension_numbers = #tpu.dot_dimension_numbers<[1], [0], [0], [1], [0, 0, 1, 1], [], []>} : vector<28x40xf32>, vector<40x8xf32>, vector<28x8xf32> -> vector<28x8xf32>
      %208 = arith.addf %203, %207 : vector<28x8xf32>
      %209 = vector.extract_strided_slice %197 {offsets = [2, 0], sizes = [28, 40], strides = [1, 1]} : vector<32x40xf32> to vector<28x40xf32>
      %c2_197 = arith.constant 2 : index
      %c0_198 = arith.constant 0 : index
      %c0_199 = arith.constant 0 : index
      %210 = vector.load %arg1[%c2_197, %c0_198, %c0_199] : memref<5x40x8xf32, #tpu.memory_space<vmem>>, vector<1x40x8xf32>
      %211 = vector.shape_cast %210 : vector<1x40x8xf32> to vector<40x8xf32>
      %cst_200 = arith.constant dense<0.000000e+00> : vector<28x8xf32>
      %212 = tpu.matmul %209, %211, %cst_200 {dimension_numbers = #tpu.dot_dimension_numbers<[1], [0], [0], [1], [0, 0, 1, 1], [], []>} : vector<28x40xf32>, vector<40x8xf32>, vector<28x8xf32> -> vector<28x8xf32>
      %213 = arith.addf %208, %212 : vector<28x8xf32>
      %214 = vector.extract_strided_slice %197 {offsets = [3, 0], sizes = [28, 40], strides = [1, 1]} : vector<32x40xf32> to vector<28x40xf32>
      %c3_201 = arith.constant 3 : index
      %c0_202 = arith.constant 0 : index
      %c0_203 = arith.constant 0 : index
      %215 = vector.load %arg1[%c3_201, %c0_202, %c0_203] : memref<5x40x8xf32, #tpu.memory_space<vmem>>, vector<1x40x8xf32>
      %216 = vector.shape_cast %215 : vector<1x40x8xf32> to vector<40x8xf32>
      %cst_204 = arith.constant dense<0.000000e+00> : vector<28x8xf32>
      %217 = tpu.matmul %214, %216, %cst_204 {dimension_numbers = #tpu.dot_dimension_numbers<[1], [0], [0], [1], [0, 0, 1, 1], [], []>} : vector<28x40xf32>, vector<40x8xf32>, vector<28x8xf32> -> vector<28x8xf32>
      %218 = arith.addf %213, %217 : vector<28x8xf32>
      %219 = vector.extract_strided_slice %197 {offsets = [4, 0], sizes = [28, 40], strides = [1, 1]} : vector<32x40xf32> to vector<28x40xf32>
      %c4_205 = arith.constant 4 : index
      %c0_206 = arith.constant 0 : index
      %c0_207 = arith.constant 0 : index
      %220 = vector.load %arg1[%c4_205, %c0_206, %c0_207] : memref<5x40x8xf32, #tpu.memory_space<vmem>>, vector<1x40x8xf32>
      %221 = vector.shape_cast %220 : vector<1x40x8xf32> to vector<40x8xf32>
      %cst_208 = arith.constant dense<0.000000e+00> : vector<28x8xf32>
      %222 = tpu.matmul %219, %221, %cst_208 {dimension_numbers = #tpu.dot_dimension_numbers<[1], [0], [0], [1], [0, 0, 1, 1], [], []>} : vector<28x40xf32>, vector<40x8xf32>, vector<28x8xf32> -> vector<28x8xf32>
      %223 = arith.addf %218, %222 : vector<28x8xf32>
      %224 = vector.broadcast %0 : vector<1x8xf32> to vector<28x8xf32>
      %225 = arith.addf %223, %224 : vector<28x8xf32>
      %cst_209 = arith.constant 0.000000e+00 : f32
      %226 = vector.broadcast %cst_209 : f32 to vector<28x8xf32>
      %227 = arith.maximumf %225, %226 : vector<28x8xf32>
      %c0_210 = arith.constant 0 : index
      %228 = arith.index_cast %arg16 : i32 to index
      %c0_211 = arith.constant 0 : index
      %c0_212 = arith.constant 0 : index
      %229 = vector.load %arg10[%c0_210, %228, %c0_211, %c0_212] : memref<2x28x28x8xf32, #tpu.memory_space<vmem>>, vector<1x1x28x8xf32>
      %230 = vector.shape_cast %229 : vector<1x1x28x8xf32> to vector<28x8xf32>
      %231 = vector.shape_cast %227 : vector<28x8xf32> to vector<1x1x28x8xf32>
      tpu.vector_store %arg10[%c0_210, %228, %c0_211, %c0_212], %231 {strides = array<i32>} : memref<2x28x28x8xf32, #tpu.memory_space<vmem>>, vector<1x1x28x8xf32>,
    }
    %c28_i32_1 = arith.constant 28 : i32
    %c0_i32_2 = arith.constant 0 : i32
    %c28_i32_3 = arith.constant 28 : i32
    %2 = arith.addi %c0_i32_2, %c28_i32_3 : i32
    %c1_i32_4 = arith.constant 1 : i32
    scf.for %arg16 = %c0_i32_2 to %2 step %c1_i32_4  : i32 {
      %c0_i32_160 = arith.constant 0 : i32
      %172 = arith.addi %arg16, %c0_i32_160 : i32
      %c1_161 = arith.constant 1 : index
      %173 = arith.index_cast %172 : i32 to index
      %c0_162 = arith.constant 0 : index
      %c0_163 = arith.constant 0 : index
      %174 = vector.load %arg0[%c1_161, %173, %c0_162, %c0_163] : memref<2x32x32x8xf32, #tpu.memory_space<vmem>>, vector<1x1x32x8xf32>
      %175 = vector.shape_cast %174 : vector<1x1x32x8xf32> to vector<32x8xf32>
      %c0_164 = arith.constant 0 : index
      %c0_165 = arith.constant 0 : index
      %176 = vector.load %arg14[%c0_164, %c0_165] : memref<32x40xf32, #tpu.memory_space<vmem>>, vector<32x8xf32>
      tpu.vector_store %arg14[%c0_164, %c0_165], %175 {strides = array<i32>} : memref<32x40xf32, #tpu.memory_space<vmem>>, vector<32x8xf32>,
      %c1_i32_166 = arith.constant 1 : i32
      %177 = arith.addi %arg16, %c1_i32_166 : i32
      %c1_167 = arith.constant 1 : index
      %178 = arith.index_cast %177 : i32 to index
      %c0_168 = arith.constant 0 : index
      %c0_169 = arith.constant 0 : index
      %179 = vector.load %arg0[%c1_167, %178, %c0_168, %c0_169] : memref<2x32x32x8xf32, #tpu.memory_space<vmem>>, vector<1x1x32x8xf32>
      %180 = vector.shape_cast %179 : vector<1x1x32x8xf32> to vector<32x8xf32>
      %c0_170 = arith.constant 0 : index
      %c8 = arith.constant 8 : index
      %181 = vector.load %arg14[%c0_170, %c8] : memref<32x40xf32, #tpu.memory_space<vmem>>, vector<32x8xf32>
      tpu.vector_store %arg14[%c0_170, %c8], %180 {strides = array<i32>} : memref<32x40xf32, #tpu.memory_space<vmem>>, vector<32x8xf32>,
      %c2_i32_171 = arith.constant 2 : i32
      %182 = arith.addi %arg16, %c2_i32_171 : i32
      %c1_172 = arith.constant 1 : index
      %183 = arith.index_cast %182 : i32 to index
      %c0_173 = arith.constant 0 : index
      %c0_174 = arith.constant 0 : index
      %184 = vector.load %arg0[%c1_172, %183, %c0_173, %c0_174] : memref<2x32x32x8xf32, #tpu.memory_space<vmem>>, vector<1x1x32x8xf32>
      %185 = vector.shape_cast %184 : vector<1x1x32x8xf32> to vector<32x8xf32>
      %c0_175 = arith.constant 0 : index
      %c16_176 = arith.constant 16 : index
      %186 = vector.load %arg14[%c0_175, %c16_176] : memref<32x40xf32, #tpu.memory_space<vmem>>, vector<32x8xf32>
      tpu.vector_store %arg14[%c0_175, %c16_176], %185 {strides = array<i32>} : memref<32x40xf32, #tpu.memory_space<vmem>>, vector<32x8xf32>,
      %c3_i32 = arith.constant 3 : i32
      %187 = arith.addi %arg16, %c3_i32 : i32
      %c1_177 = arith.constant 1 : index
      %188 = arith.index_cast %187 : i32 to index
      %c0_178 = arith.constant 0 : index
      %c0_179 = arith.constant 0 : index
      %189 = vector.load %arg0[%c1_177, %188, %c0_178, %c0_179] : memref<2x32x32x8xf32, #tpu.memory_space<vmem>>, vector<1x1x32x8xf32>
      %190 = vector.shape_cast %189 : vector<1x1x32x8xf32> to vector<32x8xf32>
      %c0_180 = arith.constant 0 : index
      %c24 = arith.constant 24 : index
      %191 = vector.load %arg14[%c0_180, %c24] : memref<32x40xf32, #tpu.memory_space<vmem>>, vector<32x8xf32>
      tpu.vector_store %arg14[%c0_180, %c24], %190 {strides = array<i32>} : memref<32x40xf32, #tpu.memory_space<vmem>>, vector<32x8xf32>,
      %c4_i32 = arith.constant 4 : i32
      %192 = arith.addi %arg16, %c4_i32 : i32
      %c1_181 = arith.constant 1 : index
      %193 = arith.index_cast %192 : i32 to index
      %c0_182 = arith.constant 0 : index
      %c0_183 = arith.constant 0 : index
      %194 = vector.load %arg0[%c1_181, %193, %c0_182, %c0_183] : memref<2x32x32x8xf32, #tpu.memory_space<vmem>>, vector<1x1x32x8xf32>
      %195 = vector.shape_cast %194 : vector<1x1x32x8xf32> to vector<32x8xf32>
      %c0_184 = arith.constant 0 : index
      %c32_185 = arith.constant 32 : index
      %196 = vector.load %arg14[%c0_184, %c32_185] : memref<32x40xf32, #tpu.memory_space<vmem>>, vector<32x8xf32>
      tpu.vector_store %arg14[%c0_184, %c32_185], %195 {strides = array<i32>} : memref<32x40xf32, #tpu.memory_space<vmem>>, vector<32x8xf32>,
      %c0_186 = arith.constant 0 : index
      %c0_187 = arith.constant 0 : index
      %197 = vector.load %arg14[%c0_186, %c0_187] : memref<32x40xf32, #tpu.memory_space<vmem>>, vector<32x40xf32>
      %cst_188 = arith.constant 0.000000e+00 : f32
      %198 = vector.broadcast %cst_188 : f32 to vector<28x8xf32>
      %199 = vector.extract_strided_slice %197 {offsets = [0, 0], sizes = [28, 40], strides = [1, 1]} : vector<32x40xf32> to vector<28x40xf32>
      %c0_189 = arith.constant 0 : index
      %c0_190 = arith.constant 0 : index
      %c0_191 = arith.constant 0 : index
      %200 = vector.load %arg1[%c0_189, %c0_190, %c0_191] : memref<5x40x8xf32, #tpu.memory_space<vmem>>, vector<1x40x8xf32>
      %201 = vector.shape_cast %200 : vector<1x40x8xf32> to vector<40x8xf32>
      %cst_192 = arith.constant dense<0.000000e+00> : vector<28x8xf32>
      %202 = tpu.matmul %199, %201, %cst_192 {dimension_numbers = #tpu.dot_dimension_numbers<[1], [0], [0], [1], [0, 0, 1, 1], [], []>} : vector<28x40xf32>, vector<40x8xf32>, vector<28x8xf32> -> vector<28x8xf32>
      %203 = arith.addf %198, %202 : vector<28x8xf32>
      %204 = vector.extract_strided_slice %197 {offsets = [1, 0], sizes = [28, 40], strides = [1, 1]} : vector<32x40xf32> to vector<28x40xf32>
      %c1_193 = arith.constant 1 : index
      %c0_194 = arith.constant 0 : index
      %c0_195 = arith.constant 0 : index
      %205 = vector.load %arg1[%c1_193, %c0_194, %c0_195] : memref<5x40x8xf32, #tpu.memory_space<vmem>>, vector<1x40x8xf32>
      %206 = vector.shape_cast %205 : vector<1x40x8xf32> to vector<40x8xf32>
      %cst_196 = arith.constant dense<0.000000e+00> : vector<28x8xf32>
      %207 = tpu.matmul %204, %206, %cst_196 {dimension_numbers = #tpu.dot_dimension_numbers<[1], [0], [0], [1], [0, 0, 1, 1], [], []>} : vector<28x40xf32>, vector<40x8xf32>, vector<28x8xf32> -> vector<28x8xf32>
      %208 = arith.addf %203, %207 : vector<28x8xf32>
      %209 = vector.extract_strided_slice %197 {offsets = [2, 0], sizes = [28, 40], strides = [1, 1]} : vector<32x40xf32> to vector<28x40xf32>
      %c2_197 = arith.constant 2 : index
      %c0_198 = arith.constant 0 : index
      %c0_199 = arith.constant 0 : index
      %210 = vector.load %arg1[%c2_197, %c0_198, %c0_199] : memref<5x40x8xf32, #tpu.memory_space<vmem>>, vector<1x40x8xf32>
      %211 = vector.shape_cast %210 : vector<1x40x8xf32> to vector<40x8xf32>
      %cst_200 = arith.constant dense<0.000000e+00> : vector<28x8xf32>
      %212 = tpu.matmul %209, %211, %cst_200 {dimension_numbers = #tpu.dot_dimension_numbers<[1], [0], [0], [1], [0, 0, 1, 1], [], []>} : vector<28x40xf32>, vector<40x8xf32>, vector<28x8xf32> -> vector<28x8xf32>
      %213 = arith.addf %208, %212 : vector<28x8xf32>
      %214 = vector.extract_strided_slice %197 {offsets = [3, 0], sizes = [28, 40], strides = [1, 1]} : vector<32x40xf32> to vector<28x40xf32>
      %c3_201 = arith.constant 3 : index
      %c0_202 = arith.constant 0 : index
      %c0_203 = arith.constant 0 : index
      %215 = vector.load %arg1[%c3_201, %c0_202, %c0_203] : memref<5x40x8xf32, #tpu.memory_space<vmem>>, vector<1x40x8xf32>
      %216 = vector.shape_cast %215 : vector<1x40x8xf32> to vector<40x8xf32>
      %cst_204 = arith.constant dense<0.000000e+00> : vector<28x8xf32>
      %217 = tpu.matmul %214, %216, %cst_204 {dimension_numbers = #tpu.dot_dimension_numbers<[1], [0], [0], [1], [0, 0, 1, 1], [], []>} : vector<28x40xf32>, vector<40x8xf32>, vector<28x8xf32> -> vector<28x8xf32>
      %218 = arith.addf %213, %217 : vector<28x8xf32>
      %219 = vector.extract_strided_slice %197 {offsets = [4, 0], sizes = [28, 40], strides = [1, 1]} : vector<32x40xf32> to vector<28x40xf32>
      %c4_205 = arith.constant 4 : index
      %c0_206 = arith.constant 0 : index
      %c0_207 = arith.constant 0 : index
      %220 = vector.load %arg1[%c4_205, %c0_206, %c0_207] : memref<5x40x8xf32, #tpu.memory_space<vmem>>, vector<1x40x8xf32>
      %221 = vector.shape_cast %220 : vector<1x40x8xf32> to vector<40x8xf32>
      %cst_208 = arith.constant dense<0.000000e+00> : vector<28x8xf32>
      %222 = tpu.matmul %219, %221, %cst_208 {dimension_numbers = #tpu.dot_dimension_numbers<[1], [0], [0], [1], [0, 0, 1, 1], [], []>} : vector<28x40xf32>, vector<40x8xf32>, vector<28x8xf32> -> vector<28x8xf32>
      %223 = arith.addf %218, %222 : vector<28x8xf32>
      %224 = vector.broadcast %0 : vector<1x8xf32> to vector<28x8xf32>
      %225 = arith.addf %223, %224 : vector<28x8xf32>
      %cst_209 = arith.constant 0.000000e+00 : f32
      %226 = vector.broadcast %cst_209 : f32 to vector<28x8xf32>
      %227 = arith.maximumf %225, %226 : vector<28x8xf32>
      %c1_210 = arith.constant 1 : index
      %228 = arith.index_cast %arg16 : i32 to index
      %c0_211 = arith.constant 0 : index
      %c0_212 = arith.constant 0 : index
      %229 = vector.load %arg10[%c1_210, %228, %c0_211, %c0_212] : memref<2x28x28x8xf32, #tpu.memory_space<vmem>>, vector<1x1x28x8xf32>
      %230 = vector.shape_cast %229 : vector<1x1x28x8xf32> to vector<28x8xf32>
      %231 = vector.shape_cast %227 : vector<28x8xf32> to vector<1x1x28x8xf32>
      tpu.vector_store %arg10[%c1_210, %228, %c0_211, %c0_212], %231 {strides = array<i32>} : memref<2x28x28x8xf32, #tpu.memory_space<vmem>>, vector<1x1x28x8xf32>,
    }
    %c28_i32_5 = arith.constant 28 : i32
    %3 = tpu.iota {dimensions = array<i32: 0>} : vector<14x28xi32>
    %4 = tpu.iota {dimensions = array<i32: 1>} : vector<14x28xi32>
    %c2_i32 = arith.constant 2 : i32
    %5 = vector.broadcast %c2_i32 : i32 to vector<14x28xi32>
    %6 = arith.muli %5, %3 : vector<14x28xi32>
    %7 = arith.cmpi eq, %4, %6 : vector<14x28xi32>
    %8 = arith.extui %7 : vector<14x28xi1> to vector<14x28xi32>
    %9 = arith.sitofp %8 : vector<14x28xi32> to vector<14x28xf32>
    %c2_i32_6 = arith.constant 2 : i32
    %10 = vector.broadcast %c2_i32_6 : i32 to vector<14x28xi32>
    %11 = arith.muli %10, %3 : vector<14x28xi32>
    %c1_i32_7 = arith.constant 1 : i32
    %12 = vector.broadcast %c1_i32_7 : i32 to vector<14x28xi32>
    %13 = arith.addi %11, %12 : vector<14x28xi32>
    %14 = arith.cmpi eq, %4, %13 : vector<14x28xi32>
    %15 = arith.extui %14 : vector<14x28xi1> to vector<14x28xi32>
    %16 = arith.sitofp %15 : vector<14x28xi32> to vector<14x28xf32>
    %c0_i32_8 = arith.constant 0 : i32
    %c14_i32 = arith.constant 14 : i32
    %17 = arith.addi %c0_i32_8, %c14_i32 : i32
    %c1_i32_9 = arith.constant 1 : i32
    scf.for %arg16 = %c0_i32_8 to %17 step %c1_i32_9  : i32 {
      %c2_i32_160 = arith.constant 2 : i32
      %172 = arith.muli %c2_i32_160, %arg16 : i32
      %c0_161 = arith.constant 0 : index
      %173 = arith.index_cast %172 : i32 to index
      %c0_162 = arith.constant 0 : index
      %c0_163 = arith.constant 0 : index
      %174 = vector.load %arg10[%c0_161, %173, %c0_162, %c0_163] : memref<2x28x28x8xf32, #tpu.memory_space<vmem>>, vector<1x1x28x8xf32>
      %175 = vector.shape_cast %174 : vector<1x1x28x8xf32> to vector<28x8xf32>
      %c2_i32_164 = arith.constant 2 : i32
      %176 = arith.muli %c2_i32_164, %arg16 : i32
      %c1_i32_165 = arith.constant 1 : i32
      %177 = arith.addi %176, %c1_i32_165 : i32
      %c0_166 = arith.constant 0 : index
      %178 = arith.index_cast %177 : i32 to index
      %c0_167 = arith.constant 0 : index
      %c0_168 = arith.constant 0 : index
      %179 = vector.load %arg10[%c0_166, %178, %c0_167, %c0_168] : memref<2x28x28x8xf32, #tpu.memory_space<vmem>>, vector<1x1x28x8xf32>
      %180 = vector.shape_cast %179 : vector<1x1x28x8xf32> to vector<28x8xf32>
      %181 = arith.maximumf %175, %180 : vector<28x8xf32>
      %cst_169 = arith.constant dense<0.000000e+00> : vector<14x8xf32>
      %182 = tpu.matmul %9, %181, %cst_169 {dimension_numbers = #tpu.dot_dimension_numbers<[1], [0], [0], [1], [0, 0, 1, 1], [], []>} : vector<14x28xf32>, vector<28x8xf32>, vector<14x8xf32> -> vector<14x8xf32>
      %cst_170 = arith.constant dense<0.000000e+00> : vector<14x8xf32>
      %183 = tpu.matmul %16, %181, %cst_170 {dimension_numbers = #tpu.dot_dimension_numbers<[1], [0], [0], [1], [0, 0, 1, 1], [], []>} : vector<14x28xf32>, vector<28x8xf32>, vector<14x8xf32> -> vector<14x8xf32>
      %184 = arith.maximumf %182, %183 : vector<14x8xf32>
      %c0_171 = arith.constant 0 : index
      %185 = arith.index_cast %arg16 : i32 to index
      %c0_172 = arith.constant 0 : index
      %c0_173 = arith.constant 0 : index
      %186 = vector.load %arg11[%c0_171, %185, %c0_172, %c0_173] : memref<2x14x14x8xf32, #tpu.memory_space<vmem>>, vector<1x1x14x8xf32>
      %187 = vector.shape_cast %186 : vector<1x1x14x8xf32> to vector<14x8xf32>
      %188 = vector.shape_cast %184 : vector<14x8xf32> to vector<1x1x14x8xf32>
      tpu.vector_store %arg11[%c0_171, %185, %c0_172, %c0_173], %188 {strides = array<i32>} : memref<2x14x14x8xf32, #tpu.memory_space<vmem>>, vector<1x1x14x8xf32>,
    }
    %c14_i32_10 = arith.constant 14 : i32
    %c0_i32_11 = arith.constant 0 : i32
    %c14_i32_12 = arith.constant 14 : i32
    %18 = arith.addi %c0_i32_11, %c14_i32_12 : i32
    %c1_i32_13 = arith.constant 1 : i32
    scf.for %arg16 = %c0_i32_11 to %18 step %c1_i32_13  : i32 {
      %c2_i32_160 = arith.constant 2 : i32
      %172 = arith.muli %c2_i32_160, %arg16 : i32
      %c1_161 = arith.constant 1 : index
      %173 = arith.index_cast %172 : i32 to index
      %c0_162 = arith.constant 0 : index
      %c0_163 = arith.constant 0 : index
      %174 = vector.load %arg10[%c1_161, %173, %c0_162, %c0_163] : memref<2x28x28x8xf32, #tpu.memory_space<vmem>>, vector<1x1x28x8xf32>
      %175 = vector.shape_cast %174 : vector<1x1x28x8xf32> to vector<28x8xf32>
      %c2_i32_164 = arith.constant 2 : i32
      %176 = arith.muli %c2_i32_164, %arg16 : i32
      %c1_i32_165 = arith.constant 1 : i32
      %177 = arith.addi %176, %c1_i32_165 : i32
      %c1_166 = arith.constant 1 : index
      %178 = arith.index_cast %177 : i32 to index
      %c0_167 = arith.constant 0 : index
      %c0_168 = arith.constant 0 : index
      %179 = vector.load %arg10[%c1_166, %178, %c0_167, %c0_168] : memref<2x28x28x8xf32, #tpu.memory_space<vmem>>, vector<1x1x28x8xf32>
      %180 = vector.shape_cast %179 : vector<1x1x28x8xf32> to vector<28x8xf32>
      %181 = arith.maximumf %175, %180 : vector<28x8xf32>
      %cst_169 = arith.constant dense<0.000000e+00> : vector<14x8xf32>
      %182 = tpu.matmul %9, %181, %cst_169 {dimension_numbers = #tpu.dot_dimension_numbers<[1], [0], [0], [1], [0, 0, 1, 1], [], []>} : vector<14x28xf32>, vector<28x8xf32>, vector<14x8xf32> -> vector<14x8xf32>
      %cst_170 = arith.constant dense<0.000000e+00> : vector<14x8xf32>
      %183 = tpu.matmul %16, %181, %cst_170 {dimension_numbers = #tpu.dot_dimension_numbers<[1], [0], [0], [1], [0, 0, 1, 1], [], []>} : vector<14x28xf32>, vector<28x8xf32>, vector<14x8xf32> -> vector<14x8xf32>
      %184 = arith.maximumf %182, %183 : vector<14x8xf32>
      %c1_171 = arith.constant 1 : index
      %185 = arith.index_cast %arg16 : i32 to index
      %c0_172 = arith.constant 0 : index
      %c0_173 = arith.constant 0 : index
      %186 = vector.load %arg11[%c1_171, %185, %c0_172, %c0_173] : memref<2x14x14x8xf32, #tpu.memory_space<vmem>>, vector<1x1x14x8xf32>
      %187 = vector.shape_cast %186 : vector<1x1x14x8xf32> to vector<14x8xf32>
      %188 = vector.shape_cast %184 : vector<14x8xf32> to vector<1x1x14x8xf32>
      tpu.vector_store %arg11[%c1_171, %185, %c0_172, %c0_173], %188 {strides = array<i32>} : memref<2x14x14x8xf32, #tpu.memory_space<vmem>>, vector<1x1x14x8xf32>,
    }
    %c14_i32_14 = arith.constant 14 : i32
    %c0_15 = arith.constant 0 : index
    %c0_16 = arith.constant 0 : index
    %19 = vector.load %arg4[%c0_15, %c0_16] : memref<1x16xf32, #tpu.memory_space<vmem>>, vector<1x16xf32>
    %c0_i32_17 = arith.constant 0 : i32
    %c10_i32 = arith.constant 10 : i32
    %20 = arith.addi %c0_i32_17, %c10_i32 : i32
    %c1_i32_18 = arith.constant 1 : i32
    scf.for %arg16 = %c0_i32_17 to %20 step %c1_i32_18  : i32 {
      %c0_i32_160 = arith.constant 0 : i32
      %172 = arith.addi %arg16, %c0_i32_160 : i32
      %c0_161 = arith.constant 0 : index
      %173 = arith.index_cast %172 : i32 to index
      %c0_162 = arith.constant 0 : index
      %c0_163 = arith.constant 0 : index
      %174 = vector.load %arg11[%c0_161, %173, %c0_162, %c0_163] : memref<2x14x14x8xf32, #tpu.memory_space<vmem>>, vector<1x1x14x8xf32>
      %175 = vector.shape_cast %174 : vector<1x1x14x8xf32> to vector<14x8xf32>
      %c0_164 = arith.constant 0 : index
      %c0_165 = arith.constant 0 : index
      %176 = vector.load %arg14[%c0_164, %c0_165] : memref<32x40xf32, #tpu.memory_space<vmem>>, vector<14x8xf32>
      tpu.vector_store %arg14[%c0_164, %c0_165], %175 {strides = array<i32>} : memref<32x40xf32, #tpu.memory_space<vmem>>, vector<14x8xf32>,
      %c1_i32_166 = arith.constant 1 : i32
      %177 = arith.addi %arg16, %c1_i32_166 : i32
      %c0_167 = arith.constant 0 : index
      %178 = arith.index_cast %177 : i32 to index
      %c0_168 = arith.constant 0 : index
      %c0_169 = arith.constant 0 : index
      %179 = vector.load %arg11[%c0_167, %178, %c0_168, %c0_169] : memref<2x14x14x8xf32, #tpu.memory_space<vmem>>, vector<1x1x14x8xf32>
      %180 = vector.shape_cast %179 : vector<1x1x14x8xf32> to vector<14x8xf32>
      %c0_170 = arith.constant 0 : index
      %c8 = arith.constant 8 : index
      %181 = vector.load %arg14[%c0_170, %c8] : memref<32x40xf32, #tpu.memory_space<vmem>>, vector<14x8xf32>
      tpu.vector_store %arg14[%c0_170, %c8], %180 {strides = array<i32>} : memref<32x40xf32, #tpu.memory_space<vmem>>, vector<14x8xf32>,
      %c2_i32_171 = arith.constant 2 : i32
      %182 = arith.addi %arg16, %c2_i32_171 : i32
      %c0_172 = arith.constant 0 : index
      %183 = arith.index_cast %182 : i32 to index
      %c0_173 = arith.constant 0 : index
      %c0_174 = arith.constant 0 : index
      %184 = vector.load %arg11[%c0_172, %183, %c0_173, %c0_174] : memref<2x14x14x8xf32, #tpu.memory_space<vmem>>, vector<1x1x14x8xf32>
      %185 = vector.shape_cast %184 : vector<1x1x14x8xf32> to vector<14x8xf32>
      %c0_175 = arith.constant 0 : index
      %c16_176 = arith.constant 16 : index
      %186 = vector.load %arg14[%c0_175, %c16_176] : memref<32x40xf32, #tpu.memory_space<vmem>>, vector<14x8xf32>
      tpu.vector_store %arg14[%c0_175, %c16_176], %185 {strides = array<i32>} : memref<32x40xf32, #tpu.memory_space<vmem>>, vector<14x8xf32>,
      %c3_i32 = arith.constant 3 : i32
      %187 = arith.addi %arg16, %c3_i32 : i32
      %c0_177 = arith.constant 0 : index
      %188 = arith.index_cast %187 : i32 to index
      %c0_178 = arith.constant 0 : index
      %c0_179 = arith.constant 0 : index
      %189 = vector.load %arg11[%c0_177, %188, %c0_178, %c0_179] : memref<2x14x14x8xf32, #tpu.memory_space<vmem>>, vector<1x1x14x8xf32>
      %190 = vector.shape_cast %189 : vector<1x1x14x8xf32> to vector<14x8xf32>
      %c0_180 = arith.constant 0 : index
      %c24 = arith.constant 24 : index
      %191 = vector.load %arg14[%c0_180, %c24] : memref<32x40xf32, #tpu.memory_space<vmem>>, vector<14x8xf32>
      tpu.vector_store %arg14[%c0_180, %c24], %190 {strides = array<i32>} : memref<32x40xf32, #tpu.memory_space<vmem>>, vector<14x8xf32>,
      %c4_i32 = arith.constant 4 : i32
      %192 = arith.addi %arg16, %c4_i32 : i32
      %c0_181 = arith.constant 0 : index
      %193 = arith.index_cast %192 : i32 to index
      %c0_182 = arith.constant 0 : index
      %c0_183 = arith.constant 0 : index
      %194 = vector.load %arg11[%c0_181, %193, %c0_182, %c0_183] : memref<2x14x14x8xf32, #tpu.memory_space<vmem>>, vector<1x1x14x8xf32>
      %195 = vector.shape_cast %194 : vector<1x1x14x8xf32> to vector<14x8xf32>
      %c0_184 = arith.constant 0 : index
      %c32_185 = arith.constant 32 : index
      %196 = vector.load %arg14[%c0_184, %c32_185] : memref<32x40xf32, #tpu.memory_space<vmem>>, vector<14x8xf32>
      tpu.vector_store %arg14[%c0_184, %c32_185], %195 {strides = array<i32>} : memref<32x40xf32, #tpu.memory_space<vmem>>, vector<14x8xf32>,
      %c0_186 = arith.constant 0 : index
      %c0_187 = arith.constant 0 : index
      %197 = vector.load %arg14[%c0_186, %c0_187] : memref<32x40xf32, #tpu.memory_space<vmem>>, vector<14x40xf32>
      %cst_188 = arith.constant 0.000000e+00 : f32
      %198 = vector.broadcast %cst_188 : f32 to vector<10x16xf32>
      %199 = vector.extract_strided_slice %197 {offsets = [0, 0], sizes = [10, 40], strides = [1, 1]} : vector<14x40xf32> to vector<10x40xf32>
      %c0_189 = arith.constant 0 : index
      %c0_190 = arith.constant 0 : index
      %c0_191 = arith.constant 0 : index
      %200 = vector.load %arg3[%c0_189, %c0_190, %c0_191] : memref<5x40x16xf32, #tpu.memory_space<vmem>>, vector<1x40x16xf32>
      %201 = vector.shape_cast %200 : vector<1x40x16xf32> to vector<40x16xf32>
      %cst_192 = arith.constant dense<0.000000e+00> : vector<10x16xf32>
      %202 = tpu.matmul %199, %201, %cst_192 {dimension_numbers = #tpu.dot_dimension_numbers<[1], [0], [0], [1], [0, 0, 1, 1], [], []>} : vector<10x40xf32>, vector<40x16xf32>, vector<10x16xf32> -> vector<10x16xf32>
      %203 = arith.addf %198, %202 : vector<10x16xf32>
      %204 = vector.extract_strided_slice %197 {offsets = [1, 0], sizes = [10, 40], strides = [1, 1]} : vector<14x40xf32> to vector<10x40xf32>
      %c1_193 = arith.constant 1 : index
      %c0_194 = arith.constant 0 : index
      %c0_195 = arith.constant 0 : index
      %205 = vector.load %arg3[%c1_193, %c0_194, %c0_195] : memref<5x40x16xf32, #tpu.memory_space<vmem>>, vector<1x40x16xf32>
      %206 = vector.shape_cast %205 : vector<1x40x16xf32> to vector<40x16xf32>
      %cst_196 = arith.constant dense<0.000000e+00> : vector<10x16xf32>
      %207 = tpu.matmul %204, %206, %cst_196 {dimension_numbers = #tpu.dot_dimension_numbers<[1], [0], [0], [1], [0, 0, 1, 1], [], []>} : vector<10x40xf32>, vector<40x16xf32>, vector<10x16xf32> -> vector<10x16xf32>
      %208 = arith.addf %203, %207 : vector<10x16xf32>
      %209 = vector.extract_strided_slice %197 {offsets = [2, 0], sizes = [10, 40], strides = [1, 1]} : vector<14x40xf32> to vector<10x40xf32>
      %c2_197 = arith.constant 2 : index
      %c0_198 = arith.constant 0 : index
      %c0_199 = arith.constant 0 : index
      %210 = vector.load %arg3[%c2_197, %c0_198, %c0_199] : memref<5x40x16xf32, #tpu.memory_space<vmem>>, vector<1x40x16xf32>
      %211 = vector.shape_cast %210 : vector<1x40x16xf32> to vector<40x16xf32>
      %cst_200 = arith.constant dense<0.000000e+00> : vector<10x16xf32>
      %212 = tpu.matmul %209, %211, %cst_200 {dimension_numbers = #tpu.dot_dimension_numbers<[1], [0], [0], [1], [0, 0, 1, 1], [], []>} : vector<10x40xf32>, vector<40x16xf32>, vector<10x16xf32> -> vector<10x16xf32>
      %213 = arith.addf %208, %212 : vector<10x16xf32>
      %214 = vector.extract_strided_slice %197 {offsets = [3, 0], sizes = [10, 40], strides = [1, 1]} : vector<14x40xf32> to vector<10x40xf32>
      %c3_201 = arith.constant 3 : index
      %c0_202 = arith.constant 0 : index
      %c0_203 = arith.constant 0 : index
      %215 = vector.load %arg3[%c3_201, %c0_202, %c0_203] : memref<5x40x16xf32, #tpu.memory_space<vmem>>, vector<1x40x16xf32>
      %216 = vector.shape_cast %215 : vector<1x40x16xf32> to vector<40x16xf32>
      %cst_204 = arith.constant dense<0.000000e+00> : vector<10x16xf32>
      %217 = tpu.matmul %214, %216, %cst_204 {dimension_numbers = #tpu.dot_dimension_numbers<[1], [0], [0], [1], [0, 0, 1, 1], [], []>} : vector<10x40xf32>, vector<40x16xf32>, vector<10x16xf32> -> vector<10x16xf32>
      %218 = arith.addf %213, %217 : vector<10x16xf32>
      %219 = vector.extract_strided_slice %197 {offsets = [4, 0], sizes = [10, 40], strides = [1, 1]} : vector<14x40xf32> to vector<10x40xf32>
      %c4_205 = arith.constant 4 : index
      %c0_206 = arith.constant 0 : index
      %c0_207 = arith.constant 0 : index
      %220 = vector.load %arg3[%c4_205, %c0_206, %c0_207] : memref<5x40x16xf32, #tpu.memory_space<vmem>>, vector<1x40x16xf32>
      %221 = vector.shape_cast %220 : vector<1x40x16xf32> to vector<40x16xf32>
      %cst_208 = arith.constant dense<0.000000e+00> : vector<10x16xf32>
      %222 = tpu.matmul %219, %221, %cst_208 {dimension_numbers = #tpu.dot_dimension_numbers<[1], [0], [0], [1], [0, 0, 1, 1], [], []>} : vector<10x40xf32>, vector<40x16xf32>, vector<10x16xf32> -> vector<10x16xf32>
      %223 = arith.addf %218, %222 : vector<10x16xf32>
      %224 = vector.broadcast %19 : vector<1x16xf32> to vector<10x16xf32>
      %225 = arith.addf %223, %224 : vector<10x16xf32>
      %cst_209 = arith.constant 0.000000e+00 : f32
      %226 = vector.broadcast %cst_209 : f32 to vector<10x16xf32>
      %227 = arith.maximumf %225, %226 : vector<10x16xf32>
      %c0_210 = arith.constant 0 : index
      %228 = arith.index_cast %arg16 : i32 to index
      %c0_211 = arith.constant 0 : index
      %c0_212 = arith.constant 0 : index
      %229 = vector.load %arg12[%c0_210, %228, %c0_211, %c0_212] : memref<2x10x10x16xf32, #tpu.memory_space<vmem>>, vector<1x1x10x16xf32>
      %230 = vector.shape_cast %229 : vector<1x1x10x16xf32> to vector<10x16xf32>
      %231 = vector.shape_cast %227 : vector<10x16xf32> to vector<1x1x10x16xf32>
      tpu.vector_store %arg12[%c0_210, %228, %c0_211, %c0_212], %231 {strides = array<i32>} : memref<2x10x10x16xf32, #tpu.memory_space<vmem>>, vector<1x1x10x16xf32>,
    }
    %c10_i32_19 = arith.constant 10 : i32
    %c0_i32_20 = arith.constant 0 : i32
    %c10_i32_21 = arith.constant 10 : i32
    %21 = arith.addi %c0_i32_20, %c10_i32_21 : i32
    %c1_i32_22 = arith.constant 1 : i32
    scf.for %arg16 = %c0_i32_20 to %21 step %c1_i32_22  : i32 {
      %c0_i32_160 = arith.constant 0 : i32
      %172 = arith.addi %arg16, %c0_i32_160 : i32
      %c1_161 = arith.constant 1 : index
      %173 = arith.index_cast %172 : i32 to index
      %c0_162 = arith.constant 0 : index
      %c0_163 = arith.constant 0 : index
      %174 = vector.load %arg11[%c1_161, %173, %c0_162, %c0_163] : memref<2x14x14x8xf32, #tpu.memory_space<vmem>>, vector<1x1x14x8xf32>
      %175 = vector.shape_cast %174 : vector<1x1x14x8xf32> to vector<14x8xf32>
      %c0_164 = arith.constant 0 : index
      %c0_165 = arith.constant 0 : index
      %176 = vector.load %arg14[%c0_164, %c0_165] : memref<32x40xf32, #tpu.memory_space<vmem>>, vector<14x8xf32>
      tpu.vector_store %arg14[%c0_164, %c0_165], %175 {strides = array<i32>} : memref<32x40xf32, #tpu.memory_space<vmem>>, vector<14x8xf32>,
      %c1_i32_166 = arith.constant 1 : i32
      %177 = arith.addi %arg16, %c1_i32_166 : i32
      %c1_167 = arith.constant 1 : index
      %178 = arith.index_cast %177 : i32 to index
      %c0_168 = arith.constant 0 : index
      %c0_169 = arith.constant 0 : index
      %179 = vector.load %arg11[%c1_167, %178, %c0_168, %c0_169] : memref<2x14x14x8xf32, #tpu.memory_space<vmem>>, vector<1x1x14x8xf32>
      %180 = vector.shape_cast %179 : vector<1x1x14x8xf32> to vector<14x8xf32>
      %c0_170 = arith.constant 0 : index
      %c8 = arith.constant 8 : index
      %181 = vector.load %arg14[%c0_170, %c8] : memref<32x40xf32, #tpu.memory_space<vmem>>, vector<14x8xf32>
      tpu.vector_store %arg14[%c0_170, %c8], %180 {strides = array<i32>} : memref<32x40xf32, #tpu.memory_space<vmem>>, vector<14x8xf32>,
      %c2_i32_171 = arith.constant 2 : i32
      %182 = arith.addi %arg16, %c2_i32_171 : i32
      %c1_172 = arith.constant 1 : index
      %183 = arith.index_cast %182 : i32 to index
      %c0_173 = arith.constant 0 : index
      %c0_174 = arith.constant 0 : index
      %184 = vector.load %arg11[%c1_172, %183, %c0_173, %c0_174] : memref<2x14x14x8xf32, #tpu.memory_space<vmem>>, vector<1x1x14x8xf32>
      %185 = vector.shape_cast %184 : vector<1x1x14x8xf32> to vector<14x8xf32>
      %c0_175 = arith.constant 0 : index
      %c16_176 = arith.constant 16 : index
      %186 = vector.load %arg14[%c0_175, %c16_176] : memref<32x40xf32, #tpu.memory_space<vmem>>, vector<14x8xf32>
      tpu.vector_store %arg14[%c0_175, %c16_176], %185 {strides = array<i32>} : memref<32x40xf32, #tpu.memory_space<vmem>>, vector<14x8xf32>,
      %c3_i32 = arith.constant 3 : i32
      %187 = arith.addi %arg16, %c3_i32 : i32
      %c1_177 = arith.constant 1 : index
      %188 = arith.index_cast %187 : i32 to index
      %c0_178 = arith.constant 0 : index
      %c0_179 = arith.constant 0 : index
      %189 = vector.load %arg11[%c1_177, %188, %c0_178, %c0_179] : memref<2x14x14x8xf32, #tpu.memory_space<vmem>>, vector<1x1x14x8xf32>
      %190 = vector.shape_cast %189 : vector<1x1x14x8xf32> to vector<14x8xf32>
      %c0_180 = arith.constant 0 : index
      %c24 = arith.constant 24 : index
      %191 = vector.load %arg14[%c0_180, %c24] : memref<32x40xf32, #tpu.memory_space<vmem>>, vector<14x8xf32>
      tpu.vector_store %arg14[%c0_180, %c24], %190 {strides = array<i32>} : memref<32x40xf32, #tpu.memory_space<vmem>>, vector<14x8xf32>,
      %c4_i32 = arith.constant 4 : i32
      %192 = arith.addi %arg16, %c4_i32 : i32
      %c1_181 = arith.constant 1 : index
      %193 = arith.index_cast %192 : i32 to index
      %c0_182 = arith.constant 0 : index
      %c0_183 = arith.constant 0 : index
      %194 = vector.load %arg11[%c1_181, %193, %c0_182, %c0_183] : memref<2x14x14x8xf32, #tpu.memory_space<vmem>>, vector<1x1x14x8xf32>
      %195 = vector.shape_cast %194 : vector<1x1x14x8xf32> to vector<14x8xf32>
      %c0_184 = arith.constant 0 : index
      %c32_185 = arith.constant 32 : index
      %196 = vector.load %arg14[%c0_184, %c32_185] : memref<32x40xf32, #tpu.memory_space<vmem>>, vector<14x8xf32>
      tpu.vector_store %arg14[%c0_184, %c32_185], %195 {strides = array<i32>} : memref<32x40xf32, #tpu.memory_space<vmem>>, vector<14x8xf32>,
      %c0_186 = arith.constant 0 : index
      %c0_187 = arith.constant 0 : index
      %197 = vector.load %arg14[%c0_186, %c0_187] : memref<32x40xf32, #tpu.memory_space<vmem>>, vector<14x40xf32>
      %cst_188 = arith.constant 0.000000e+00 : f32
      %198 = vector.broadcast %cst_188 : f32 to vector<10x16xf32>
      %199 = vector.extract_strided_slice %197 {offsets = [0, 0], sizes = [10, 40], strides = [1, 1]} : vector<14x40xf32> to vector<10x40xf32>
      %c0_189 = arith.constant 0 : index
      %c0_190 = arith.constant 0 : index
      %c0_191 = arith.constant 0 : index
      %200 = vector.load %arg3[%c0_189, %c0_190, %c0_191] : memref<5x40x16xf32, #tpu.memory_space<vmem>>, vector<1x40x16xf32>
      %201 = vector.shape_cast %200 : vector<1x40x16xf32> to vector<40x16xf32>
      %cst_192 = arith.constant dense<0.000000e+00> : vector<10x16xf32>
      %202 = tpu.matmul %199, %201, %cst_192 {dimension_numbers = #tpu.dot_dimension_numbers<[1], [0], [0], [1], [0, 0, 1, 1], [], []>} : vector<10x40xf32>, vector<40x16xf32>, vector<10x16xf32> -> vector<10x16xf32>
      %203 = arith.addf %198, %202 : vector<10x16xf32>
      %204 = vector.extract_strided_slice %197 {offsets = [1, 0], sizes = [10, 40], strides = [1, 1]} : vector<14x40xf32> to vector<10x40xf32>
      %c1_193 = arith.constant 1 : index
      %c0_194 = arith.constant 0 : index
      %c0_195 = arith.constant 0 : index
      %205 = vector.load %arg3[%c1_193, %c0_194, %c0_195] : memref<5x40x16xf32, #tpu.memory_space<vmem>>, vector<1x40x16xf32>
      %206 = vector.shape_cast %205 : vector<1x40x16xf32> to vector<40x16xf32>
      %cst_196 = arith.constant dense<0.000000e+00> : vector<10x16xf32>
      %207 = tpu.matmul %204, %206, %cst_196 {dimension_numbers = #tpu.dot_dimension_numbers<[1], [0], [0], [1], [0, 0, 1, 1], [], []>} : vector<10x40xf32>, vector<40x16xf32>, vector<10x16xf32> -> vector<10x16xf32>
      %208 = arith.addf %203, %207 : vector<10x16xf32>
      %209 = vector.extract_strided_slice %197 {offsets = [2, 0], sizes = [10, 40], strides = [1, 1]} : vector<14x40xf32> to vector<10x40xf32>
      %c2_197 = arith.constant 2 : index
      %c0_198 = arith.constant 0 : index
      %c0_199 = arith.constant 0 : index
      %210 = vector.load %arg3[%c2_197, %c0_198, %c0_199] : memref<5x40x16xf32, #tpu.memory_space<vmem>>, vector<1x40x16xf32>
      %211 = vector.shape_cast %210 : vector<1x40x16xf32> to vector<40x16xf32>
      %cst_200 = arith.constant dense<0.000000e+00> : vector<10x16xf32>
      %212 = tpu.matmul %209, %211, %cst_200 {dimension_numbers = #tpu.dot_dimension_numbers<[1], [0], [0], [1], [0, 0, 1, 1], [], []>} : vector<10x40xf32>, vector<40x16xf32>, vector<10x16xf32> -> vector<10x16xf32>
      %213 = arith.addf %208, %212 : vector<10x16xf32>
      %214 = vector.extract_strided_slice %197 {offsets = [3, 0], sizes = [10, 40], strides = [1, 1]} : vector<14x40xf32> to vector<10x40xf32>
      %c3_201 = arith.constant 3 : index
      %c0_202 = arith.constant 0 : index
      %c0_203 = arith.constant 0 : index
      %215 = vector.load %arg3[%c3_201, %c0_202, %c0_203] : memref<5x40x16xf32, #tpu.memory_space<vmem>>, vector<1x40x16xf32>
      %216 = vector.shape_cast %215 : vector<1x40x16xf32> to vector<40x16xf32>
      %cst_204 = arith.constant dense<0.000000e+00> : vector<10x16xf32>
      %217 = tpu.matmul %214, %216, %cst_204 {dimension_numbers = #tpu.dot_dimension_numbers<[1], [0], [0], [1], [0, 0, 1, 1], [], []>} : vector<10x40xf32>, vector<40x16xf32>, vector<10x16xf32> -> vector<10x16xf32>
      %218 = arith.addf %213, %217 : vector<10x16xf32>
      %219 = vector.extract_strided_slice %197 {offsets = [4, 0], sizes = [10, 40], strides = [1, 1]} : vector<14x40xf32> to vector<10x40xf32>
      %c4_205 = arith.constant 4 : index
      %c0_206 = arith.constant 0 : index
      %c0_207 = arith.constant 0 : index
      %220 = vector.load %arg3[%c4_205, %c0_206, %c0_207] : memref<5x40x16xf32, #tpu.memory_space<vmem>>, vector<1x40x16xf32>
      %221 = vector.shape_cast %220 : vector<1x40x16xf32> to vector<40x16xf32>
      %cst_208 = arith.constant dense<0.000000e+00> : vector<10x16xf32>
      %222 = tpu.matmul %219, %221, %cst_208 {dimension_numbers = #tpu.dot_dimension_numbers<[1], [0], [0], [1], [0, 0, 1, 1], [], []>} : vector<10x40xf32>, vector<40x16xf32>, vector<10x16xf32> -> vector<10x16xf32>
      %223 = arith.addf %218, %222 : vector<10x16xf32>
      %224 = vector.broadcast %19 : vector<1x16xf32> to vector<10x16xf32>
      %225 = arith.addf %223, %224 : vector<10x16xf32>
      %cst_209 = arith.constant 0.000000e+00 : f32
      %226 = vector.broadcast %cst_209 : f32 to vector<10x16xf32>
      %227 = arith.maximumf %225, %226 : vector<10x16xf32>
      %c1_210 = arith.constant 1 : index
      %228 = arith.index_cast %arg16 : i32 to index
      %c0_211 = arith.constant 0 : index
      %c0_212 = arith.constant 0 : index
      %229 = vector.load %arg12[%c1_210, %228, %c0_211, %c0_212] : memref<2x10x10x16xf32, #tpu.memory_space<vmem>>, vector<1x1x10x16xf32>
      %230 = vector.shape_cast %229 : vector<1x1x10x16xf32> to vector<10x16xf32>
      %231 = vector.shape_cast %227 : vector<10x16xf32> to vector<1x1x10x16xf32>
      tpu.vector_store %arg12[%c1_210, %228, %c0_211, %c0_212], %231 {strides = array<i32>} : memref<2x10x10x16xf32, #tpu.memory_space<vmem>>, vector<1x1x10x16xf32>,
    }
    %c10_i32_23 = arith.constant 10 : i32
    %22 = tpu.iota {dimensions = array<i32: 0>} : vector<5x10xi32>
    %23 = tpu.iota {dimensions = array<i32: 1>} : vector<5x10xi32>
    %c2_i32_24 = arith.constant 2 : i32
    %24 = vector.broadcast %c2_i32_24 : i32 to vector<5x10xi32>
    %25 = arith.muli %24, %22 : vector<5x10xi32>
    %26 = arith.cmpi eq, %23, %25 : vector<5x10xi32>
    %27 = arith.extui %26 : vector<5x10xi1> to vector<5x10xi32>
    %28 = arith.sitofp %27 : vector<5x10xi32> to vector<5x10xf32>
    %c2_i32_25 = arith.constant 2 : i32
    %29 = vector.broadcast %c2_i32_25 : i32 to vector<5x10xi32>
    %30 = arith.muli %29, %22 : vector<5x10xi32>
    %c1_i32_26 = arith.constant 1 : i32
    %31 = vector.broadcast %c1_i32_26 : i32 to vector<5x10xi32>
    %32 = arith.addi %30, %31 : vector<5x10xi32>
    %33 = arith.cmpi eq, %23, %32 : vector<5x10xi32>
    %34 = arith.extui %33 : vector<5x10xi1> to vector<5x10xi32>
    %35 = arith.sitofp %34 : vector<5x10xi32> to vector<5x10xf32>
    %c0_i32_27 = arith.constant 0 : i32
    %c5_i32 = arith.constant 5 : i32
    %36 = arith.addi %c0_i32_27, %c5_i32 : i32
    %c1_i32_28 = arith.constant 1 : i32
    scf.for %arg16 = %c0_i32_27 to %36 step %c1_i32_28  : i32 {
      %c2_i32_160 = arith.constant 2 : i32
      %172 = arith.muli %c2_i32_160, %arg16 : i32
      %c0_161 = arith.constant 0 : index
      %173 = arith.index_cast %172 : i32 to index
      %c0_162 = arith.constant 0 : index
      %c0_163 = arith.constant 0 : index
      %174 = vector.load %arg12[%c0_161, %173, %c0_162, %c0_163] : memref<2x10x10x16xf32, #tpu.memory_space<vmem>>, vector<1x1x10x16xf32>
      %175 = vector.shape_cast %174 : vector<1x1x10x16xf32> to vector<10x16xf32>
      %c2_i32_164 = arith.constant 2 : i32
      %176 = arith.muli %c2_i32_164, %arg16 : i32
      %c1_i32_165 = arith.constant 1 : i32
      %177 = arith.addi %176, %c1_i32_165 : i32
      %c0_166 = arith.constant 0 : index
      %178 = arith.index_cast %177 : i32 to index
      %c0_167 = arith.constant 0 : index
      %c0_168 = arith.constant 0 : index
      %179 = vector.load %arg12[%c0_166, %178, %c0_167, %c0_168] : memref<2x10x10x16xf32, #tpu.memory_space<vmem>>, vector<1x1x10x16xf32>
      %180 = vector.shape_cast %179 : vector<1x1x10x16xf32> to vector<10x16xf32>
      %181 = arith.maximumf %175, %180 : vector<10x16xf32>
      %cst_169 = arith.constant dense<0.000000e+00> : vector<5x16xf32>
      %182 = tpu.matmul %28, %181, %cst_169 {dimension_numbers = #tpu.dot_dimension_numbers<[1], [0], [0], [1], [0, 0, 1, 1], [], []>} : vector<5x10xf32>, vector<10x16xf32>, vector<5x16xf32> -> vector<5x16xf32>
      %cst_170 = arith.constant dense<0.000000e+00> : vector<5x16xf32>
      %183 = tpu.matmul %35, %181, %cst_170 {dimension_numbers = #tpu.dot_dimension_numbers<[1], [0], [0], [1], [0, 0, 1, 1], [], []>} : vector<5x10xf32>, vector<10x16xf32>, vector<5x16xf32> -> vector<5x16xf32>
      %184 = arith.maximumf %182, %183 : vector<5x16xf32>
      %c0_171 = arith.constant 0 : index
      %185 = arith.index_cast %arg16 : i32 to index
      %c0_172 = arith.constant 0 : index
      %c0_173 = arith.constant 0 : index
      %186 = vector.load %arg13[%c0_171, %185, %c0_172, %c0_173] : memref<2x5x5x16xf32, #tpu.memory_space<vmem>>, vector<1x1x5x16xf32>
      %187 = vector.shape_cast %186 : vector<1x1x5x16xf32> to vector<5x16xf32>
      %188 = vector.shape_cast %184 : vector<5x16xf32> to vector<1x1x5x16xf32>
      tpu.vector_store %arg13[%c0_171, %185, %c0_172, %c0_173], %188 {strides = array<i32>} : memref<2x5x5x16xf32, #tpu.memory_space<vmem>>, vector<1x1x5x16xf32>,
    }
    %c5_i32_29 = arith.constant 5 : i32
    %c0_i32_30 = arith.constant 0 : i32
    %c5_i32_31 = arith.constant 5 : i32
    %37 = arith.addi %c0_i32_30, %c5_i32_31 : i32
    %c1_i32_32 = arith.constant 1 : i32
    scf.for %arg16 = %c0_i32_30 to %37 step %c1_i32_32  : i32 {
      %c2_i32_160 = arith.constant 2 : i32
      %172 = arith.muli %c2_i32_160, %arg16 : i32
      %c1_161 = arith.constant 1 : index
      %173 = arith.index_cast %172 : i32 to index
      %c0_162 = arith.constant 0 : index
      %c0_163 = arith.constant 0 : index
      %174 = vector.load %arg12[%c1_161, %173, %c0_162, %c0_163] : memref<2x10x10x16xf32, #tpu.memory_space<vmem>>, vector<1x1x10x16xf32>
      %175 = vector.shape_cast %174 : vector<1x1x10x16xf32> to vector<10x16xf32>
      %c2_i32_164 = arith.constant 2 : i32
      %176 = arith.muli %c2_i32_164, %arg16 : i32
      %c1_i32_165 = arith.constant 1 : i32
      %177 = arith.addi %176, %c1_i32_165 : i32
      %c1_166 = arith.constant 1 : index
      %178 = arith.index_cast %177 : i32 to index
      %c0_167 = arith.constant 0 : index
      %c0_168 = arith.constant 0 : index
      %179 = vector.load %arg12[%c1_166, %178, %c0_167, %c0_168] : memref<2x10x10x16xf32, #tpu.memory_space<vmem>>, vector<1x1x10x16xf32>
      %180 = vector.shape_cast %179 : vector<1x1x10x16xf32> to vector<10x16xf32>
      %181 = arith.maximumf %175, %180 : vector<10x16xf32>
      %cst_169 = arith.constant dense<0.000000e+00> : vector<5x16xf32>
      %182 = tpu.matmul %28, %181, %cst_169 {dimension_numbers = #tpu.dot_dimension_numbers<[1], [0], [0], [1], [0, 0, 1, 1], [], []>} : vector<5x10xf32>, vector<10x16xf32>, vector<5x16xf32> -> vector<5x16xf32>
      %cst_170 = arith.constant dense<0.000000e+00> : vector<5x16xf32>
      %183 = tpu.matmul %35, %181, %cst_170 {dimension_numbers = #tpu.dot_dimension_numbers<[1], [0], [0], [1], [0, 0, 1, 1], [], []>} : vector<5x10xf32>, vector<10x16xf32>, vector<5x16xf32> -> vector<5x16xf32>
      %184 = arith.maximumf %182, %183 : vector<5x16xf32>
      %c1_171 = arith.constant 1 : index
      %185 = arith.index_cast %arg16 : i32 to index
      %c0_172 = arith.constant 0 : index
      %c0_173 = arith.constant 0 : index
      %186 = vector.load %arg13[%c1_171, %185, %c0_172, %c0_173] : memref<2x5x5x16xf32, #tpu.memory_space<vmem>>, vector<1x1x5x16xf32>
      %187 = vector.shape_cast %186 : vector<1x1x5x16xf32> to vector<5x16xf32>
      %188 = vector.shape_cast %184 : vector<5x16xf32> to vector<1x1x5x16xf32>
      tpu.vector_store %arg13[%c1_171, %185, %c0_172, %c0_173], %188 {strides = array<i32>} : memref<2x5x5x16xf32, #tpu.memory_space<vmem>>, vector<1x1x5x16xf32>,
    }
    %c5_i32_33 = arith.constant 5 : i32
    %c0_34 = arith.constant 0 : index
    %c0_35 = arith.constant 0 : index
    %c0_36 = arith.constant 0 : index
    %c0_37 = arith.constant 0 : index
    %38 = vector.load %arg13[%c0_34, %c0_35, %c0_36, %c0_37] : memref<2x5x5x16xf32, #tpu.memory_space<vmem>>, vector<1x1x5x16xf32>
    %39 = vector.shape_cast %38 : vector<1x1x5x16xf32> to vector<5x16xf32>
    %40 = vector.extract_strided_slice %39 {offsets = [0, 0], sizes = [1, 16], strides = [1, 1]} : vector<5x16xf32> to vector<1x16xf32>
    %c0_38 = arith.constant 0 : index
    %c0_39 = arith.constant 0 : index
    %41 = vector.load %arg15[%c0_38, %c0_39] : memref<2x400xf32, #tpu.memory_space<vmem>>, vector<1x16xf32>
    tpu.vector_store %arg15[%c0_38, %c0_39], %40 {strides = array<i32>} : memref<2x400xf32, #tpu.memory_space<vmem>>, vector<1x16xf32>,
    %42 = vector.extract_strided_slice %39 {offsets = [1, 0], sizes = [1, 16], strides = [1, 1]} : vector<5x16xf32> to vector<1x16xf32>
    %c0_40 = arith.constant 0 : index
    %c16 = arith.constant 16 : index
    %43 = vector.load %arg15[%c0_40, %c16] : memref<2x400xf32, #tpu.memory_space<vmem>>, vector<1x16xf32>
    tpu.vector_store %arg15[%c0_40, %c16], %42 {strides = array<i32>} : memref<2x400xf32, #tpu.memory_space<vmem>>, vector<1x16xf32>,
    %44 = vector.extract_strided_slice %39 {offsets = [2, 0], sizes = [1, 16], strides = [1, 1]} : vector<5x16xf32> to vector<1x16xf32>
    %c0_41 = arith.constant 0 : index
    %c32 = arith.constant 32 : index
    %45 = vector.load %arg15[%c0_41, %c32] : memref<2x400xf32, #tpu.memory_space<vmem>>, vector<1x16xf32>
    tpu.vector_store %arg15[%c0_41, %c32], %44 {strides = array<i32>} : memref<2x400xf32, #tpu.memory_space<vmem>>, vector<1x16xf32>,
    %46 = vector.extract_strided_slice %39 {offsets = [3, 0], sizes = [1, 16], strides = [1, 1]} : vector<5x16xf32> to vector<1x16xf32>
    %c0_42 = arith.constant 0 : index
    %c48 = arith.constant 48 : index
    %47 = vector.load %arg15[%c0_42, %c48] : memref<2x400xf32, #tpu.memory_space<vmem>>, vector<1x16xf32>
    tpu.vector_store %arg15[%c0_42, %c48], %46 {strides = array<i32>} : memref<2x400xf32, #tpu.memory_space<vmem>>, vector<1x16xf32>,
    %48 = vector.extract_strided_slice %39 {offsets = [4, 0], sizes = [1, 16], strides = [1, 1]} : vector<5x16xf32> to vector<1x16xf32>
    %c0_43 = arith.constant 0 : index
    %c64 = arith.constant 64 : index
    %49 = vector.load %arg15[%c0_43, %c64] : memref<2x400xf32, #tpu.memory_space<vmem>>, vector<1x16xf32>
    tpu.vector_store %arg15[%c0_43, %c64], %48 {strides = array<i32>} : memref<2x400xf32, #tpu.memory_space<vmem>>, vector<1x16xf32>,
    %c0_44 = arith.constant 0 : index
    %c1 = arith.constant 1 : index
    %c0_45 = arith.constant 0 : index
    %c0_46 = arith.constant 0 : index
    %50 = vector.load %arg13[%c0_44, %c1, %c0_45, %c0_46] : memref<2x5x5x16xf32, #tpu.memory_space<vmem>>, vector<1x1x5x16xf32>
    %51 = vector.shape_cast %50 : vector<1x1x5x16xf32> to vector<5x16xf32>
    %52 = vector.extract_strided_slice %51 {offsets = [0, 0], sizes = [1, 16], strides = [1, 1]} : vector<5x16xf32> to vector<1x16xf32>
    %c0_47 = arith.constant 0 : index
    %c80 = arith.constant 80 : index
    %53 = vector.load %arg15[%c0_47, %c80] : memref<2x400xf32, #tpu.memory_space<vmem>>, vector<1x16xf32>
    tpu.vector_store %arg15[%c0_47, %c80], %52 {strides = array<i32>} : memref<2x400xf32, #tpu.memory_space<vmem>>, vector<1x16xf32>,
    %54 = vector.extract_strided_slice %51 {offsets = [1, 0], sizes = [1, 16], strides = [1, 1]} : vector<5x16xf32> to vector<1x16xf32>
    %c0_48 = arith.constant 0 : index
    %c96 = arith.constant 96 : index
    %55 = vector.load %arg15[%c0_48, %c96] : memref<2x400xf32, #tpu.memory_space<vmem>>, vector<1x16xf32>
    tpu.vector_store %arg15[%c0_48, %c96], %54 {strides = array<i32>} : memref<2x400xf32, #tpu.memory_space<vmem>>, vector<1x16xf32>,
    %56 = vector.extract_strided_slice %51 {offsets = [2, 0], sizes = [1, 16], strides = [1, 1]} : vector<5x16xf32> to vector<1x16xf32>
    %c0_49 = arith.constant 0 : index
    %c112 = arith.constant 112 : index
    %57 = vector.load %arg15[%c0_49, %c112] : memref<2x400xf32, #tpu.memory_space<vmem>>, vector<1x16xf32>
    tpu.vector_store %arg15[%c0_49, %c112], %56 {strides = array<i32>} : memref<2x400xf32, #tpu.memory_space<vmem>>, vector<1x16xf32>,
    %58 = vector.extract_strided_slice %51 {offsets = [3, 0], sizes = [1, 16], strides = [1, 1]} : vector<5x16xf32> to vector<1x16xf32>
    %c0_50 = arith.constant 0 : index
    %c128 = arith.constant 128 : index
    %59 = vector.load %arg15[%c0_50, %c128] : memref<2x400xf32, #tpu.memory_space<vmem>>, vector<1x16xf32>
    tpu.vector_store %arg15[%c0_50, %c128], %58 {strides = array<i32>} : memref<2x400xf32, #tpu.memory_space<vmem>>, vector<1x16xf32>,
    %60 = vector.extract_strided_slice %51 {offsets = [4, 0], sizes = [1, 16], strides = [1, 1]} : vector<5x16xf32> to vector<1x16xf32>
    %c0_51 = arith.constant 0 : index
    %c144 = arith.constant 144 : index
    %61 = vector.load %arg15[%c0_51, %c144] : memref<2x400xf32, #tpu.memory_space<vmem>>, vector<1x16xf32>
    tpu.vector_store %arg15[%c0_51, %c144], %60 {strides = array<i32>} : memref<2x400xf32, #tpu.memory_space<vmem>>, vector<1x16xf32>,
    %c0_52 = arith.constant 0 : index
    %c2 = arith.constant 2 : index
    %c0_53 = arith.constant 0 : index
    %c0_54 = arith.constant 0 : index
    %62 = vector.load %arg13[%c0_52, %c2, %c0_53, %c0_54] : memref<2x5x5x16xf32, #tpu.memory_space<vmem>>, vector<1x1x5x16xf32>
    %63 = vector.shape_cast %62 : vector<1x1x5x16xf32> to vector<5x16xf32>
    %64 = vector.extract_strided_slice %63 {offsets = [0, 0], sizes = [1, 16], strides = [1, 1]} : vector<5x16xf32> to vector<1x16xf32>
    %c0_55 = arith.constant 0 : index
    %c160 = arith.constant 160 : index
    %65 = vector.load %arg15[%c0_55, %c160] : memref<2x400xf32, #tpu.memory_space<vmem>>, vector<1x16xf32>
    tpu.vector_store %arg15[%c0_55, %c160], %64 {strides = array<i32>} : memref<2x400xf32, #tpu.memory_space<vmem>>, vector<1x16xf32>,
    %66 = vector.extract_strided_slice %63 {offsets = [1, 0], sizes = [1, 16], strides = [1, 1]} : vector<5x16xf32> to vector<1x16xf32>
    %c0_56 = arith.constant 0 : index
    %c176 = arith.constant 176 : index
    %67 = vector.load %arg15[%c0_56, %c176] : memref<2x400xf32, #tpu.memory_space<vmem>>, vector<1x16xf32>
    tpu.vector_store %arg15[%c0_56, %c176], %66 {strides = array<i32>} : memref<2x400xf32, #tpu.memory_space<vmem>>, vector<1x16xf32>,
    %68 = vector.extract_strided_slice %63 {offsets = [2, 0], sizes = [1, 16], strides = [1, 1]} : vector<5x16xf32> to vector<1x16xf32>
    %c0_57 = arith.constant 0 : index
    %c192 = arith.constant 192 : index
    %69 = vector.load %arg15[%c0_57, %c192] : memref<2x400xf32, #tpu.memory_space<vmem>>, vector<1x16xf32>
    tpu.vector_store %arg15[%c0_57, %c192], %68 {strides = array<i32>} : memref<2x400xf32, #tpu.memory_space<vmem>>, vector<1x16xf32>,
    %70 = vector.extract_strided_slice %63 {offsets = [3, 0], sizes = [1, 16], strides = [1, 1]} : vector<5x16xf32> to vector<1x16xf32>
    %c0_58 = arith.constant 0 : index
    %c208 = arith.constant 208 : index
    %71 = vector.load %arg15[%c0_58, %c208] : memref<2x400xf32, #tpu.memory_space<vmem>>, vector<1x16xf32>
    tpu.vector_store %arg15[%c0_58, %c208], %70 {strides = array<i32>} : memref<2x400xf32, #tpu.memory_space<vmem>>, vector<1x16xf32>,
    %72 = vector.extract_strided_slice %63 {offsets = [4, 0], sizes = [1, 16], strides = [1, 1]} : vector<5x16xf32> to vector<1x16xf32>
    %c0_59 = arith.constant 0 : index
    %c224 = arith.constant 224 : index
    %73 = vector.load %arg15[%c0_59, %c224] : memref<2x400xf32, #tpu.memory_space<vmem>>, vector<1x16xf32>
    tpu.vector_store %arg15[%c0_59, %c224], %72 {strides = array<i32>} : memref<2x400xf32, #tpu.memory_space<vmem>>, vector<1x16xf32>,
    %c0_60 = arith.constant 0 : index
    %c3 = arith.constant 3 : index
    %c0_61 = arith.constant 0 : index
    %c0_62 = arith.constant 0 : index
    %74 = vector.load %arg13[%c0_60, %c3, %c0_61, %c0_62] : memref<2x5x5x16xf32, #tpu.memory_space<vmem>>, vector<1x1x5x16xf32>
    %75 = vector.shape_cast %74 : vector<1x1x5x16xf32> to vector<5x16xf32>
    %76 = vector.extract_strided_slice %75 {offsets = [0, 0], sizes = [1, 16], strides = [1, 1]} : vector<5x16xf32> to vector<1x16xf32>
    %c0_63 = arith.constant 0 : index
    %c240 = arith.constant 240 : index
    %77 = vector.load %arg15[%c0_63, %c240] : memref<2x400xf32, #tpu.memory_space<vmem>>, vector<1x16xf32>
    tpu.vector_store %arg15[%c0_63, %c240], %76 {strides = array<i32>} : memref<2x400xf32, #tpu.memory_space<vmem>>, vector<1x16xf32>,
    %78 = vector.extract_strided_slice %75 {offsets = [1, 0], sizes = [1, 16], strides = [1, 1]} : vector<5x16xf32> to vector<1x16xf32>
    %c0_64 = arith.constant 0 : index
    %c256 = arith.constant 256 : index
    %79 = vector.load %arg15[%c0_64, %c256] : memref<2x400xf32, #tpu.memory_space<vmem>>, vector<1x16xf32>
    tpu.vector_store %arg15[%c0_64, %c256], %78 {strides = array<i32>} : memref<2x400xf32, #tpu.memory_space<vmem>>, vector<1x16xf32>,
    %80 = vector.extract_strided_slice %75 {offsets = [2, 0], sizes = [1, 16], strides = [1, 1]} : vector<5x16xf32> to vector<1x16xf32>
    %c0_65 = arith.constant 0 : index
    %c272 = arith.constant 272 : index
    %81 = vector.load %arg15[%c0_65, %c272] : memref<2x400xf32, #tpu.memory_space<vmem>>, vector<1x16xf32>
    tpu.vector_store %arg15[%c0_65, %c272], %80 {strides = array<i32>} : memref<2x400xf32, #tpu.memory_space<vmem>>, vector<1x16xf32>,
    %82 = vector.extract_strided_slice %75 {offsets = [3, 0], sizes = [1, 16], strides = [1, 1]} : vector<5x16xf32> to vector<1x16xf32>
    %c0_66 = arith.constant 0 : index
    %c288 = arith.constant 288 : index
    %83 = vector.load %arg15[%c0_66, %c288] : memref<2x400xf32, #tpu.memory_space<vmem>>, vector<1x16xf32>
    tpu.vector_store %arg15[%c0_66, %c288], %82 {strides = array<i32>} : memref<2x400xf32, #tpu.memory_space<vmem>>, vector<1x16xf32>,
    %84 = vector.extract_strided_slice %75 {offsets = [4, 0], sizes = [1, 16], strides = [1, 1]} : vector<5x16xf32> to vector<1x16xf32>
    %c0_67 = arith.constant 0 : index
    %c304 = arith.constant 304 : index
    %85 = vector.load %arg15[%c0_67, %c304] : memref<2x400xf32, #tpu.memory_space<vmem>>, vector<1x16xf32>
    tpu.vector_store %arg15[%c0_67, %c304], %84 {strides = array<i32>} : memref<2x400xf32, #tpu.memory_space<vmem>>, vector<1x16xf32>,
    %c0_68 = arith.constant 0 : index
    %c4 = arith.constant 4 : index
    %c0_69 = arith.constant 0 : index
    %c0_70 = arith.constant 0 : index
    %86 = vector.load %arg13[%c0_68, %c4, %c0_69, %c0_70] : memref<2x5x5x16xf32, #tpu.memory_space<vmem>>, vector<1x1x5x16xf32>
    %87 = vector.shape_cast %86 : vector<1x1x5x16xf32> to vector<5x16xf32>
    %88 = vector.extract_strided_slice %87 {offsets = [0, 0], sizes = [1, 16], strides = [1, 1]} : vector<5x16xf32> to vector<1x16xf32>
    %c0_71 = arith.constant 0 : index
    %c320 = arith.constant 320 : index
    %89 = vector.load %arg15[%c0_71, %c320] : memref<2x400xf32, #tpu.memory_space<vmem>>, vector<1x16xf32>
    tpu.vector_store %arg15[%c0_71, %c320], %88 {strides = array<i32>} : memref<2x400xf32, #tpu.memory_space<vmem>>, vector<1x16xf32>,
    %90 = vector.extract_strided_slice %87 {offsets = [1, 0], sizes = [1, 16], strides = [1, 1]} : vector<5x16xf32> to vector<1x16xf32>
    %c0_72 = arith.constant 0 : index
    %c336 = arith.constant 336 : index
    %91 = vector.load %arg15[%c0_72, %c336] : memref<2x400xf32, #tpu.memory_space<vmem>>, vector<1x16xf32>
    tpu.vector_store %arg15[%c0_72, %c336], %90 {strides = array<i32>} : memref<2x400xf32, #tpu.memory_space<vmem>>, vector<1x16xf32>,
    %92 = vector.extract_strided_slice %87 {offsets = [2, 0], sizes = [1, 16], strides = [1, 1]} : vector<5x16xf32> to vector<1x16xf32>
    %c0_73 = arith.constant 0 : index
    %c352 = arith.constant 352 : index
    %93 = vector.load %arg15[%c0_73, %c352] : memref<2x400xf32, #tpu.memory_space<vmem>>, vector<1x16xf32>
    tpu.vector_store %arg15[%c0_73, %c352], %92 {strides = array<i32>} : memref<2x400xf32, #tpu.memory_space<vmem>>, vector<1x16xf32>,
    %94 = vector.extract_strided_slice %87 {offsets = [3, 0], sizes = [1, 16], strides = [1, 1]} : vector<5x16xf32> to vector<1x16xf32>
    %c0_74 = arith.constant 0 : index
    %c368 = arith.constant 368 : index
    %95 = vector.load %arg15[%c0_74, %c368] : memref<2x400xf32, #tpu.memory_space<vmem>>, vector<1x16xf32>
    tpu.vector_store %arg15[%c0_74, %c368], %94 {strides = array<i32>} : memref<2x400xf32, #tpu.memory_space<vmem>>, vector<1x16xf32>,
    %96 = vector.extract_strided_slice %87 {offsets = [4, 0], sizes = [1, 16], strides = [1, 1]} : vector<5x16xf32> to vector<1x16xf32>
    %c0_75 = arith.constant 0 : index
    %c384 = arith.constant 384 : index
    %97 = vector.load %arg15[%c0_75, %c384] : memref<2x400xf32, #tpu.memory_space<vmem>>, vector<1x16xf32>
    tpu.vector_store %arg15[%c0_75, %c384], %96 {strides = array<i32>} : memref<2x400xf32, #tpu.memory_space<vmem>>, vector<1x16xf32>,
    %c1_76 = arith.constant 1 : index
    %c0_77 = arith.constant 0 : index
    %c0_78 = arith.constant 0 : index
    %c0_79 = arith.constant 0 : index
    %98 = vector.load %arg13[%c1_76, %c0_77, %c0_78, %c0_79] : memref<2x5x5x16xf32, #tpu.memory_space<vmem>>, vector<1x1x5x16xf32>
    %99 = vector.shape_cast %98 : vector<1x1x5x16xf32> to vector<5x16xf32>
    %100 = vector.extract_strided_slice %99 {offsets = [0, 0], sizes = [1, 16], strides = [1, 1]} : vector<5x16xf32> to vector<1x16xf32>
    %c1_80 = arith.constant 1 : index
    %c0_81 = arith.constant 0 : index
    %101 = vector.load %arg15[%c1_80, %c0_81] : memref<2x400xf32, #tpu.memory_space<vmem>>, vector<1x16xf32>
    tpu.vector_store %arg15[%c1_80, %c0_81], %100 {strides = array<i32>} : memref<2x400xf32, #tpu.memory_space<vmem>>, vector<1x16xf32>,
    %102 = vector.extract_strided_slice %99 {offsets = [1, 0], sizes = [1, 16], strides = [1, 1]} : vector<5x16xf32> to vector<1x16xf32>
    %c1_82 = arith.constant 1 : index
    %c16_83 = arith.constant 16 : index
    %103 = vector.load %arg15[%c1_82, %c16_83] : memref<2x400xf32, #tpu.memory_space<vmem>>, vector<1x16xf32>
    tpu.vector_store %arg15[%c1_82, %c16_83], %102 {strides = array<i32>} : memref<2x400xf32, #tpu.memory_space<vmem>>, vector<1x16xf32>,
    %104 = vector.extract_strided_slice %99 {offsets = [2, 0], sizes = [1, 16], strides = [1, 1]} : vector<5x16xf32> to vector<1x16xf32>
    %c1_84 = arith.constant 1 : index
    %c32_85 = arith.constant 32 : index
    %105 = vector.load %arg15[%c1_84, %c32_85] : memref<2x400xf32, #tpu.memory_space<vmem>>, vector<1x16xf32>
    tpu.vector_store %arg15[%c1_84, %c32_85], %104 {strides = array<i32>} : memref<2x400xf32, #tpu.memory_space<vmem>>, vector<1x16xf32>,
    %106 = vector.extract_strided_slice %99 {offsets = [3, 0], sizes = [1, 16], strides = [1, 1]} : vector<5x16xf32> to vector<1x16xf32>
    %c1_86 = arith.constant 1 : index
    %c48_87 = arith.constant 48 : index
    %107 = vector.load %arg15[%c1_86, %c48_87] : memref<2x400xf32, #tpu.memory_space<vmem>>, vector<1x16xf32>
    tpu.vector_store %arg15[%c1_86, %c48_87], %106 {strides = array<i32>} : memref<2x400xf32, #tpu.memory_space<vmem>>, vector<1x16xf32>,
    %108 = vector.extract_strided_slice %99 {offsets = [4, 0], sizes = [1, 16], strides = [1, 1]} : vector<5x16xf32> to vector<1x16xf32>
    %c1_88 = arith.constant 1 : index
    %c64_89 = arith.constant 64 : index
    %109 = vector.load %arg15[%c1_88, %c64_89] : memref<2x400xf32, #tpu.memory_space<vmem>>, vector<1x16xf32>
    tpu.vector_store %arg15[%c1_88, %c64_89], %108 {strides = array<i32>} : memref<2x400xf32, #tpu.memory_space<vmem>>, vector<1x16xf32>,
    %c1_90 = arith.constant 1 : index
    %c1_91 = arith.constant 1 : index
    %c0_92 = arith.constant 0 : index
    %c0_93 = arith.constant 0 : index
    %110 = vector.load %arg13[%c1_90, %c1_91, %c0_92, %c0_93] : memref<2x5x5x16xf32, #tpu.memory_space<vmem>>, vector<1x1x5x16xf32>
    %111 = vector.shape_cast %110 : vector<1x1x5x16xf32> to vector<5x16xf32>
    %112 = vector.extract_strided_slice %111 {offsets = [0, 0], sizes = [1, 16], strides = [1, 1]} : vector<5x16xf32> to vector<1x16xf32>
    %c1_94 = arith.constant 1 : index
    %c80_95 = arith.constant 80 : index
    %113 = vector.load %arg15[%c1_94, %c80_95] : memref<2x400xf32, #tpu.memory_space<vmem>>, vector<1x16xf32>
    tpu.vector_store %arg15[%c1_94, %c80_95], %112 {strides = array<i32>} : memref<2x400xf32, #tpu.memory_space<vmem>>, vector<1x16xf32>,
    %114 = vector.extract_strided_slice %111 {offsets = [1, 0], sizes = [1, 16], strides = [1, 1]} : vector<5x16xf32> to vector<1x16xf32>
    %c1_96 = arith.constant 1 : index
    %c96_97 = arith.constant 96 : index
    %115 = vector.load %arg15[%c1_96, %c96_97] : memref<2x400xf32, #tpu.memory_space<vmem>>, vector<1x16xf32>
    tpu.vector_store %arg15[%c1_96, %c96_97], %114 {strides = array<i32>} : memref<2x400xf32, #tpu.memory_space<vmem>>, vector<1x16xf32>,
    %116 = vector.extract_strided_slice %111 {offsets = [2, 0], sizes = [1, 16], strides = [1, 1]} : vector<5x16xf32> to vector<1x16xf32>
    %c1_98 = arith.constant 1 : index
    %c112_99 = arith.constant 112 : index
    %117 = vector.load %arg15[%c1_98, %c112_99] : memref<2x400xf32, #tpu.memory_space<vmem>>, vector<1x16xf32>
    tpu.vector_store %arg15[%c1_98, %c112_99], %116 {strides = array<i32>} : memref<2x400xf32, #tpu.memory_space<vmem>>, vector<1x16xf32>,
    %118 = vector.extract_strided_slice %111 {offsets = [3, 0], sizes = [1, 16], strides = [1, 1]} : vector<5x16xf32> to vector<1x16xf32>
    %c1_100 = arith.constant 1 : index
    %c128_101 = arith.constant 128 : index
    %119 = vector.load %arg15[%c1_100, %c128_101] : memref<2x400xf32, #tpu.memory_space<vmem>>, vector<1x16xf32>
    tpu.vector_store %arg15[%c1_100, %c128_101], %118 {strides = array<i32>} : memref<2x400xf32, #tpu.memory_space<vmem>>, vector<1x16xf32>,
    %120 = vector.extract_strided_slice %111 {offsets = [4, 0], sizes = [1, 16], strides = [1, 1]} : vector<5x16xf32> to vector<1x16xf32>
    %c1_102 = arith.constant 1 : index
    %c144_103 = arith.constant 144 : index
    %121 = vector.load %arg15[%c1_102, %c144_103] : memref<2x400xf32, #tpu.memory_space<vmem>>, vector<1x16xf32>
    tpu.vector_store %arg15[%c1_102, %c144_103], %120 {strides = array<i32>} : memref<2x400xf32, #tpu.memory_space<vmem>>, vector<1x16xf32>,
    %c1_104 = arith.constant 1 : index
    %c2_105 = arith.constant 2 : index
    %c0_106 = arith.constant 0 : index
    %c0_107 = arith.constant 0 : index
    %122 = vector.load %arg13[%c1_104, %c2_105, %c0_106, %c0_107] : memref<2x5x5x16xf32, #tpu.memory_space<vmem>>, vector<1x1x5x16xf32>
    %123 = vector.shape_cast %122 : vector<1x1x5x16xf32> to vector<5x16xf32>
    %124 = vector.extract_strided_slice %123 {offsets = [0, 0], sizes = [1, 16], strides = [1, 1]} : vector<5x16xf32> to vector<1x16xf32>
    %c1_108 = arith.constant 1 : index
    %c160_109 = arith.constant 160 : index
    %125 = vector.load %arg15[%c1_108, %c160_109] : memref<2x400xf32, #tpu.memory_space<vmem>>, vector<1x16xf32>
    tpu.vector_store %arg15[%c1_108, %c160_109], %124 {strides = array<i32>} : memref<2x400xf32, #tpu.memory_space<vmem>>, vector<1x16xf32>,
    %126 = vector.extract_strided_slice %123 {offsets = [1, 0], sizes = [1, 16], strides = [1, 1]} : vector<5x16xf32> to vector<1x16xf32>
    %c1_110 = arith.constant 1 : index
    %c176_111 = arith.constant 176 : index
    %127 = vector.load %arg15[%c1_110, %c176_111] : memref<2x400xf32, #tpu.memory_space<vmem>>, vector<1x16xf32>
    tpu.vector_store %arg15[%c1_110, %c176_111], %126 {strides = array<i32>} : memref<2x400xf32, #tpu.memory_space<vmem>>, vector<1x16xf32>,
    %128 = vector.extract_strided_slice %123 {offsets = [2, 0], sizes = [1, 16], strides = [1, 1]} : vector<5x16xf32> to vector<1x16xf32>
    %c1_112 = arith.constant 1 : index
    %c192_113 = arith.constant 192 : index
    %129 = vector.load %arg15[%c1_112, %c192_113] : memref<2x400xf32, #tpu.memory_space<vmem>>, vector<1x16xf32>
    tpu.vector_store %arg15[%c1_112, %c192_113], %128 {strides = array<i32>} : memref<2x400xf32, #tpu.memory_space<vmem>>, vector<1x16xf32>,
    %130 = vector.extract_strided_slice %123 {offsets = [3, 0], sizes = [1, 16], strides = [1, 1]} : vector<5x16xf32> to vector<1x16xf32>
    %c1_114 = arith.constant 1 : index
    %c208_115 = arith.constant 208 : index
    %131 = vector.load %arg15[%c1_114, %c208_115] : memref<2x400xf32, #tpu.memory_space<vmem>>, vector<1x16xf32>
    tpu.vector_store %arg15[%c1_114, %c208_115], %130 {strides = array<i32>} : memref<2x400xf32, #tpu.memory_space<vmem>>, vector<1x16xf32>,
    %132 = vector.extract_strided_slice %123 {offsets = [4, 0], sizes = [1, 16], strides = [1, 1]} : vector<5x16xf32> to vector<1x16xf32>
    %c1_116 = arith.constant 1 : index
    %c224_117 = arith.constant 224 : index
    %133 = vector.load %arg15[%c1_116, %c224_117] : memref<2x400xf32, #tpu.memory_space<vmem>>, vector<1x16xf32>
    tpu.vector_store %arg15[%c1_116, %c224_117], %132 {strides = array<i32>} : memref<2x400xf32, #tpu.memory_space<vmem>>, vector<1x16xf32>,
    %c1_118 = arith.constant 1 : index
    %c3_119 = arith.constant 3 : index
    %c0_120 = arith.constant 0 : index
    %c0_121 = arith.constant 0 : index
    %134 = vector.load %arg13[%c1_118, %c3_119, %c0_120, %c0_121] : memref<2x5x5x16xf32, #tpu.memory_space<vmem>>, vector<1x1x5x16xf32>
    %135 = vector.shape_cast %134 : vector<1x1x5x16xf32> to vector<5x16xf32>
    %136 = vector.extract_strided_slice %135 {offsets = [0, 0], sizes = [1, 16], strides = [1, 1]} : vector<5x16xf32> to vector<1x16xf32>
    %c1_122 = arith.constant 1 : index
    %c240_123 = arith.constant 240 : index
    %137 = vector.load %arg15[%c1_122, %c240_123] : memref<2x400xf32, #tpu.memory_space<vmem>>, vector<1x16xf32>
    tpu.vector_store %arg15[%c1_122, %c240_123], %136 {strides = array<i32>} : memref<2x400xf32, #tpu.memory_space<vmem>>, vector<1x16xf32>,
    %138 = vector.extract_strided_slice %135 {offsets = [1, 0], sizes = [1, 16], strides = [1, 1]} : vector<5x16xf32> to vector<1x16xf32>
    %c1_124 = arith.constant 1 : index
    %c256_125 = arith.constant 256 : index
    %139 = vector.load %arg15[%c1_124, %c256_125] : memref<2x400xf32, #tpu.memory_space<vmem>>, vector<1x16xf32>
    tpu.vector_store %arg15[%c1_124, %c256_125], %138 {strides = array<i32>} : memref<2x400xf32, #tpu.memory_space<vmem>>, vector<1x16xf32>,
    %140 = vector.extract_strided_slice %135 {offsets = [2, 0], sizes = [1, 16], strides = [1, 1]} : vector<5x16xf32> to vector<1x16xf32>
    %c1_126 = arith.constant 1 : index
    %c272_127 = arith.constant 272 : index
    %141 = vector.load %arg15[%c1_126, %c272_127] : memref<2x400xf32, #tpu.memory_space<vmem>>, vector<1x16xf32>
    tpu.vector_store %arg15[%c1_126, %c272_127], %140 {strides = array<i32>} : memref<2x400xf32, #tpu.memory_space<vmem>>, vector<1x16xf32>,
    %142 = vector.extract_strided_slice %135 {offsets = [3, 0], sizes = [1, 16], strides = [1, 1]} : vector<5x16xf32> to vector<1x16xf32>
    %c1_128 = arith.constant 1 : index
    %c288_129 = arith.constant 288 : index
    %143 = vector.load %arg15[%c1_128, %c288_129] : memref<2x400xf32, #tpu.memory_space<vmem>>, vector<1x16xf32>
    tpu.vector_store %arg15[%c1_128, %c288_129], %142 {strides = array<i32>} : memref<2x400xf32, #tpu.memory_space<vmem>>, vector<1x16xf32>,
    %144 = vector.extract_strided_slice %135 {offsets = [4, 0], sizes = [1, 16], strides = [1, 1]} : vector<5x16xf32> to vector<1x16xf32>
    %c1_130 = arith.constant 1 : index
    %c304_131 = arith.constant 304 : index
    %145 = vector.load %arg15[%c1_130, %c304_131] : memref<2x400xf32, #tpu.memory_space<vmem>>, vector<1x16xf32>
    tpu.vector_store %arg15[%c1_130, %c304_131], %144 {strides = array<i32>} : memref<2x400xf32, #tpu.memory_space<vmem>>, vector<1x16xf32>,
    %c1_132 = arith.constant 1 : index
    %c4_133 = arith.constant 4 : index
    %c0_134 = arith.constant 0 : index
    %c0_135 = arith.constant 0 : index
    %146 = vector.load %arg13[%c1_132, %c4_133, %c0_134, %c0_135] : memref<2x5x5x16xf32, #tpu.memory_space<vmem>>, vector<1x1x5x16xf32>
    %147 = vector.shape_cast %146 : vector<1x1x5x16xf32> to vector<5x16xf32>
    %148 = vector.extract_strided_slice %147 {offsets = [0, 0], sizes = [1, 16], strides = [1, 1]} : vector<5x16xf32> to vector<1x16xf32>
    %c1_136 = arith.constant 1 : index
    %c320_137 = arith.constant 320 : index
    %149 = vector.load %arg15[%c1_136, %c320_137] : memref<2x400xf32, #tpu.memory_space<vmem>>, vector<1x16xf32>
    tpu.vector_store %arg15[%c1_136, %c320_137], %148 {strides = array<i32>} : memref<2x400xf32, #tpu.memory_space<vmem>>, vector<1x16xf32>,
    %150 = vector.extract_strided_slice %147 {offsets = [1, 0], sizes = [1, 16], strides = [1, 1]} : vector<5x16xf32> to vector<1x16xf32>
    %c1_138 = arith.constant 1 : index
    %c336_139 = arith.constant 336 : index
    %151 = vector.load %arg15[%c1_138, %c336_139] : memref<2x400xf32, #tpu.memory_space<vmem>>, vector<1x16xf32>
    tpu.vector_store %arg15[%c1_138, %c336_139], %150 {strides = array<i32>} : memref<2x400xf32, #tpu.memory_space<vmem>>, vector<1x16xf32>,
    %152 = vector.extract_strided_slice %147 {offsets = [2, 0], sizes = [1, 16], strides = [1, 1]} : vector<5x16xf32> to vector<1x16xf32>
    %c1_140 = arith.constant 1 : index
    %c352_141 = arith.constant 352 : index
    %153 = vector.load %arg15[%c1_140, %c352_141] : memref<2x400xf32, #tpu.memory_space<vmem>>, vector<1x16xf32>
    tpu.vector_store %arg15[%c1_140, %c352_141], %152 {strides = array<i32>} : memref<2x400xf32, #tpu.memory_space<vmem>>, vector<1x16xf32>,
    %154 = vector.extract_strided_slice %147 {offsets = [3, 0], sizes = [1, 16], strides = [1, 1]} : vector<5x16xf32> to vector<1x16xf32>
    %c1_142 = arith.constant 1 : index
    %c368_143 = arith.constant 368 : index
    %155 = vector.load %arg15[%c1_142, %c368_143] : memref<2x400xf32, #tpu.memory_space<vmem>>, vector<1x16xf32>
    tpu.vector_store %arg15[%c1_142, %c368_143], %154 {strides = array<i32>} : memref<2x400xf32, #tpu.memory_space<vmem>>, vector<1x16xf32>,
    %156 = vector.extract_strided_slice %147 {offsets = [4, 0], sizes = [1, 16], strides = [1, 1]} : vector<5x16xf32> to vector<1x16xf32>
    %c1_144 = arith.constant 1 : index
    %c384_145 = arith.constant 384 : index
    %157 = vector.load %arg15[%c1_144, %c384_145] : memref<2x400xf32, #tpu.memory_space<vmem>>, vector<1x16xf32>
    tpu.vector_store %arg15[%c1_144, %c384_145], %156 {strides = array<i32>} : memref<2x400xf32, #tpu.memory_space<vmem>>, vector<1x16xf32>,
    %c0_146 = arith.constant 0 : index
    %c0_147 = arith.constant 0 : index
    %158 = vector.load %arg15[%c0_146, %c0_147] : memref<2x400xf32, #tpu.memory_space<vmem>>, vector<2x400xf32>
    %c0_148 = arith.constant 0 : index
    %c0_149 = arith.constant 0 : index
    %159 = vector.load %arg5[%c0_148, %c0_149] : memref<400x128xf32, #tpu.memory_space<vmem>>, vector<400x128xf32>
    %cst = arith.constant dense<0.000000e+00> : vector<2x128xf32>
    %160 = tpu.matmul %158, %159, %cst {dimension_numbers = #tpu.dot_dimension_numbers<[1], [0], [0], [1], [0, 0, 1, 1], [], []>} : vector<2x400xf32>, vector<400x128xf32>, vector<2x128xf32> -> vector<2x128xf32>
    %c0_150 = arith.constant 0 : index
    %c0_151 = arith.constant 0 : index
    %161 = vector.load %arg6[%c0_150, %c0_151] : memref<1x128xf32, #tpu.memory_space<vmem>>, vector<1x128xf32>
    %162 = vector.broadcast %161 : vector<1x128xf32> to vector<2x128xf32>
    %163 = arith.addf %160, %162 : vector<2x128xf32>
    %cst_152 = arith.constant 0.000000e+00 : f32
    %164 = vector.broadcast %cst_152 : f32 to vector<2x128xf32>
    %165 = arith.maximumf %163, %164 : vector<2x128xf32>
    %c0_153 = arith.constant 0 : index
    %c0_154 = arith.constant 0 : index
    %166 = vector.load %arg7[%c0_153, %c0_154] : memref<128x128xf32, #tpu.memory_space<vmem>>, vector<128x128xf32>
    %cst_155 = arith.constant dense<0.000000e+00> : vector<2x128xf32>
    %167 = tpu.matmul %165, %166, %cst_155 {dimension_numbers = #tpu.dot_dimension_numbers<[1], [0], [0], [1], [0, 0, 1, 1], [], []>} : vector<2x128xf32>, vector<128x128xf32>, vector<2x128xf32> -> vector<2x128xf32>
    %c0_156 = arith.constant 0 : index
    %c0_157 = arith.constant 0 : index
    %168 = vector.load %arg8[%c0_156, %c0_157] : memref<1x128xf32, #tpu.memory_space<vmem>>, vector<1x128xf32>
    %169 = vector.broadcast %168 : vector<1x128xf32> to vector<2x128xf32>
    %170 = arith.addf %167, %169 : vector<2x128xf32>
    %c0_158 = arith.constant 0 : index
    %c0_159 = arith.constant 0 : index
    %171 = vector.load %arg9[%c0_158, %c0_159] : memref<2x128xf32, #tpu.memory_space<vmem>>, vector<2x128xf32>
    tpu.vector_store %arg9[%c0_158, %c0_159], %170 {strides = array<i32>} : memref<2x128xf32, #tpu.memory_space<vmem>>, vector<2x128xf32>,
    return
  }
}

</mosaic_0001>

<llo_original>
// kernel: lenet_forward.1
$region0: #{lenet_forward.1}
  #allocation0 [shape = 'u32[]', space=smem, size = 0x4, offset = 0x4, fixed_abs, tag = 'smem constant byte address 0x4 - core index']
  #allocation1 [shape = 'u32[72,128]{1,0:T(1,128)}', space=vmem, size = 0x9000, scoped, tag = 'internal scratch']
  #allocation2 [shape = 'f32[2,28,28,8]{3,2,1,0:T(8,128)}', space=vmem, size = 0xe0000, scoped, tag = 'scratch operand']
  #allocation3 [shape = 'f32[2,14,14,8]{3,2,1,0:T(8,128)}', space=vmem, size = 0x38000, scoped, tag = 'scratch operand']
  #allocation4 [shape = 'f32[2,10,10,16]{3,2,1,0:T(8,128)}', space=vmem, size = 0x28000, scoped, tag = 'scratch operand']
  #allocation5 [shape = 'f32[2,5,5,16]{3,2,1,0:T(8,128)}', space=vmem, size = 0xa000, scoped, tag = 'scratch operand']
  #allocation6 [shape = 'f32[32,40]{1,0:T(8,128)}', space=vmem, size = 0x4000, scoped, tag = 'scratch operand']
  #allocation7 [shape = 'f32[2,400]{1,0:T(2,128)}', space=vmem, size = 0x1000, scoped, tag = 'scratch operand']
  %s0 = inlined_call_operand.vmem [shape: f32[2,32,32,8], index: 0, kind: input, shape index: {}]
  %s1 = inlined_call_operand.vmem [shape: f32[5,40,8], index: 1, kind: input, shape index: {}]
  %s2 = inlined_call_operand.vmem [shape: f32[1,8], index: 2, kind: input, shape index: {}]
  %s3 = inlined_call_operand.vmem [shape: f32[5,40,16], index: 3, kind: input, shape index: {}]
  %s4 = inlined_call_operand.vmem [shape: f32[1,16], index: 4, kind: input, shape index: {}]
  %s5 = inlined_call_operand.vmem [shape: f32[400,128], index: 5, kind: input, shape index: {}]
  %s6 = inlined_call_operand.vmem [shape: f32[1,128], index: 6, kind: input, shape index: {}]
  %s7 = inlined_call_operand.vmem [shape: f32[128,128], index: 7, kind: input, shape index: {}]
  %s8 = inlined_call_operand.vmem [shape: f32[1,128], index: 8, kind: input, shape index: {}]
  %s9 = inlined_call_operand.hbm [shape: f32[2,128], index: 9, kind: output, shape index: {}]
  %s10 = sld [smem:[#allocation0]]
  $region102: #{lenet_forward.1} parent=0
    _
  %s12 = ssub.s32 1, %s10
  %s13 = scalar_select 0, %s12, %s10
  $region1: #{lenet_forward.1} parent=0
    #allocation8 [shape = 'u8[1024]{0}', space=vmem, size = 0x400, scoped, tag = 'output window, operand 0, single buffered']
    #allocation9 [shape = 's32[1]{0}', space=sflag, size = 0x4, scoped, tag = 'scoped memory for lenet_forward.1']
    %14 = vsyncpa [#allocation9], 0
    // Predicated region
    $region2: #{lenet_forward.1} parent=1 // pred_check
      _
    $region3: #{lenet_forward.1} parent=1 // pred_check_branch
      %16 = sbr.rel (0) target = $region5
    $region4: #{lenet_forward.1} parent=1 // pred_region
      _
    $region5: #{lenet_forward.1} parent=1 // pred_fallthru
      _
    // Predicated region
    $region6: #{lenet_forward.1} parent=1 // pred_check
      _
    $region7: #{lenet_forward.1} parent=1 // pred_check_branch
      %18 = sbr.rel (0) target = $region9
    $region8: #{lenet_forward.1} parent=1 // pred_region
      _
    $region9: #{lenet_forward.1} parent=1 // pred_fallthru
      _
    // Predicated region
    $region10: #{lenet_forward.1} parent=1 // pred_check
      _
    $region11: #{lenet_forward.1} parent=1 // pred_check_branch
      %20 = sbr.rel (0) target = $region13
    $region12: #{lenet_forward.1} parent=1 // pred_region
      _
    $region13: #{lenet_forward.1} parent=1 // pred_fallthru
      _
    // Predicated region
    $region14: #{lenet_forward.1} parent=1 // pred_check
      _
    $region15: #{lenet_forward.1} parent=1 // pred_check_branch
      %22 = sbr.rel (0) target = $region17
    $region16: #{lenet_forward.1} parent=1 // pred_region
      _
    $region17: #{lenet_forward.1} parent=1 // pred_fallthru
      _
    // Predicated region
    $region18: #{lenet_forward.1} parent=1 // pred_check
      _
    $region19: #{lenet_forward.1} parent=1 // pred_check_branch
      %24 = sbr.rel (0) target = $region21
    $region20: #{lenet_forward.1} parent=1 // pred_region
      _
    $region21: #{lenet_forward.1} parent=1 // pred_fallthru
      _
    // Predicated region
    $region22: #{lenet_forward.1} parent=1 // pred_check
      _
    $region23: #{lenet_forward.1} parent=1 // pred_check_branch
      %26 = sbr.rel (0) target = $region25
    $region24: #{lenet_forward.1} parent=1 // pred_region
      _
    $region25: #{lenet_forward.1} parent=1 // pred_fallthru
      _
    // Predicated region
    $region26: #{lenet_forward.1} parent=1 // pred_check
      _
    $region27: #{lenet_forward.1} parent=1 // pred_check_branch
      %28 = sbr.rel (0) target = $region29
    $region28: #{lenet_forward.1} parent=1 // pred_region
      _
    $region29: #{lenet_forward.1} parent=1 // pred_fallthru
      _
    // Predicated region
    $region30: #{lenet_forward.1} parent=1 // pred_check
      _
    $region31: #{lenet_forward.1} parent=1 // pred_check_branch
      %30 = sbr.rel (0) target = $region33
    $region32: #{lenet_forward.1} parent=1 // pred_region
      _
    $region33: #{lenet_forward.1} parent=1 // pred_fallthru
      _
    // Predicated region
    $region34: #{lenet_forward.1} parent=1 // pred_check
      _
    $region35: #{lenet_forward.1} parent=1 // pred_check_branch
      %32 = sbr.rel (0) target = $region37
    $region36: #{lenet_forward.1} parent=1 // pred_region
      _
    $region37: #{lenet_forward.1} parent=1 // pred_fallthru
      _
    %v33 = vld [vmem:[%s2] sm:$0x1]
    loop: start=0, step=1, limit=28
    $region38: #{lenet_forward.1} parent=1 // loop_pre_header
      _
    $region39: #{lenet_forward.1} parent=1 // loop_header
      %s35 = sphi 0, %s39
      %p36 = scmp.ge.s32.totalorder %s35, 28
    $region40: #{lenet_forward.1} parent=1 // loop_header_branch
      %38 = sbr.rel (%p36) target = $region44
    $region41: #{lenet_forward.1} parent=1 // loop_body
      %s40 = smul.u32 %s35, 32
      %s41 = scalar_lea.vmem %s0, %s40
      %v42 = vld [vmem:[%s41] sm:$0xff]
      %v43 = vld [vmem:[%s41 + $0x8] sm:$0xff]
      %v44 = vld [vmem:[%s41 + $0x10] sm:$0xff]
      %v45 = vld [vmem:[%s41 + $0x18] sm:$0xff]
      %vm46 = vcmask 64512
      %47 = vst.msk [vmem:[#allocation6] sm:$0xff] %vm46, %v42
      %48 = vst.msk [vmem:[#allocation6 + $0x8] sm:$0xff] %vm46, %v43
      %49 = vst.msk [vmem:[#allocation6 + $0x10] sm:$0xff] %vm46, %v44
      %50 = vst.msk [vmem:[#allocation6 + $0x18] sm:$0xff] %vm46, %v45
      %s51 = sadd.s32 %s35, 1
      %s52 = smul.u32 %s51, 32
      %s53 = scalar_lea.vmem %s0, %s52
      %v54 = vld [vmem:[%s53] sm:$0xff]
      %v55 = vld [vmem:[%s53 + $0x8] sm:$0xff]
      %v56 = vld [vmem:[%s53 + $0x10] sm:$0xff]
      %v57 = vld [vmem:[%s53 + $0x18] sm:$0xff]
      %62 = vrot.lane.b32.xlu0 %v54, 8
      %v63 = vpop.permute.xlu0 %62
      %64 = vrot.lane.b32.xlu0 %v55, 8
      %v65 = vpop.permute.xlu0 %64
      %66 = vrot.lane.b32.xlu0 %v56, 8
      %v67 = vpop.permute.xlu0 %66
      %68 = vrot.lane.b32.xlu0 %v57, 8
      %v69 = vpop.permute.xlu0 %68
      %vm74 = vcmask 130112
      %75 = vst.msk [vmem:[#allocation6] sm:$0xff] %vm74, %v63
      %76 = vst.msk [vmem:[#allocation6 + $0x8] sm:$0xff] %vm74, %v65
      %77 = vst.msk [vmem:[#allocation6 + $0x10] sm:$0xff] %vm74, %v67
      %78 = vst.msk [vmem:[#allocation6 + $0x18] sm:$0xff] %vm74, %v69
      %s79 = sadd.s32 %s35, 2
      %s80 = smul.u32 %s79, 32
      %s81 = scalar_lea.vmem %s0, %s80
      %v82 = vld [vmem:[%s81] sm:$0xff]
      %v83 = vld [vmem:[%s81 + $0x8] sm:$0xff]
      %v84 = vld [vmem:[%s81 + $0x10] sm:$0xff]
      %v85 = vld [vmem:[%s81 + $0x18] sm:$0xff]
      %90 = vrot.lane.b32.xlu0 %v82, 16
      %v91 = vpop.permute.xlu0 %90
      %92 = vrot.lane.b32.xlu0 %v83, 16
      %v93 = vpop.permute.xlu0 %92
      %94 = vrot.lane.b32.xlu0 %v84, 16
      %v95 = vpop.permute.xlu0 %94
      %96 = vrot.lane.b32.xlu0 %v85, 16
      %v97 = vpop.permute.xlu0 %96
      %vm102 = vcmask 195712
      %103 = vst.msk [vmem:[#allocation6] sm:$0xff] %vm102, %v91
      %104 = vst.msk [vmem:[#allocation6 + $0x8] sm:$0xff] %vm102, %v93
      %105 = vst.msk [vmem:[#allocation6 + $0x10] sm:$0xff] %vm102, %v95
      %106 = vst.msk [vmem:[#allocation6 + $0x18] sm:$0xff] %vm102, %v97
      %s107 = sadd.s32 %s35, 3
      %s108 = smul.u32 %s107, 32
      %s109 = scalar_lea.vmem %s0, %s108
      %v110 = vld [vmem:[%s109] sm:$0xff]
      %v111 = vld [vmem:[%s109 + $0x8] sm:$0xff]
      %v112 = vld [vmem:[%s109 + $0x10] sm:$0xff]
      %v113 = vld [vmem:[%s109 + $0x18] sm:$0xff]
      %118 = vrot.lane.b32.xlu0 %v110, 24
      %v119 = vpop.permute.xlu0 %118
      %120 = vrot.lane.b32.xlu0 %v111, 24
      %v121 = vpop.permute.xlu0 %120
      %122 = vrot.lane.b32.xlu0 %v112, 24
      %v123 = vpop.permute.xlu0 %122
      %124 = vrot.lane.b32.xlu0 %v113, 24
      %v125 = vpop.permute.xlu0 %124
      %vm130 = vcmask 261312
      %131 = vst.msk [vmem:[#allocation6] sm:$0xff] %vm130, %v119
      %132 = vst.msk [vmem:[#allocation6 + $0x8] sm:$0xff] %vm130, %v121
      %133 = vst.msk [vmem:[#allocation6 + $0x10] sm:$0xff] %vm130, %v123
      %134 = vst.msk [vmem:[#allocation6 + $0x18] sm:$0xff] %vm130, %v125
      %s135 = sadd.s32 %s35, 4
      %s136 = smul.u32 %s135, 32
      %s137 = scalar_lea.vmem %s0, %s136
      %v138 = vld [vmem:[%s137] sm:$0xff]
      %v139 = vld [vmem:[%s137 + $0x8] sm:$0xff]
      %v140 = vld [vmem:[%s137 + $0x10] sm:$0xff]
      %v141 = vld [vmem:[%s137 + $0x18] sm:$0xff]
      %146 = vrot.lane.b32.xlu0 %v138, 32
      %v147 = vpop.permute.xlu0 %146
      %148 = vrot.lane.b32.xlu0 %v139, 32
      %v149 = vpop.permute.xlu0 %148
      %150 = vrot.lane.b32.xlu0 %v140, 32
      %v151 = vpop.permute.xlu0 %150
      %152 = vrot.lane.b32.xlu0 %v141, 32
      %v153 = vpop.permute.xlu0 %152
      %vm158 = vcmask 326912
      %159 = vst.msk [vmem:[#allocation6] sm:$0xff] %vm158, %v147
      %160 = vst.msk [vmem:[#allocation6 + $0x8] sm:$0xff] %vm158, %v149
      %161 = vst.msk [vmem:[#allocation6 + $0x10] sm:$0xff] %vm158, %v151
      %162 = vst.msk [vmem:[#allocation6 + $0x18] sm:$0xff] %vm158, %v153
      %v163 = vld [vmem:[#allocation6] sm:$0xff]
      %v164 = vld [vmem:[#allocation6 + $0x8] sm:$0xff]
      %v165 = vld [vmem:[#allocation6 + $0x10] sm:$0xff]
      %v166 = vld [vmem:[#allocation6 + $0x18] sm:$0xff]
      %v167 = vld [vmem:[%s1] sm:$0xff]
      %v168 = vld [vmem:[%s1 + $0x8] sm:$0xff]
      %v169 = vld [vmem:[%s1 + $0x10] sm:$0xff]
      %v170 = vld [vmem:[%s1 + $0x18] sm:$0xff]
      %v171 = vld [vmem:[%s1 + $0x20] sm:$0xff]
      %s172 = scalar_lea.vmem %s1, 40
      %v173 = vld [vmem:[%s172] sm:$0xff]
      %v174 = vld [vmem:[%s172 + $0x8] sm:$0xff]
      %v175 = vld [vmem:[%s172 + $0x10] sm:$0xff]
      %v176 = vld [vmem:[%s172 + $0x18] sm:$0xff]
      %v177 = vld [vmem:[%s172 + $0x20] sm:$0xff]
      %vm182 = vcmask 1046528
      %v183 = vrot.slane %v163, 1
      %v184 = vrot.slane %v164, 1
      %v185 = vsel %vm182, %v183, %v184
      %v186 = vrot.slane %v165, 1
      %v187 = vsel %vm182, %v184, %v186
      %v188 = vrot.slane %v166, 1
      %v189 = vsel %vm182, %v186, %v188
      %vm190 = vcmask 326656
      %v191 = vsel %vm190, %v185, 0
      %v193 = vsel %vm190, %v187, 0
      %v195 = vsel %vm190, %v189, 0
      %v197 = vsel %vm190, %v188, 0
      %199 = vmatpush.msra.mxu0 0.0
      %200 = vmatpush.msra.mxu0 0.0
      %201 = vmatpush.msra.mxu0 0.0
      %202 = vmatpush.msra.mxu0 0.0
      %203 = vmatpush.msra.mxu0 0.0
      %204 = vmatpush.msra.mxu0 0.0
      %205 = vmatpush.msra.mxu0 0.0
      %206 = vmatpush.msra.mxu0 0.0
      %207 = vmatpush.msra.mxu0 0.0
      %208 = vmatpush.msra.mxu0 0.0
      %209 = vmatpush.msra.mxu0 0.0
      %210 = vmatpush.msra.mxu0 %v177
      %211 = vmatpush.msra.mxu0 %v176
      %212 = vmatpush.msra.mxu0 %v175
      %213 = vmatpush.msra.mxu0 %v174
      %214 = vmatpush.msra.mxu0 %v173
      %215 = vmatmul.f32.gmra.mxu0 %v191
      %v216 = vpop.f32.mrf.mxu0
      %v217 = vadd.f32 0.0, %v216
      %218 = vmatmul.f32.gmra.mxu0 %v193
      %v219 = vpop.f32.mrf.mxu0
      %v220 = vadd.f32 0.0, %v219
      %221 = vmatmul.f32.gmra.mxu0 %v195
      %v222 = vpop.f32.mrf.mxu0
      %v223 = vadd.f32 0.0, %v222
      %224 = vmatmul.f32.gmra.mxu0 %v197
      %v225 = vpop.f32.mrf.mxu0
      %v226 = vadd.f32 0.0, %v225
      %227 = vdwg.mxu0
      %v228 = vsel %vm190, %v163, 0
      %v230 = vsel %vm190, %v164, 0
      %v232 = vsel %vm190, %v165, 0
      %v234 = vsel %vm190, %v166, 0
      %236 = vmatpush.msra.mxu0 0.0
      %237 = vmatpush.msra.mxu0 0.0
      %238 = vmatpush.msra.mxu0 0.0
      %239 = vmatpush.msra.mxu0 0.0
      %240 = vmatpush.msra.mxu0 0.0
      %241 = vmatpush.msra.mxu0 0.0
      %242 = vmatpush.msra.mxu0 0.0
      %243 = vmatpush.msra.mxu0 0.0
      %244 = vmatpush.msra.mxu0 0.0
      %245 = vmatpush.msra.mxu0 0.0
      %246 = vmatpush.msra.mxu0 0.0
      %247 = vmatpush.msra.mxu0 %v171
      %248 = vmatpush.msra.mxu0 %v170
      %249 = vmatpush.msra.mxu0 %v169
      %250 = vmatpush.msra.mxu0 %v168
      %251 = vmatpush.msra.mxu0 %v167
      %252 = vmatmul.f32.gmra.mxu0 %v228
      %v253 = vpop.f32.mrf.mxu0
      %v254 = vadd.f32 %v217, %v253
      %255 = vmatmul.f32.gmra.mxu0 %v230
      %v256 = vpop.f32.mrf.mxu0
      %v257 = vadd.f32 %v220, %v256
      %258 = vmatmul.f32.gmra.mxu0 %v232
      %v259 = vpop.f32.mrf.mxu0
      %v260 = vadd.f32 %v223, %v259
      %261 = vmatmul.f32.gmra.mxu0 %v234
      %v262 = vpop.f32.mrf.mxu0
      %v263 = vadd.f32 %v226, %v262
      %264 = vdwg.mxu0
      %s265 = scalar_lea.vmem %s1, 80
      %v266 = vld [vmem:[%s265] sm:$0xff]
      %v267 = vld [vmem:[%s265 + $0x8] sm:$0xff]
      %v268 = vld [vmem:[%s265 + $0x10] sm:$0xff]
      %v269 = vld [vmem:[%s265 + $0x18] sm:$0xff]
      %v270 = vld [vmem:[%s265 + $0x20] sm:$0xff]
      %vm271 = vcmask 1045504
      %v272 = vrot.slane %v163, 2
      %v273 = vrot.slane %v164, 2
      %v274 = vsel %vm271, %v272, %v273
      %v275 = vrot.slane %v165, 2
      %v276 = vsel %vm271, %v273, %v275
      %v277 = vrot.slane %v166, 2
      %v278 = vsel %vm271, %v275, %v277
      %v279 = vsel %vm190, %v274, 0
      %v281 = vsel %vm190, %v276, 0
      %v283 = vsel %vm190, %v278, 0
      %v285 = vsel %vm190, %v277, 0
      %287 = vmatpush.msra.mxu0 0.0
      %288 = vmatpush.msra.mxu0 0.0
      %289 = vmatpush.msra.mxu0 0.0
      %290 = vmatpush.msra.mxu0 0.0
      %291 = vmatpush.msra.mxu0 0.0
      %292 = vmatpush.msra.mxu0 0.0
      %293 = vmatpush.msra.mxu0 0.0
      %294 = vmatpush.msra.mxu0 0.0
      %295 = vmatpush.msra.mxu0 0.0
      %296 = vmatpush.msra.mxu0 0.0
      %297 = vmatpush.msra.mxu0 0.0
      %298 = vmatpush.msra.mxu0 %v270
      %299 = vmatpush.msra.mxu0 %v269
      %300 = vmatpush.msra.mxu0 %v268
      %301 = vmatpush.msra.mxu0 %v267
      %302 = vmatpush.msra.mxu0 %v266
      %303 = vmatmul.f32.gmra.mxu0 %v279
      %v304 = vpop.f32.mrf.mxu0
      %v305 = vadd.f32 0.0, %v304
      %306 = vmatmul.f32.gmra.mxu0 %v281
      %v307 = vpop.f32.mrf.mxu0
      %v308 = vadd.f32 0.0, %v307
      %309 = vmatmul.f32.gmra.mxu0 %v283
      %v310 = vpop.f32.mrf.mxu0
      %v311 = vadd.f32 0.0, %v310
      %312 = vmatmul.f32.gmra.mxu0 %v285
      %v313 = vpop.f32.mrf.mxu0
      %v314 = vadd.f32 0.0, %v313
      %315 = vdwg.mxu0
      %v316 = vadd.f32 %v254, %v305
      %v317 = vadd.f32 %v257, %v308
      %v318 = vadd.f32 %v260, %v311
      %v319 = vadd.f32 %v263, %v314
      %s320 = scalar_lea.vmem %s1, 120
      %v321 = vld [vmem:[%s320] sm:$0xff]
      %v322 = vld [vmem:[%s320 + $0x8] sm:$0xff]
      %v323 = vld [vmem:[%s320 + $0x10] sm:$0xff]
      %v324 = vld [vmem:[%s320 + $0x18] sm:$0xff]
      %v325 = vld [vmem:[%s320 + $0x20] sm:$0xff]
      %vm326 = vcmask 1044480
      %v327 = vrot.slane %v163, 3
      %v328 = vrot.slane %v164, 3
      %v329 = vsel %vm326, %v327, %v328
      %v330 = vrot.slane %v165, 3
      %v331 = vsel %vm326, %v328, %v330
      %v332 = vrot.slane %v166, 3
      %v333 = vsel %vm326, %v330, %v332
      %v334 = vsel %vm190, %v329, 0
      %v336 = vsel %vm190, %v331, 0
      %v338 = vsel %vm190, %v333, 0
      %v340 = vsel %vm190, %v332, 0
      %342 = vmatpush.msra.mxu0 0.0
      %343 = vmatpush.msra.mxu0 0.0
      %344 = vmatpush.msra.mxu0 0.0
      %345 = vmatpush.msra.mxu0 0.0
      %346 = vmatpush.msra.mxu0 0.0
      %347 = vmatpush.msra.mxu0 0.0
      %348 = vmatpush.msra.mxu0 0.0
      %349 = vmatpush.msra.mxu0 0.0
      %350 = vmatpush.msra.mxu0 0.0
      %351 = vmatpush.msra.mxu0 0.0
      %352 = vmatpush.msra.mxu0 0.0
      %353 = vmatpush.msra.mxu0 %v325
      %354 = vmatpush.msra.mxu0 %v324
      %355 = vmatpush.msra.mxu0 %v323
      %356 = vmatpush.msra.mxu0 %v322
      %357 = vmatpush.msra.mxu0 %v321
      %358 = vmatmul.f32.gmra.mxu0 %v334
      %v359 = vpop.f32.mrf.mxu0
      %v360 = vadd.f32 0.0, %v359
      %361 = vmatmul.f32.gmra.mxu0 %v336
      %v362 = vpop.f32.mrf.mxu0
      %v363 = vadd.f32 0.0, %v362
      %364 = vmatmul.f32.gmra.mxu0 %v338
      %v365 = vpop.f32.mrf.mxu0
      %v366 = vadd.f32 0.0, %v365
      %367 = vmatmul.f32.gmra.mxu0 %v340
      %v368 = vpop.f32.mrf.mxu0
      %v369 = vadd.f32 0.0, %v368
      %370 = vdwg.mxu0
      %v371 = vadd.f32 %v316, %v360
      %v372 = vadd.f32 %v317, %v363
      %v373 = vadd.f32 %v318, %v366
      %v374 = vadd.f32 %v319, %v369
      %s375 = scalar_lea.vmem %s1, 160
      %v376 = vld [vmem:[%s375] sm:$0xff]
      %v377 = vld [vmem:[%s375 + $0x8] sm:$0xff]
      %v378 = vld [vmem:[%s375 + $0x10] sm:$0xff]
      %v379 = vld [vmem:[%s375 + $0x18] sm:$0xff]
      %v380 = vld [vmem:[%s375 + $0x20] sm:$0xff]
      %vm381 = vcmask 1043456
      %v382 = vrot.slane %v163, 4
      %v383 = vrot.slane %v164, 4
      %v384 = vsel %vm381, %v382, %v383
      %v385 = vrot.slane %v165, 4
      %v386 = vsel %vm381, %v383, %v385
      %v387 = vrot.slane %v166, 4
      %v388 = vsel %vm381, %v385, %v387
      %v389 = vsel %vm190, %v384, 0
      %v391 = vsel %vm190, %v386, 0
      %v393 = vsel %vm190, %v388, 0
      %v395 = vsel %vm190, %v387, 0
      %397 = vmatpush.msra.mxu0 0.0
      %398 = vmatpush.msra.mxu0 0.0
      %399 = vmatpush.msra.mxu0 0.0
      %400 = vmatpush.msra.mxu0 0.0
      %401 = vmatpush.msra.mxu0 0.0
      %402 = vmatpush.msra.mxu0 0.0
      %403 = vmatpush.msra.mxu0 0.0
      %404 = vmatpush.msra.mxu0 0.0
      %405 = vmatpush.msra.mxu0 0.0
      %406 = vmatpush.msra.mxu0 0.0
      %407 = vmatpush.msra.mxu0 0.0
      %408 = vmatpush.msra.mxu0 %v380
      %409 = vmatpush.msra.mxu0 %v379
      %410 = vmatpush.msra.mxu0 %v378
      %411 = vmatpush.msra.mxu0 %v377
      %412 = vmatpush.msra.mxu0 %v376
      %413 = vmatmul.f32.gmra.mxu0 %v389
      %v414 = vpop.f32.mrf.mxu0
      %v415 = vadd.f32 0.0, %v414
      %416 = vmatmul.f32.gmra.mxu0 %v391
      %v417 = vpop.f32.mrf.mxu0
      %v418 = vadd.f32 0.0, %v417
      %419 = vmatmul.f32.gmra.mxu0 %v393
      %v420 = vpop.f32.mrf.mxu0
      %v421 = vadd.f32 0.0, %v420
      %422 = vmatmul.f32.gmra.mxu0 %v395
      %v423 = vpop.f32.mrf.mxu0
      %v424 = vadd.f32 0.0, %v423
      %425 = vdwg.mxu0
      %v426 = vadd.f32 %v371, %v415
      %v427 = vadd.f32 %v372, %v418
      %v428 = vadd.f32 %v373, %v421
      %v429 = vadd.f32 %v374, %v424
      %v431 = vperm.slane %v33, 0
      %v433 = vadd.f32 %v426, %v431
      %v434 = vadd.f32 %v427, %v431
      %v435 = vadd.f32 %v428, %v431
      %v436 = vadd.f32 %v429, %v431
      %v437 = vmax.f32 %v433, 0.0
      %v438 = vmax.f32 %v434, 0.0
      %v439 = vmax.f32 %v435, 0.0
      %v440 = vmax.f32 %v436, 0.0
      %s441 = scalar_lea.vmem [#allocation2], %s40
      %442 = vst.msk [vmem:[%s441] sm:$0xff] %vm46, %v437
      %443 = vst.msk [vmem:[%s441 + $0x8] sm:$0xff] %vm46, %v438
      %444 = vst.msk [vmem:[%s441 + $0x10] sm:$0xff] %vm46, %v439
      %vm445 = vcmask 60416
      %446 = vst.msk [vmem:[%s441 + $0x18] sm:$0xf] %vm445, %v440
    $region42: #{lenet_forward.1} parent=1 // loop_footer
      %s39 = sadd.s32 1, %s35
    $region43: #{lenet_forward.1} parent=1 // loop_footer_branch
      %34 = sbr.rel target = $region39
    $region44: #{lenet_forward.1} parent=1 // loop_exit
      _
    loop: start=0, step=1, limit=28
    $region45: #{lenet_forward.1} parent=1 // loop_pre_header
      _
    $region46: #{lenet_forward.1} parent=1 // loop_header
      %s448 = sphi 0, %s452
      %p449 = scmp.ge.s32.totalorder %s448, 28
    $region47: #{lenet_forward.1} parent=1 // loop_header_branch
      %451 = sbr.rel (%p449) target = $region51
    $region48: #{lenet_forward.1} parent=1 // loop_body
      %s453 = smul.u32 %s448, 32
      %s454 = sadd.s32 %s453, 1024
      %s455 = scalar_lea.vmem %s0, %s454
      %v456 = vld [vmem:[%s455] sm:$0xff]
      %v457 = vld [vmem:[%s455 + $0x8] sm:$0xff]
      %v458 = vld [vmem:[%s455 + $0x10] sm:$0xff]
      %v459 = vld [vmem:[%s455 + $0x18] sm:$0xff]
      %vm460 = vcmask 64512
      %461 = vst.msk [vmem:[#allocation6] sm:$0xff] %vm460, %v456
      %462 = vst.msk [vmem:[#allocation6 + $0x8] sm:$0xff] %vm460, %v457
      %463 = vst.msk [vmem:[#allocation6 + $0x10] sm:$0xff] %vm460, %v458
      %464 = vst.msk [vmem:[#allocation6 + $0x18] sm:$0xff] %vm460, %v459
      %s465 = sadd.s32 %s448, 1
      %s466 = smul.u32 %s465, 32
      %s467 = sadd.s32 %s466, 1024
      %s468 = scalar_lea.vmem %s0, %s467
      %v469 = vld [vmem:[%s468] sm:$0xff]
      %v470 = vld [vmem:[%s468 + $0x8] sm:$0xff]
      %v471 = vld [vmem:[%s468 + $0x10] sm:$0xff]
      %v472 = vld [vmem:[%s468 + $0x18] sm:$0xff]
      %477 = vrot.lane.b32.xlu0 %v469, 8
      %v478 = vpop.permute.xlu0 %477
      %479 = vrot.lane.b32.xlu0 %v470, 8
      %v480 = vpop.permute.xlu0 %479
      %481 = vrot.lane.b32.xlu0 %v471, 8
      %v482 = vpop.permute.xlu0 %481
      %483 = vrot.lane.b32.xlu0 %v472, 8
      %v484 = vpop.permute.xlu0 %483
      %vm489 = vcmask 130112
      %490 = vst.msk [vmem:[#allocation6] sm:$0xff] %vm489, %v478
      %491 = vst.msk [vmem:[#allocation6 + $0x8] sm:$0xff] %vm489, %v480
      %492 = vst.msk [vmem:[#allocation6 + $0x10] sm:$0xff] %vm489, %v482
      %493 = vst.msk [vmem:[#allocation6 + $0x18] sm:$0xff] %vm489, %v484
      %s494 = sadd.s32 %s448, 2
      %s495 = smul.u32 %s494, 32
      %s496 = sadd.s32 %s495, 1024
      %s497 = scalar_lea.vmem %s0, %s496
      %v498 = vld [vmem:[%s497] sm:$0xff]
      %v499 = vld [vmem:[%s497 + $0x8] sm:$0xff]
      %v500 = vld [vmem:[%s497 + $0x10] sm:$0xff]
      %v501 = vld [vmem:[%s497 + $0x18] sm:$0xff]
      %506 = vrot.lane.b32.xlu0 %v498, 16
      %v507 = vpop.permute.xlu0 %506
      %508 = vrot.lane.b32.xlu0 %v499, 16
      %v509 = vpop.permute.xlu0 %508
      %510 = vrot.lane.b32.xlu0 %v500, 16
      %v511 = vpop.permute.xlu0 %510
      %512 = vrot.lane.b32.xlu0 %v501, 16
      %v513 = vpop.permute.xlu0 %512
      %vm518 = vcmask 195712
      %519 = vst.msk [vmem:[#allocation6] sm:$0xff] %vm518, %v507
      %520 = vst.msk [vmem:[#allocation6 + $0x8] sm:$0xff] %vm518, %v509
      %521 = vst.msk [vmem:[#allocation6 + $0x10] sm:$0xff] %vm518, %v511
      %522 = vst.msk [vmem:[#allocation6 + $0x18] sm:$0xff] %vm518, %v513
      %s523 = sadd.s32 %s448, 3
      %s524 = smul.u32 %s523, 32
      %s525 = sadd.s32 %s524, 1024
      %s526 = scalar_lea.vmem %s0, %s525
      %v527 = vld [vmem:[%s526] sm:$0xff]
      %v528 = vld [vmem:[%s526 + $0x8] sm:$0xff]
      %v529 = vld [vmem:[%s526 + $0x10] sm:$0xff]
      %v530 = vld [vmem:[%s526 + $0x18] sm:$0xff]
      %535 = vrot.lane.b32.xlu0 %v527, 24
      %v536 = vpop.permute.xlu0 %535
      %537 = vrot.lane.b32.xlu0 %v528, 24
      %v538 = vpop.permute.xlu0 %537
      %539 = vrot.lane.b32.xlu0 %v529, 24
      %v540 = vpop.permute.xlu0 %539
      %541 = vrot.lane.b32.xlu0 %v530, 24
      %v542 = vpop.permute.xlu0 %541
      %vm547 = vcmask 261312
      %548 = vst.msk [vmem:[#allocation6] sm:$0xff] %vm547, %v536
      %549 = vst.msk [vmem:[#allocation6 + $0x8] sm:$0xff] %vm547, %v538
      %550 = vst.msk [vmem:[#allocation6 + $0x10] sm:$0xff] %vm547, %v540
      %551 = vst.msk [vmem:[#allocation6 + $0x18] sm:$0xff] %vm547, %v542
      %s552 = sadd.s32 %s448, 4
      %s553 = smul.u32 %s552, 32
      %s554 = sadd.s32 %s553, 1024
      %s555 = scalar_lea.vmem %s0, %s554
      %v556 = vld [vmem:[%s555] sm:$0xff]
      %v557 = vld [vmem:[%s555 + $0x8] sm:$0xff]
      %v558 = vld [vmem:[%s555 + $0x10] sm:$0xff]
      %v559 = vld [vmem:[%s555 + $0x18] sm:$0xff]
      %564 = vrot.lane.b32.xlu0 %v556, 32
      %v565 = vpop.permute.xlu0 %564
      %566 = vrot.lane.b32.xlu0 %v557, 32
      %v567 = vpop.permute.xlu0 %566
      %568 = vrot.lane.b32.xlu0 %v558, 32
      %v569 = vpop.permute.xlu0 %568
      %570 = vrot.lane.b32.xlu0 %v559, 32
      %v571 = vpop.permute.xlu0 %570
      %vm576 = vcmask 326912
      %577 = vst.msk [vmem:[#allocation6] sm:$0xff] %vm576, %v565
      %578 = vst.msk [vmem:[#allocation6 + $0x8] sm:$0xff] %vm576, %v567
      %579 = vst.msk [vmem:[#allocation6 + $0x10] sm:$0xff] %vm576, %v569
      %580 = vst.msk [vmem:[#allocation6 + $0x18] sm:$0xff] %vm576, %v571
      %v581 = vld [vmem:[#allocation6] sm:$0xff]
      %v582 = vld [vmem:[#allocation6 + $0x8] sm:$0xff]
      %v583 = vld [vmem:[#allocation6 + $0x10] sm:$0xff]
      %v584 = vld [vmem:[#allocation6 + $0x18] sm:$0xff]
      %v585 = vld [vmem:[%s1] sm:$0xff]
      %v586 = vld [vmem:[%s1 + $0x8] sm:$0xff]
      %v587 = vld [vmem:[%s1 + $0x10] sm:$0xff]
      %v588 = vld [vmem:[%s1 + $0x18] sm:$0xff]
      %v589 = vld [vmem:[%s1 + $0x20] sm:$0xff]
      %s590 = scalar_lea.vmem %s1, 40
      %v591 = vld [vmem:[%s590] sm:$0xff]
      %v592 = vld [vmem:[%s590 + $0x8] sm:$0xff]
      %v593 = vld [vmem:[%s590 + $0x10] sm:$0xff]
      %v594 = vld [vmem:[%s590 + $0x18] sm:$0xff]
      %v595 = vld [vmem:[%s590 + $0x20] sm:$0xff]
      %vm600 = vcmask 1046528
      %v601 = vrot.slane %v581, 1
      %v602 = vrot.slane %v582, 1
      %v603 = vsel %vm600, %v601, %v602
      %v604 = vrot.slane %v583, 1
      %v605 = vsel %vm600, %v602, %v604
      %v606 = vrot.slane %v584, 1
      %v607 = vsel %vm600, %v604, %v606
      %vm608 = vcmask 326656
      %v609 = vsel %vm608, %v603, 0
      %v611 = vsel %vm608, %v605, 0
      %v613 = vsel %vm608, %v607, 0
      %v615 = vsel %vm608, %v606, 0
      %617 = vmatpush.msra.mxu0 0.0
      %618 = vmatpush.msra.mxu0 0.0
      %619 = vmatpush.msra.mxu0 0.0
      %620 = vmatpush.msra.mxu0 0.0
      %621 = vmatpush.msra.mxu0 0.0
      %622 = vmatpush.msra.mxu0 0.0
      %623 = vmatpush.msra.mxu0 0.0
      %624 = vmatpush.msra.mxu0 0.0
      %625 = vmatpush.msra.mxu0 0.0
      %626 = vmatpush.msra.mxu0 0.0
      %627 = vmatpush.msra.mxu0 0.0
      %628 = vmatpush.msra.mxu0 %v595
      %629 = vmatpush.msra.mxu0 %v594
      %630 = vmatpush.msra.mxu0 %v593
      %631 = vmatpush.msra.mxu0 %v592
      %632 = vmatpush.msra.mxu0 %v591
      %633 = vmatmul.f32.gmra.mxu0 %v609
      %v634 = vpop.f32.mrf.mxu0
      %v635 = vadd.f32 0.0, %v634
      %636 = vmatmul.f32.gmra.mxu0 %v611
      %v637 = vpop.f32.mrf.mxu0
      %v638 = vadd.f32 0.0, %v637
      %639 = vmatmul.f32.gmra.mxu0 %v613
      %v640 = vpop.f32.mrf.mxu0
      %v641 = vadd.f32 0.0, %v640
      %642 = vmatmul.f32.gmra.mxu0 %v615
      %v643 = vpop.f32.mrf.mxu0
      %v644 = vadd.f32 0.0, %v643
      %645 = vdwg.mxu0
      %v646 = vsel %vm608, %v581, 0
      %v648 = vsel %vm608, %v582, 0
      %v650 = vsel %vm608, %v583, 0
      %v652 = vsel %vm608, %v584, 0
      %654 = vmatpush.msra.mxu0 0.0
      %655 = vmatpush.msra.mxu0 0.0
      %656 = vmatpush.msra.mxu0 0.0
      %657 = vmatpush.msra.mxu0 0.0
      %658 = vmatpush.msra.mxu0 0.0
      %659 = vmatpush.msra.mxu0 0.0
      %660 = vmatpush.msra.mxu0 0.0
      %661 = vmatpush.msra.mxu0 0.0
      %662 = vmatpush.msra.mxu0 0.0
      %663 = vmatpush.msra.mxu0 0.0
      %664 = vmatpush.msra.mxu0 0.0
      %665 = vmatpush.msra.mxu0 %v589
      %666 = vmatpush.msra.mxu0 %v588
      %667 = vmatpush.msra.mxu0 %v587
      %668 = vmatpush.msra.mxu0 %v586
      %669 = vmatpush.msra.mxu0 %v585
      %670 = vmatmul.f32.gmra.mxu0 %v646
      %v671 = vpop.f32.mrf.mxu0
      %v672 = vadd.f32 %v635, %v671
      %673 = vmatmul.f32.gmra.mxu0 %v648
      %v674 = vpop.f32.mrf.mxu0
      %v675 = vadd.f32 %v638, %v674
      %676 = vmatmul.f32.gmra.mxu0 %v650
      %v677 = vpop.f32.mrf.mxu0
      %v678 = vadd.f32 %v641, %v677
      %679 = vmatmul.f32.gmra.mxu0 %v652
      %v680 = vpop.f32.mrf.mxu0
      %v681 = vadd.f32 %v644, %v680
      %682 = vdwg.mxu0
      %s683 = scalar_lea.vmem %s1, 80
      %v684 = vld [vmem:[%s683] sm:$0xff]
      %v685 = vld [vmem:[%s683 + $0x8] sm:$0xff]
      %v686 = vld [vmem:[%s683 + $0x10] sm:$0xff]
      %v687 = vld [vmem:[%s683 + $0x18] sm:$0xff]
      %v688 = vld [vmem:[%s683 + $0x20] sm:$0xff]
      %vm689 = vcmask 1045504
      %v690 = vrot.slane %v581, 2
      %v691 = vrot.slane %v582, 2
      %v692 = vsel %vm689, %v690, %v691
      %v693 = vrot.slane %v583, 2
      %v694 = vsel %vm689, %v691, %v693
      %v695 = vrot.slane %v584, 2
      %v696 = vsel %vm689, %v693, %v695
      %v697 = vsel %vm608, %v692, 0
      %v699 = vsel %vm608, %v694, 0
      %v701 = vsel %vm608, %v696, 0
      %v703 = vsel %vm608, %v695, 0
      %705 = vmatpush.msra.mxu0 0.0
      %706 = vmatpush.msra.mxu0 0.0
      %707 = vmatpush.msra.mxu0 0.0
      %708 = vmatpush.msra.mxu0 0.0
      %709 = vmatpush.msra.mxu0 0.0
      %710 = vmatpush.msra.mxu0 0.0
      %711 = vmatpush.msra.mxu0 0.0
      %712 = vmatpush.msra.mxu0 0.0
      %713 = vmatpush.msra.mxu0 0.0
      %714 = vmatpush.msra.mxu0 0.0
      %715 = vmatpush.msra.mxu0 0.0
      %716 = vmatpush.msra.mxu0 %v688
      %717 = vmatpush.msra.mxu0 %v687
      %718 = vmatpush.msra.mxu0 %v686
      %719 = vmatpush.msra.mxu0 %v685
      %720 = vmatpush.msra.mxu0 %v684
      %721 = vmatmul.f32.gmra.mxu0 %v697
      %v722 = vpop.f32.mrf.mxu0
      %v723 = vadd.f32 0.0, %v722
      %724 = vmatmul.f32.gmra.mxu0 %v699
      %v725 = vpop.f32.mrf.mxu0
      %v726 = vadd.f32 0.0, %v725
      %727 = vmatmul.f32.gmra.mxu0 %v701
      %v728 = vpop.f32.mrf.mxu0
      %v729 = vadd.f32 0.0, %v728
      %730 = vmatmul.f32.gmra.mxu0 %v703
      %v731 = vpop.f32.mrf.mxu0
      %v732 = vadd.f32 0.0, %v731
      %733 = vdwg.mxu0
      %v734 = vadd.f32 %v672, %v723
      %v735 = vadd.f32 %v675, %v726
      %v736 = vadd.f32 %v678, %v729
      %v737 = vadd.f32 %v681, %v732
      %s738 = scalar_lea.vmem %s1, 120
      %v739 = vld [vmem:[%s738] sm:$0xff]
      %v740 = vld [vmem:[%s738 + $0x8] sm:$0xff]
      %v741 = vld [vmem:[%s738 + $0x10] sm:$0xff]
      %v742 = vld [vmem:[%s738 + $0x18] sm:$0xff]
      %v743 = vld [vmem:[%s738 + $0x20] sm:$0xff]
      %vm744 = vcmask 1044480
      %v745 = vrot.slane %v581, 3
      %v746 = vrot.slane %v582, 3
      %v747 = vsel %vm744, %v745, %v746
      %v748 = vrot.slane %v583, 3
      %v749 = vsel %vm744, %v746, %v748
      %v750 = vrot.slane %v584, 3
      %v751 = vsel %vm744, %v748, %v750
      %v752 = vsel %vm608, %v747, 0
      %v754 = vsel %vm608, %v749, 0
      %v756 = vsel %vm608, %v751, 0
      %v758 = vsel %vm608, %v750, 0
      %760 = vmatpush.msra.mxu0 0.0
      %761 = vmatpush.msra.mxu0 0.0
      %762 = vmatpush.msra.mxu0 0.0
      %763 = vmatpush.msra.mxu0 0.0
      %764 = vmatpush.msra.mxu0 0.0
      %765 = vmatpush.msra.mxu0 0.0
      %766 = vmatpush.msra.mxu0 0.0
      %767 = vmatpush.msra.mxu0 0.0
      %768 = vmatpush.msra.mxu0 0.0
      %769 = vmatpush.msra.mxu0 0.0
      %770 = vmatpush.msra.mxu0 0.0
      %771 = vmatpush.msra.mxu0 %v743
      %772 = vmatpush.msra.mxu0 %v742
      %773 = vmatpush.msra.mxu0 %v741
      %774 = vmatpush.msra.mxu0 %v740
      %775 = vmatpush.msra.mxu0 %v739
      %776 = vmatmul.f32.gmra.mxu0 %v752
      %v777 = vpop.f32.mrf.mxu0
      %v778 = vadd.f32 0.0, %v777
      %779 = vmatmul.f32.gmra.mxu0 %v754
      %v780 = vpop.f32.mrf.mxu0
      %v781 = vadd.f32 0.0, %v780
      %782 = vmatmul.f32.gmra.mxu0 %v756
      %v783 = vpop.f32.mrf.mxu0
      %v784 = vadd.f32 0.0, %v783
      %785 = vmatmul.f32.gmra.mxu0 %v758
      %v786 = vpop.f32.mrf.mxu0
      %v787 = vadd.f32 0.0, %v786
      %788 = vdwg.mxu0
      %v789 = vadd.f32 %v734, %v778
      %v790 = vadd.f32 %v735, %v781
      %v791 = vadd.f32 %v736, %v784
      %v792 = vadd.f32 %v737, %v787
      %s793 = scalar_lea.vmem %s1, 160
      %v794 = vld [vmem:[%s793] sm:$0xff]
      %v795 = vld [vmem:[%s793 + $0x8] sm:$0xff]
      %v796 = vld [vmem:[%s793 + $0x10] sm:$0xff]
      %v797 = vld [vmem:[%s793 + $0x18] sm:$0xff]
      %v798 = vld [vmem:[%s793 + $0x20] sm:$0xff]
      %vm799 = vcmask 1043456
      %v800 = vrot.slane %v581, 4
      %v801 = vrot.slane %v582, 4
      %v802 = vsel %vm799, %v800, %v801
      %v803 = vrot.slane %v583, 4
      %v804 = vsel %vm799, %v801, %v803
      %v805 = vrot.slane %v584, 4
      %v806 = vsel %vm799, %v803, %v805
      %v807 = vsel %vm608, %v802, 0
      %v809 = vsel %vm608, %v804, 0
      %v811 = vsel %vm608, %v806, 0
      %v813 = vsel %vm608, %v805, 0
      %815 = vmatpush.msra.mxu0 0.0
      %816 = vmatpush.msra.mxu0 0.0
      %817 = vmatpush.msra.mxu0 0.0
      %818 = vmatpush.msra.mxu0 0.0
      %819 = vmatpush.msra.mxu0 0.0
      %820 = vmatpush.msra.mxu0 0.0
      %821 = vmatpush.msra.mxu0 0.0
      %822 = vmatpush.msra.mxu0 0.0
      %823 = vmatpush.msra.mxu0 0.0
      %824 = vmatpush.msra.mxu0 0.0
      %825 = vmatpush.msra.mxu0 0.0
      %826 = vmatpush.msra.mxu0 %v798
      %827 = vmatpush.msra.mxu0 %v797
      %828 = vmatpush.msra.mxu0 %v796
      %829 = vmatpush.msra.mxu0 %v795
      %830 = vmatpush.msra.mxu0 %v794
      %831 = vmatmul.f32.gmra.mxu0 %v807
      %v832 = vpop.f32.mrf.mxu0
      %v833 = vadd.f32 0.0, %v832
      %834 = vmatmul.f32.gmra.mxu0 %v809
      %v835 = vpop.f32.mrf.mxu0
      %v836 = vadd.f32 0.0, %v835
      %837 = vmatmul.f32.gmra.mxu0 %v811
      %v838 = vpop.f32.mrf.mxu0
      %v839 = vadd.f32 0.0, %v838
      %840 = vmatmul.f32.gmra.mxu0 %v813
      %v841 = vpop.f32.mrf.mxu0
      %v842 = vadd.f32 0.0, %v841
      %843 = vdwg.mxu0
      %v844 = vadd.f32 %v789, %v833
      %v845 = vadd.f32 %v790, %v836
      %v846 = vadd.f32 %v791, %v839
      %v847 = vadd.f32 %v792, %v842
      %v849 = vperm.slane %v33, 0
      %v851 = vadd.f32 %v844, %v849
      %v852 = vadd.f32 %v845, %v849
      %v853 = vadd.f32 %v846, %v849
      %v854 = vadd.f32 %v847, %v849
      %v855 = vmax.f32 %v851, 0.0
      %v856 = vmax.f32 %v852, 0.0
      %v857 = vmax.f32 %v853, 0.0
      %v858 = vmax.f32 %v854, 0.0
      %s859 = sadd.s32 %s453, 896
      %s860 = scalar_lea.vmem [#allocation2], %s859
      %861 = vst.msk [vmem:[%s860] sm:$0xff] %vm460, %v855
      %862 = vst.msk [vmem:[%s860 + $0x8] sm:$0xff] %vm460, %v856
      %863 = vst.msk [vmem:[%s860 + $0x10] sm:$0xff] %vm460, %v857
      %vm864 = vcmask 60416
      %865 = vst.msk [vmem:[%s860 + $0x18] sm:$0xf] %vm864, %v858
    $region49: #{lenet_forward.1} parent=1 // loop_footer
      %s452 = sadd.s32 1, %s448
    $region50: #{lenet_forward.1} parent=1 // loop_footer_branch
      %447 = sbr.rel target = $region46
    $region51: #{lenet_forward.1} parent=1 // loop_exit
      _
    %v866 = vlaneseq
    %v867 = vshrl.u32 %v866, 7
    %v868 = vadd.s32 %v867, 8
    %v869 = vlaneseq
    %v870 = vand.u32 %v869, 127
    %v871 = vmul.u32 %v867, 2
    %v872 = vmul.u32 %v868, 2
    %vm873 = vcmp.eq.s32.totalorder %v870, %v871
    %vm874 = vcmp.eq.s32.totalorder %v870, %v872
    %v875 = vsel %vm873, 1, 0
    %v876 = vsel %vm874, 1, 0
    %v877 = vcvt.s32.f32 %v875
    %v878 = vcvt.s32.f32 %v876
    %v879 = vadd.s32 %v871, 1
    %v880 = vadd.s32 %v872, 1
    %vm881 = vcmp.eq.s32.totalorder %v870, %v879
    %vm882 = vcmp.eq.s32.totalorder %v870, %v880
    %v883 = vsel %vm881, 1, 0
    %v884 = vsel %vm882, 1, 0
    %v885 = vcvt.s32.f32 %v883
    %v886 = vcvt.s32.f32 %v884
    loop: start=0, step=1, limit=14
    $region52: #{lenet_forward.1} parent=1 // loop_pre_header
      _
    $region53: #{lenet_forward.1} parent=1 // loop_header
      %s888 = sphi 0, %s892
      %p889 = scmp.ge.s32.totalorder %s888, 14
    $region54: #{lenet_forward.1} parent=1 // loop_header_branch
      %891 = sbr.rel (%p889) target = $region58
    $region55: #{lenet_forward.1} parent=1 // loop_body
      %s893 = smul.u32 %s888, 2
      %s894 = smul.u32 %s893, 32
      %s895 = scalar_lea.vmem [#allocation2], %s894
      %v896 = vld [vmem:[%s895] sm:$0xff]
      %v897 = vld [vmem:[%s895 + $0x8] sm:$0xff]
      %v898 = vld [vmem:[%s895 + $0x10] sm:$0xff]
      %v899 = vld [vmem:[%s895 + $0x18] sm:$0xf]
      %s900 = sadd.s32 %s893, 1
      %s901 = smul.u32 %s900, 32
      %s902 = scalar_lea.vmem [#allocation2], %s901
      %v903 = vld [vmem:[%s902] sm:$0xff]
      %v904 = vld [vmem:[%s902 + $0x8] sm:$0xff]
      %v905 = vld [vmem:[%s902 + $0x10] sm:$0xff]
      %v906 = vld [vmem:[%s902 + $0x18] sm:$0xf]
      %v907 = vmax.f32 %v896, %v903
      %v908 = vmax.f32 %v897, %v904
      %v909 = vmax.f32 %v898, %v905
      %v910 = vmax.f32 %v899, %v906
      %vm911 = vcmask 228352
      %v913 = vsel %vm911, %v877, 0
      %v916 = vsel %vm911, %v878, 0
      %vm918 = vcmask 1043456
      %v920 = vsel %vm918, %v910, 0
      %922 = vmatpush.msra.mxu0 0.0
      %923 = vmatpush.msra.mxu0 0.0
      %924 = vmatpush.msra.mxu0 0.0
      %925 = vmatpush.msra.mxu0 0.0
      %926 = vmatpush.msra.mxu0 0.0
      %927 = vmatpush.msra.mxu0 0.0
      %928 = vmatpush.msra.mxu0 0.0
      %929 = vmatpush.msra.mxu0 0.0
      %930 = vmatpush.msra.mxu0 0.0
      %931 = vmatpush.msra.mxu0 0.0
      %932 = vmatpush.msra.mxu0 0.0
      %933 = vmatpush.msra.mxu0 0.0
      %934 = vmatpush.msra.mxu0 %v920
      %935 = vmatpush.msra.mxu0 %v909
      %936 = vmatpush.msra.mxu0 %v908
      %937 = vmatpush.msra.mxu0 %v907
      %938 = vmatmul.f32.gmra.mxu0 %v913
      %v939 = vpop.f32.mrf.mxu0
      %v940 = vadd.f32 0.0, %v939
      %941 = vmatmul.f32.gmra.mxu0 %v916
      %v942 = vpop.f32.mrf.mxu0
      %v943 = vadd.f32 0.0, %v942
      %944 = vdwg.mxu0
      %v946 = vsel %vm911, %v885, 0
      %v949 = vsel %vm911, %v886, 0
      %951 = vmatpush.msra.mxu0 0.0
      %952 = vmatpush.msra.mxu0 0.0
      %953 = vmatpush.msra.mxu0 0.0
      %954 = vmatpush.msra.mxu0 0.0
      %955 = vmatpush.msra.mxu0 0.0
      %956 = vmatpush.msra.mxu0 0.0
      %957 = vmatpush.msra.mxu0 0.0
      %958 = vmatpush.msra.mxu0 0.0
      %959 = vmatpush.msra.mxu0 0.0
      %960 = vmatpush.msra.mxu0 0.0
      %961 = vmatpush.msra.mxu0 0.0
      %962 = vmatpush.msra.mxu0 0.0
      %963 = vmatpush.msra.mxu0 %v920
      %964 = vmatpush.msra.mxu0 %v909
      %965 = vmatpush.msra.mxu0 %v908
      %966 = vmatpush.msra.mxu0 %v907
      %967 = vmatmul.f32.gmra.mxu0 %v946
      %v968 = vpop.f32.mrf.mxu0
      %v969 = vadd.f32 0.0, %v968
      %970 = vmatmul.f32.gmra.mxu0 %v949
      %v971 = vpop.f32.mrf.mxu0
      %v972 = vadd.f32 0.0, %v971
      %973 = vdwg.mxu0
      %v974 = vmax.f32 %v940, %v969
      %v975 = vmax.f32 %v943, %v972
      %s976 = smul.u32 %s888, 16
      %s977 = scalar_lea.vmem [#allocation3], %s976
      %vm978 = vcmask 64512
      %979 = vst.msk [vmem:[%s977] sm:$0xff] %vm978, %v974
      %vm980 = vcmask 62464
      %981 = vst.msk [vmem:[%s977 + $0x8] sm:$0x3f] %vm980, %v975
    $region56: #{lenet_forward.1} parent=1 // loop_footer
      %s892 = sadd.s32 1, %s888
    $region57: #{lenet_forward.1} parent=1 // loop_footer_branch
      %887 = sbr.rel target = $region53
    $region58: #{lenet_forward.1} parent=1 // loop_exit
      _
    loop: start=0, step=1, limit=14
    $region59: #{lenet_forward.1} parent=1 // loop_pre_header
      _
    $region60: #{lenet_forward.1} parent=1 // loop_header
      %s983 = sphi 0, %s987
      %p984 = scmp.ge.s32.totalorder %s983, 14
    $region61: #{lenet_forward.1} parent=1 // loop_header_branch
      %986 = sbr.rel (%p984) target = $region65
    $region62: #{lenet_forward.1} parent=1 // loop_body
      %s988 = smul.u32 %s983, 2
      %s989 = smul.u32 %s988, 32
      %s990 = sadd.s32 %s989, 896
      %s991 = scalar_lea.vmem [#allocation2], %s990
      %v992 = vld [vmem:[%s991] sm:$0xff]
      %v993 = vld [vmem:[%s991 + $0x8] sm:$0xff]
      %v994 = vld [vmem:[%s991 + $0x10] sm:$0xff]
      %v995 = vld [vmem:[%s991 + $0x18] sm:$0xf]
      %s996 = sadd.s32 %s988, 1
      %s997 = smul.u32 %s996, 32
      %s998 = sadd.s32 %s997, 896
      %s999 = scalar_lea.vmem [#allocation2], %s998
      %v1000 = vld [vmem:[%s999] sm:$0xff]
      %v1001 = vld [vmem:[%s999 + $0x8] sm:$0xff]
      %v1002 = vld [vmem:[%s999 + $0x10] sm:$0xff]
      %v1003 = vld [vmem:[%s999 + $0x18] sm:$0xf]
      %v1004 = vmax.f32 %v992, %v1000
      %v1005 = vmax.f32 %v993, %v1001
      %v1006 = vmax.f32 %v994, %v1002
      %v1007 = vmax.f32 %v995, %v1003
      %vm1008 = vcmask 228352
      %v1010 = vsel %vm1008, %v877, 0
      %v1013 = vsel %vm1008, %v878, 0
      %vm1015 = vcmask 1043456
      %v1017 = vsel %vm1015, %v1007, 0
      %1019 = vmatpush.msra.mxu0 0.0
      %1020 = vmatpush.msra.mxu0 0.0
      %1021 = vmatpush.msra.mxu0 0.0
      %1022 = vmatpush.msra.mxu0 0.0
      %1023 = vmatpush.msra.mxu0 0.0
      %1024 = vmatpush.msra.mxu0 0.0
      %1025 = vmatpush.msra.mxu0 0.0
      %1026 = vmatpush.msra.mxu0 0.0
      %1027 = vmatpush.msra.mxu0 0.0
      %1028 = vmatpush.msra.mxu0 0.0
      %1029 = vmatpush.msra.mxu0 0.0
      %1030 = vmatpush.msra.mxu0 0.0
      %1031 = vmatpush.msra.mxu0 %v1017
      %1032 = vmatpush.msra.mxu0 %v1006
      %1033 = vmatpush.msra.mxu0 %v1005
      %1034 = vmatpush.msra.mxu0 %v1004
      %1035 = vmatmul.f32.gmra.mxu0 %v1010
      %v1036 = vpop.f32.mrf.mxu0
      %v1037 = vadd.f32 0.0, %v1036
      %1038 = vmatmul.f32.gmra.mxu0 %v1013
      %v1039 = vpop.f32.mrf.mxu0
      %v1040 = vadd.f32 0.0, %v1039
      %1041 = vdwg.mxu0
      %v1043 = vsel %vm1008, %v885, 0
      %v1046 = vsel %vm1008, %v886, 0
      %1048 = vmatpush.msra.mxu0 0.0
      %1049 = vmatpush.msra.mxu0 0.0
      %1050 = vmatpush.msra.mxu0 0.0
      %1051 = vmatpush.msra.mxu0 0.0
      %1052 = vmatpush.msra.mxu0 0.0
      %1053 = vmatpush.msra.mxu0 0.0
      %1054 = vmatpush.msra.mxu0 0.0
      %1055 = vmatpush.msra.mxu0 0.0
      %1056 = vmatpush.msra.mxu0 0.0
      %1057 = vmatpush.msra.mxu0 0.0
      %1058 = vmatpush.msra.mxu0 0.0
      %1059 = vmatpush.msra.mxu0 0.0
      %1060 = vmatpush.msra.mxu0 %v1017
      %1061 = vmatpush.msra.mxu0 %v1006
      %1062 = vmatpush.msra.mxu0 %v1005
      %1063 = vmatpush.msra.mxu0 %v1004
      %1064 = vmatmul.f32.gmra.mxu0 %v1043
      %v1065 = vpop.f32.mrf.mxu0
      %v1066 = vadd.f32 0.0, %v1065
      %1067 = vmatmul.f32.gmra.mxu0 %v1046
      %v1068 = vpop.f32.mrf.mxu0
      %v1069 = vadd.f32 0.0, %v1068
      %1070 = vdwg.mxu0
      %v1071 = vmax.f32 %v1037, %v1066
      %v1072 = vmax.f32 %v1040, %v1069
      %s1073 = smul.u32 %s983, 16
      %s1074 = sadd.s32 %s1073, 224
      %s1075 = scalar_lea.vmem [#allocation3], %s1074
      %vm1076 = vcmask 64512
      %1077 = vst.msk [vmem:[%s1075] sm:$0xff] %vm1076, %v1071
      %vm1078 = vcmask 62464
      %1079 = vst.msk [vmem:[%s1075 + $0x8] sm:$0x3f] %vm1078, %v1072
    $region63: #{lenet_forward.1} parent=1 // loop_footer
      %s987 = sadd.s32 1, %s983
    $region64: #{lenet_forward.1} parent=1 // loop_footer_branch
      %982 = sbr.rel target = $region60
    $region65: #{lenet_forward.1} parent=1 // loop_exit
      _
    %v1080 = vld [vmem:[%s4] sm:$0x1]
    loop: start=0, step=1, limit=10
    $region66: #{lenet_forward.1} parent=1 // loop_pre_header
      _
    $region67: #{lenet_forward.1} parent=1 // loop_header
      %s1082 = sphi 0, %s1086
      %p1083 = scmp.ge.s32.totalorder %s1082, 10
    $region68: #{lenet_forward.1} parent=1 // loop_header_branch
      %1085 = sbr.rel (%p1083) target = $region72
    $region69: #{lenet_forward.1} parent=1 // loop_body
      %s1087 = smul.u32 %s1082, 16
      %s1088 = scalar_lea.vmem [#allocation3], %s1087
      %v1089 = vld [vmem:[%s1088] sm:$0xff]
      %v1090 = vld [vmem:[%s1088 + $0x8] sm:$0x3f]
      %vm1091 = vcmask 64512
      %1092 = vst.msk [vmem:[#allocation6] sm:$0xff] %vm1091, %v1089
      %vm1093 = vcmask 62464
      %1094 = vst.msk [vmem:[#allocation6 + $0x8] sm:$0x3f] %vm1093, %v1090
      %s1095 = sadd.s32 %s1082, 1
      %s1096 = smul.u32 %s1095, 16
      %s1097 = scalar_lea.vmem [#allocation3], %s1096
      %v1098 = vld [vmem:[%s1097] sm:$0xff]
      %v1099 = vld [vmem:[%s1097 + $0x8] sm:$0x3f]
      %1102 = vrot.lane.b32.xlu0 %v1098, 8
      %v1103 = vpop.permute.xlu0 %1102
      %1104 = vrot.lane.b32.xlu0 %v1099, 8
      %v1105 = vpop.permute.xlu0 %1104
      %vm1108 = vcmask 130112
      %1109 = vst.msk [vmem:[#allocation6] sm:$0xff] %vm1108, %v1103
      %vm1110 = vcmask 128064
      %1111 = vst.msk [vmem:[#allocation6 + $0x8] sm:$0x3f] %vm1110, %v1105
      %s1112 = sadd.s32 %s1082, 2
      %s1113 = smul.u32 %s1112, 16
      %s1114 = scalar_lea.vmem [#allocation3], %s1113
      %v1115 = vld [vmem:[%s1114] sm:$0xff]
      %v1116 = vld [vmem:[%s1114 + $0x8] sm:$0x3f]
      %1119 = vrot.lane.b32.xlu0 %v1115, 16
      %v1120 = vpop.permute.xlu0 %1119
      %1121 = vrot.lane.b32.xlu0 %v1116, 16
      %v1122 = vpop.permute.xlu0 %1121
      %vm1125 = vcmask 195712
      %1126 = vst.msk [vmem:[#allocation6] sm:$0xff] %vm1125, %v1120
      %vm1127 = vcmask 193664
      %1128 = vst.msk [vmem:[#allocation6 + $0x8] sm:$0x3f] %vm1127, %v1122
      %s1129 = sadd.s32 %s1082, 3
      %s1130 = smul.u32 %s1129, 16
      %s1131 = scalar_lea.vmem [#allocation3], %s1130
      %v1132 = vld [vmem:[%s1131] sm:$0xff]
      %v1133 = vld [vmem:[%s1131 + $0x8] sm:$0x3f]
      %1136 = vrot.lane.b32.xlu0 %v1132, 24
      %v1137 = vpop.permute.xlu0 %1136
      %1138 = vrot.lane.b32.xlu0 %v1133, 24
      %v1139 = vpop.permute.xlu0 %1138
      %vm1142 = vcmask 261312
      %1143 = vst.msk [vmem:[#allocation6] sm:$0xff] %vm1142, %v1137
      %vm1144 = vcmask 259264
      %1145 = vst.msk [vmem:[#allocation6 + $0x8] sm:$0x3f] %vm1144, %v1139
      %s1146 = sadd.s32 %s1082, 4
      %s1147 = smul.u32 %s1146, 16
      %s1148 = scalar_lea.vmem [#allocation3], %s1147
      %v1149 = vld [vmem:[%s1148] sm:$0xff]
      %v1150 = vld [vmem:[%s1148 + $0x8] sm:$0x3f]
      %1153 = vrot.lane.b32.xlu0 %v1149, 32
      %v1154 = vpop.permute.xlu0 %1153
      %1155 = vrot.lane.b32.xlu0 %v1150, 32
      %v1156 = vpop.permute.xlu0 %1155
      %vm1159 = vcmask 326912
      %1160 = vst.msk [vmem:[#allocation6] sm:$0xff] %vm1159, %v1154
      %vm1161 = vcmask 324864
      %1162 = vst.msk [vmem:[#allocation6 + $0x8] sm:$0x3f] %vm1161, %v1156
      %v1163 = vld [vmem:[#allocation6] sm:$0xff]
      %v1164 = vld [vmem:[#allocation6 + $0x8] sm:$0x3f]
      %v1165 = vld [vmem:[%s3] sm:$0xff]
      %v1166 = vld [vmem:[%s3 + $0x8] sm:$0xff]
      %v1167 = vld [vmem:[%s3 + $0x10] sm:$0xff]
      %v1168 = vld [vmem:[%s3 + $0x18] sm:$0xff]
      %v1169 = vld [vmem:[%s3 + $0x20] sm:$0xff]
      %s1170 = scalar_lea.vmem %s3, 40
      %v1171 = vld [vmem:[%s1170] sm:$0xff]
      %v1172 = vld [vmem:[%s1170 + $0x8] sm:$0xff]
      %v1173 = vld [vmem:[%s1170 + $0x10] sm:$0xff]
      %v1174 = vld [vmem:[%s1170 + $0x18] sm:$0xff]
      %v1175 = vld [vmem:[%s1170 + $0x20] sm:$0xff]
      %vm1178 = vcmask 1046528
      %v1179 = vrot.slane %v1163, 1
      %v1180 = vrot.slane %v1164, 1
      %v1181 = vsel %vm1178, %v1179, %v1180
      %vm1182 = vcmask 326656
      %v1183 = vsel %vm1182, %v1181, 0
      %v1185 = vsel %vm1182, %v1180, 0
      %1187 = vmatpush.msra.mxu0 0.0
      %1188 = vmatpush.msra.mxu0 0.0
      %1189 = vmatpush.msra.mxu0 0.0
      %1190 = vmatpush.msra.mxu0 0.0
      %1191 = vmatpush.msra.mxu0 0.0
      %1192 = vmatpush.msra.mxu0 0.0
      %1193 = vmatpush.msra.mxu0 0.0
      %1194 = vmatpush.msra.mxu0 0.0
      %1195 = vmatpush.msra.mxu0 0.0
      %1196 = vmatpush.msra.mxu0 0.0
      %1197 = vmatpush.msra.mxu0 0.0
      %1198 = vmatpush.msra.mxu0 %v1175
      %1199 = vmatpush.msra.mxu0 %v1174
      %1200 = vmatpush.msra.mxu0 %v1173
      %1201 = vmatpush.msra.mxu0 %v1172
      %1202 = vmatpush.msra.mxu0 %v1171
      %1203 = vmatmul.f32.gmra.mxu0 %v1183
      %v1204 = vpop.f32.mrf.mxu0
      %v1205 = vadd.f32 0.0, %v1204
      %1206 = vmatmul.f32.gmra.mxu0 %v1185
      %v1207 = vpop.f32.mrf.mxu0
      %v1208 = vadd.f32 0.0, %v1207
      %1209 = vdwg.mxu0
      %v1210 = vsel %vm1182, %v1163, 0
      %v1212 = vsel %vm1182, %v1164, 0
      %1214 = vmatpush.msra.mxu0 0.0
      %1215 = vmatpush.msra.mxu0 0.0
      %1216 = vmatpush.msra.mxu0 0.0
      %1217 = vmatpush.msra.mxu0 0.0
      %1218 = vmatpush.msra.mxu0 0.0
      %1219 = vmatpush.msra.mxu0 0.0
      %1220 = vmatpush.msra.mxu0 0.0
      %1221 = vmatpush.msra.mxu0 0.0
      %1222 = vmatpush.msra.mxu0 0.0
      %1223 = vmatpush.msra.mxu0 0.0
      %1224 = vmatpush.msra.mxu0 0.0
      %1225 = vmatpush.msra.mxu0 %v1169
      %1226 = vmatpush.msra.mxu0 %v1168
      %1227 = vmatpush.msra.mxu0 %v1167
      %1228 = vmatpush.msra.mxu0 %v1166
      %1229 = vmatpush.msra.mxu0 %v1165
      %1230 = vmatmul.f32.gmra.mxu0 %v1210
      %v1231 = vpop.f32.mrf.mxu0
      %v1232 = vadd.f32 %v1205, %v1231
      %1233 = vmatmul.f32.gmra.mxu0 %v1212
      %v1234 = vpop.f32.mrf.mxu0
      %v1235 = vadd.f32 %v1208, %v1234
      %1236 = vdwg.mxu0
      %s1237 = scalar_lea.vmem %s3, 80
      %v1238 = vld [vmem:[%s1237] sm:$0xff]
      %v1239 = vld [vmem:[%s1237 + $0x8] sm:$0xff]
      %v1240 = vld [vmem:[%s1237 + $0x10] sm:$0xff]
      %v1241 = vld [vmem:[%s1237 + $0x18] sm:$0xff]
      %v1242 = vld [vmem:[%s1237 + $0x20] sm:$0xff]
      %vm1243 = vcmask 1045504
      %v1244 = vrot.slane %v1163, 2
      %v1245 = vrot.slane %v1164, 2
      %v1246 = vsel %vm1243, %v1244, %v1245
      %v1247 = vsel %vm1182, %v1246, 0
      %v1249 = vsel %vm1182, %v1245, 0
      %1251 = vmatpush.msra.mxu0 0.0
      %1252 = vmatpush.msra.mxu0 0.0
      %1253 = vmatpush.msra.mxu0 0.0
      %1254 = vmatpush.msra.mxu0 0.0
      %1255 = vmatpush.msra.mxu0 0.0
      %1256 = vmatpush.msra.mxu0 0.0
      %1257 = vmatpush.msra.mxu0 0.0
      %1258 = vmatpush.msra.mxu0 0.0
      %1259 = vmatpush.msra.mxu0 0.0
      %1260 = vmatpush.msra.mxu0 0.0
      %1261 = vmatpush.msra.mxu0 0.0
      %1262 = vmatpush.msra.mxu0 %v1242
      %1263 = vmatpush.msra.mxu0 %v1241
      %1264 = vmatpush.msra.mxu0 %v1240
      %1265 = vmatpush.msra.mxu0 %v1239
      %1266 = vmatpush.msra.mxu0 %v1238
      %1267 = vmatmul.f32.gmra.mxu0 %v1247
      %v1268 = vpop.f32.mrf.mxu0
      %v1269 = vadd.f32 0.0, %v1268
      %1270 = vmatmul.f32.gmra.mxu0 %v1249
      %v1271 = vpop.f32.mrf.mxu0
      %v1272 = vadd.f32 0.0, %v1271
      %1273 = vdwg.mxu0
      %v1274 = vadd.f32 %v1232, %v1269
      %v1275 = vadd.f32 %v1235, %v1272
      %s1276 = scalar_lea.vmem %s3, 120
      %v1277 = vld [vmem:[%s1276] sm:$0xff]
      %v1278 = vld [vmem:[%s1276 + $0x8] sm:$0xff]
      %v1279 = vld [vmem:[%s1276 + $0x10] sm:$0xff]
      %v1280 = vld [vmem:[%s1276 + $0x18] sm:$0xff]
      %v1281 = vld [vmem:[%s1276 + $0x20] sm:$0xff]
      %vm1282 = vcmask 1044480
      %v1283 = vrot.slane %v1163, 3
      %v1284 = vrot.slane %v1164, 3
      %v1285 = vsel %vm1282, %v1283, %v1284
      %v1286 = vsel %vm1182, %v1285, 0
      %v1288 = vsel %vm1182, %v1284, 0
      %1290 = vmatpush.msra.mxu0 0.0
      %1291 = vmatpush.msra.mxu0 0.0
      %1292 = vmatpush.msra.mxu0 0.0
      %1293 = vmatpush.msra.mxu0 0.0
      %1294 = vmatpush.msra.mxu0 0.0
      %1295 = vmatpush.msra.mxu0 0.0
      %1296 = vmatpush.msra.mxu0 0.0
      %1297 = vmatpush.msra.mxu0 0.0
      %1298 = vmatpush.msra.mxu0 0.0
      %1299 = vmatpush.msra.mxu0 0.0
      %1300 = vmatpush.msra.mxu0 0.0
      %1301 = vmatpush.msra.mxu0 %v1281
      %1302 = vmatpush.msra.mxu0 %v1280
      %1303 = vmatpush.msra.mxu0 %v1279
      %1304 = vmatpush.msra.mxu0 %v1278
      %1305 = vmatpush.msra.mxu0 %v1277
      %1306 = vmatmul.f32.gmra.mxu0 %v1286
      %v1307 = vpop.f32.mrf.mxu0
      %v1308 = vadd.f32 0.0, %v1307
      %1309 = vmatmul.f32.gmra.mxu0 %v1288
      %v1310 = vpop.f32.mrf.mxu0
      %v1311 = vadd.f32 0.0, %v1310
      %1312 = vdwg.mxu0
      %v1313 = vadd.f32 %v1274, %v1308
      %v1314 = vadd.f32 %v1275, %v1311
      %s1315 = scalar_lea.vmem %s3, 160
      %v1316 = vld [vmem:[%s1315] sm:$0xff]
      %v1317 = vld [vmem:[%s1315 + $0x8] sm:$0xff]
      %v1318 = vld [vmem:[%s1315 + $0x10] sm:$0xff]
      %v1319 = vld [vmem:[%s1315 + $0x18] sm:$0xff]
      %v1320 = vld [vmem:[%s1315 + $0x20] sm:$0xff]
      %vm1321 = vcmask 1043456
      %v1322 = vrot.slane %v1163, 4
      %v1323 = vrot.slane %v1164, 4
      %v1324 = vsel %vm1321, %v1322, %v1323
      %v1325 = vsel %vm1182, %v1324, 0
      %v1327 = vsel %vm1182, %v1323, 0
      %1329 = vmatpush.msra.mxu0 0.0
      %1330 = vmatpush.msra.mxu0 0.0
      %1331 = vmatpush.msra.mxu0 0.0
      %1332 = vmatpush.msra.mxu0 0.0
      %1333 = vmatpush.msra.mxu0 0.0
      %1334 = vmatpush.msra.mxu0 0.0
      %1335 = vmatpush.msra.mxu0 0.0
      %1336 = vmatpush.msra.mxu0 0.0
      %1337 = vmatpush.msra.mxu0 0.0
      %1338 = vmatpush.msra.mxu0 0.0
      %1339 = vmatpush.msra.mxu0 0.0
      %1340 = vmatpush.msra.mxu0 %v1320
      %1341 = vmatpush.msra.mxu0 %v1319
      %1342 = vmatpush.msra.mxu0 %v1318
      %1343 = vmatpush.msra.mxu0 %v1317
      %1344 = vmatpush.msra.mxu0 %v1316
      %1345 = vmatmul.f32.gmra.mxu0 %v1325
      %v1346 = vpop.f32.mrf.mxu0
      %v1347 = vadd.f32 0.0, %v1346
      %1348 = vmatmul.f32.gmra.mxu0 %v1327
      %v1349 = vpop.f32.mrf.mxu0
      %v1350 = vadd.f32 0.0, %v1349
      %1351 = vdwg.mxu0
      %v1352 = vadd.f32 %v1313, %v1347
      %v1353 = vadd.f32 %v1314, %v1350
      %v1355 = vperm.slane %v1080, 0
      %v1357 = vadd.f32 %v1352, %v1355
      %v1358 = vadd.f32 %v1353, %v1355
      %v1359 = vmax.f32 %v1357, 0.0
      %v1360 = vmax.f32 %v1358, 0.0
      %s1361 = scalar_lea.vmem [#allocation4], %s1087
      %vm1362 = vcmask 130048
      %1363 = vst.msk [vmem:[%s1361] sm:$0xff] %vm1362, %v1359
      %vm1364 = vcmask 123904
      %1365 = vst.msk [vmem:[%s1361 + $0x8] sm:$0x3] %vm1364, %v1360
    $region70: #{lenet_forward.1} parent=1 // loop_footer
      %s1086 = sadd.s32 1, %s1082
    $region71: #{lenet_forward.1} parent=1 // loop_footer_branch
      %1081 = sbr.rel target = $region67
    $region72: #{lenet_forward.1} parent=1 // loop_exit
      _
    loop: start=0, step=1, limit=10
    $region73: #{lenet_forward.1} parent=1 // loop_pre_header
      _
    $region74: #{lenet_forward.1} parent=1 // loop_header
      %s1367 = sphi 0, %s1371
      %p1368 = scmp.ge.s32.totalorder %s1367, 10
    $region75: #{lenet_forward.1} parent=1 // loop_header_branch
      %1370 = sbr.rel (%p1368) target = $region79
    $region76: #{lenet_forward.1} parent=1 // loop_body
      %s1372 = smul.u32 %s1367, 16
      %s1373 = sadd.s32 %s1372, 224
      %s1374 = scalar_lea.vmem [#allocation3], %s1373
      %v1375 = vld [vmem:[%s1374] sm:$0xff]
      %v1376 = vld [vmem:[%s1374 + $0x8] sm:$0x3f]
      %vm1377 = vcmask 64512
      %1378 = vst.msk [vmem:[#allocation6] sm:$0xff] %vm1377, %v1375
      %vm1379 = vcmask 62464
      %1380 = vst.msk [vmem:[#allocation6 + $0x8] sm:$0x3f] %vm1379, %v1376
      %s1381 = sadd.s32 %s1367, 1
      %s1382 = smul.u32 %s1381, 16
      %s1383 = sadd.s32 %s1382, 224
      %s1384 = scalar_lea.vmem [#allocation3], %s1383
      %v1385 = vld [vmem:[%s1384] sm:$0xff]
      %v1386 = vld [vmem:[%s1384 + $0x8] sm:$0x3f]
      %1389 = vrot.lane.b32.xlu0 %v1385, 8
      %v1390 = vpop.permute.xlu0 %1389
      %1391 = vrot.lane.b32.xlu0 %v1386, 8
      %v1392 = vpop.permute.xlu0 %1391
      %vm1395 = vcmask 130112
      %1396 = vst.msk [vmem:[#allocation6] sm:$0xff] %vm1395, %v1390
      %vm1397 = vcmask 128064
      %1398 = vst.msk [vmem:[#allocation6 + $0x8] sm:$0x3f] %vm1397, %v1392
      %s1399 = sadd.s32 %s1367, 2
      %s1400 = smul.u32 %s1399, 16
      %s1401 = sadd.s32 %s1400, 224
      %s1402 = scalar_lea.vmem [#allocation3], %s1401
      %v1403 = vld [vmem:[%s1402] sm:$0xff]
      %v1404 = vld [vmem:[%s1402 + $0x8] sm:$0x3f]
      %1407 = vrot.lane.b32.xlu0 %v1403, 16
      %v1408 = vpop.permute.xlu0 %1407
      %1409 = vrot.lane.b32.xlu0 %v1404, 16
      %v1410 = vpop.permute.xlu0 %1409
      %vm1413 = vcmask 195712
      %1414 = vst.msk [vmem:[#allocation6] sm:$0xff] %vm1413, %v1408
      %vm1415 = vcmask 193664
      %1416 = vst.msk [vmem:[#allocation6 + $0x8] sm:$0x3f] %vm1415, %v1410
      %s1417 = sadd.s32 %s1367, 3
      %s1418 = smul.u32 %s1417, 16
      %s1419 = sadd.s32 %s1418, 224
      %s1420 = scalar_lea.vmem [#allocation3], %s1419
      %v1421 = vld [vmem:[%s1420] sm:$0xff]
      %v1422 = vld [vmem:[%s1420 + $0x8] sm:$0x3f]
      %1425 = vrot.lane.b32.xlu0 %v1421, 24
      %v1426 = vpop.permute.xlu0 %1425
      %1427 = vrot.lane.b32.xlu0 %v1422, 24
      %v1428 = vpop.permute.xlu0 %1427
      %vm1431 = vcmask 261312
      %1432 = vst.msk [vmem:[#allocation6] sm:$0xff] %vm1431, %v1426
      %vm1433 = vcmask 259264
      %1434 = vst.msk [vmem:[#allocation6 + $0x8] sm:$0x3f] %vm1433, %v1428
      %s1435 = sadd.s32 %s1367, 4
      %s1436 = smul.u32 %s1435, 16
      %s1437 = sadd.s32 %s1436, 224
      %s1438 = scalar_lea.vmem [#allocation3], %s1437
      %v1439 = vld [vmem:[%s1438] sm:$0xff]
      %v1440 = vld [vmem:[%s1438 + $0x8] sm:$0x3f]
      %1443 = vrot.lane.b32.xlu0 %v1439, 32
      %v1444 = vpop.permute.xlu0 %1443
      %1445 = vrot.lane.b32.xlu0 %v1440, 32
      %v1446 = vpop.permute.xlu0 %1445
      %vm1449 = vcmask 326912
      %1450 = vst.msk [vmem:[#allocation6] sm:$0xff] %vm1449, %v1444
      %vm1451 = vcmask 324864
      %1452 = vst.msk [vmem:[#allocation6 + $0x8] sm:$0x3f] %vm1451, %v1446
      %v1453 = vld [vmem:[#allocation6] sm:$0xff]
      %v1454 = vld [vmem:[#allocation6 + $0x8] sm:$0x3f]
      %v1455 = vld [vmem:[%s3] sm:$0xff]
      %v1456 = vld [vmem:[%s3 + $0x8] sm:$0xff]
      %v1457 = vld [vmem:[%s3 + $0x10] sm:$0xff]
      %v1458 = vld [vmem:[%s3 + $0x18] sm:$0xff]
      %v1459 = vld [vmem:[%s3 + $0x20] sm:$0xff]
      %s1460 = scalar_lea.vmem %s3, 40
      %v1461 = vld [vmem:[%s1460] sm:$0xff]
      %v1462 = vld [vmem:[%s1460 + $0x8] sm:$0xff]
      %v1463 = vld [vmem:[%s1460 + $0x10] sm:$0xff]
      %v1464 = vld [vmem:[%s1460 + $0x18] sm:$0xff]
      %v1465 = vld [vmem:[%s1460 + $0x20] sm:$0xff]
      %vm1468 = vcmask 1046528
      %v1469 = vrot.slane %v1453, 1
      %v1470 = vrot.slane %v1454, 1
      %v1471 = vsel %vm1468, %v1469, %v1470
      %vm1472 = vcmask 326656
      %v1473 = vsel %vm1472, %v1471, 0
      %v1475 = vsel %vm1472, %v1470, 0
      %1477 = vmatpush.msra.mxu0 0.0
      %1478 = vmatpush.msra.mxu0 0.0
      %1479 = vmatpush.msra.mxu0 0.0
      %1480 = vmatpush.msra.mxu0 0.0
      %1481 = vmatpush.msra.mxu0 0.0
      %1482 = vmatpush.msra.mxu0 0.0
      %1483 = vmatpush.msra.mxu0 0.0
      %1484 = vmatpush.msra.mxu0 0.0
      %1485 = vmatpush.msra.mxu0 0.0
      %1486 = vmatpush.msra.mxu0 0.0
      %1487 = vmatpush.msra.mxu0 0.0
      %1488 = vmatpush.msra.mxu0 %v1465
      %1489 = vmatpush.msra.mxu0 %v1464
      %1490 = vmatpush.msra.mxu0 %v1463
      %1491 = vmatpush.msra.mxu0 %v1462
      %1492 = vmatpush.msra.mxu0 %v1461
      %1493 = vmatmul.f32.gmra.mxu0 %v1473
      %v1494 = vpop.f32.mrf.mxu0
      %v1495 = vadd.f32 0.0, %v1494
      %1496 = vmatmul.f32.gmra.mxu0 %v1475
      %v1497 = vpop.f32.mrf.mxu0
      %v1498 = vadd.f32 0.0, %v1497
      %1499 = vdwg.mxu0
      %v1500 = vsel %vm1472, %v1453, 0
      %v1502 = vsel %vm1472, %v1454, 0
      %1504 = vmatpush.msra.mxu0 0.0
      %1505 = vmatpush.msra.mxu0 0.0
      %1506 = vmatpush.msra.mxu0 0.0
      %1507 = vmatpush.msra.mxu0 0.0
      %1508 = vmatpush.msra.mxu0 0.0
      %1509 = vmatpush.msra.mxu0 0.0
      %1510 = vmatpush.msra.mxu0 0.0
      %1511 = vmatpush.msra.mxu0 0.0
      %1512 = vmatpush.msra.mxu0 0.0
      %1513 = vmatpush.msra.mxu0 0.0
      %1514 = vmatpush.msra.mxu0 0.0
      %1515 = vmatpush.msra.mxu0 %v1459
      %1516 = vmatpush.msra.mxu0 %v1458
      %1517 = vmatpush.msra.mxu0 %v1457
      %1518 = vmatpush.msra.mxu0 %v1456
      %1519 = vmatpush.msra.mxu0 %v1455
      %1520 = vmatmul.f32.gmra.mxu0 %v1500
      %v1521 = vpop.f32.mrf.mxu0
      %v1522 = vadd.f32 %v1495, %v1521
      %1523 = vmatmul.f32.gmra.mxu0 %v1502
      %v1524 = vpop.f32.mrf.mxu0
      %v1525 = vadd.f32 %v1498, %v1524
      %1526 = vdwg.mxu0
      %s1527 = scalar_lea.vmem %s3, 80
      %v1528 = vld [vmem:[%s1527] sm:$0xff]
      %v1529 = vld [vmem:[%s1527 + $0x8] sm:$0xff]
      %v1530 = vld [vmem:[%s1527 + $0x10] sm:$0xff]
      %v1531 = vld [vmem:[%s1527 + $0x18] sm:$0xff]
      %v1532 = vld [vmem:[%s1527 + $0x20] sm:$0xff]
      %vm1533 = vcmask 1045504
      %v1534 = vrot.slane %v1453, 2
      %v1535 = vrot.slane %v1454, 2
      %v1536 = vsel %vm1533, %v1534, %v1535
      %v1537 = vsel %vm1472, %v1536, 0
      %v1539 = vsel %vm1472, %v1535, 0
      %1541 = vmatpush.msra.mxu0 0.0
      %1542 = vmatpush.msra.mxu0 0.0
      %1543 = vmatpush.msra.mxu0 0.0
      %1544 = vmatpush.msra.mxu0 0.0
      %1545 = vmatpush.msra.mxu0 0.0
      %1546 = vmatpush.msra.mxu0 0.0
      %1547 = vmatpush.msra.mxu0 0.0
      %1548 = vmatpush.msra.mxu0 0.0
      %1549 = vmatpush.msra.mxu0 0.0
      %1550 = vmatpush.msra.mxu0 0.0
      %1551 = vmatpush.msra.mxu0 0.0
      %1552 = vmatpush.msra.mxu0 %v1532
      %1553 = vmatpush.msra.mxu0 %v1531
      %1554 = vmatpush.msra.mxu0 %v1530
      %1555 = vmatpush.msra.mxu0 %v1529
      %1556 = vmatpush.msra.mxu0 %v1528
      %1557 = vmatmul.f32.gmra.mxu0 %v1537
      %v1558 = vpop.f32.mrf.mxu0
      %v1559 = vadd.f32 0.0, %v1558
      %1560 = vmatmul.f32.gmra.mxu0 %v1539
      %v1561 = vpop.f32.mrf.mxu0
      %v1562 = vadd.f32 0.0, %v1561
      %1563 = vdwg.mxu0
      %v1564 = vadd.f32 %v1522, %v1559
      %v1565 = vadd.f32 %v1525, %v1562
      %s1566 = scalar_lea.vmem %s3, 120
      %v1567 = vld [vmem:[%s1566] sm:$0xff]
      %v1568 = vld [vmem:[%s1566 + $0x8] sm:$0xff]
      %v1569 = vld [vmem:[%s1566 + $0x10] sm:$0xff]
      %v1570 = vld [vmem:[%s1566 + $0x18] sm:$0xff]
      %v1571 = vld [vmem:[%s1566 + $0x20] sm:$0xff]
      %vm1572 = vcmask 1044480
      %v1573 = vrot.slane %v1453, 3
      %v1574 = vrot.slane %v1454, 3
      %v1575 = vsel %vm1572, %v1573, %v1574
      %v1576 = vsel %vm1472, %v1575, 0
      %v1578 = vsel %vm1472, %v1574, 0
      %1580 = vmatpush.msra.mxu0 0.0
      %1581 = vmatpush.msra.mxu0 0.0
      %1582 = vmatpush.msra.mxu0 0.0
      %1583 = vmatpush.msra.mxu0 0.0
      %1584 = vmatpush.msra.mxu0 0.0
      %1585 = vmatpush.msra.mxu0 0.0
      %1586 = vmatpush.msra.mxu0 0.0
      %1587 = vmatpush.msra.mxu0 0.0
      %1588 = vmatpush.msra.mxu0 0.0
      %1589 = vmatpush.msra.mxu0 0.0
      %1590 = vmatpush.msra.mxu0 0.0
      %1591 = vmatpush.msra.mxu0 %v1571
      %1592 = vmatpush.msra.mxu0 %v1570
      %1593 = vmatpush.msra.mxu0 %v1569
      %1594 = vmatpush.msra.mxu0 %v1568
      %1595 = vmatpush.msra.mxu0 %v1567
      %1596 = vmatmul.f32.gmra.mxu0 %v1576
      %v1597 = vpop.f32.mrf.mxu0
      %v1598 = vadd.f32 0.0, %v1597
      %1599 = vmatmul.f32.gmra.mxu0 %v1578
      %v1600 = vpop.f32.mrf.mxu0
      %v1601 = vadd.f32 0.0, %v1600
      %1602 = vdwg.mxu0
      %v1603 = vadd.f32 %v1564, %v1598
      %v1604 = vadd.f32 %v1565, %v1601
      %s1605 = scalar_lea.vmem %s3, 160
      %v1606 = vld [vmem:[%s1605] sm:$0xff]
      %v1607 = vld [vmem:[%s1605 + $0x8] sm:$0xff]
      %v1608 = vld [vmem:[%s1605 + $0x10] sm:$0xff]
      %v1609 = vld [vmem:[%s1605 + $0x18] sm:$0xff]
      %v1610 = vld [vmem:[%s1605 + $0x20] sm:$0xff]
      %vm1611 = vcmask 1043456
      %v1612 = vrot.slane %v1453, 4
      %v1613 = vrot.slane %v1454, 4
      %v1614 = vsel %vm1611, %v1612, %v1613
      %v1615 = vsel %vm1472, %v1614, 0
      %v1617 = vsel %vm1472, %v1613, 0
      %1619 = vmatpush.msra.mxu0 0.0
      %1620 = vmatpush.msra.mxu0 0.0
      %1621 = vmatpush.msra.mxu0 0.0
      %1622 = vmatpush.msra.mxu0 0.0
      %1623 = vmatpush.msra.mxu0 0.0
      %1624 = vmatpush.msra.mxu0 0.0
      %1625 = vmatpush.msra.mxu0 0.0
      %1626 = vmatpush.msra.mxu0 0.0
      %1627 = vmatpush.msra.mxu0 0.0
      %1628 = vmatpush.msra.mxu0 0.0
      %1629 = vmatpush.msra.mxu0 0.0
      %1630 = vmatpush.msra.mxu0 %v1610
      %1631 = vmatpush.msra.mxu0 %v1609
      %1632 = vmatpush.msra.mxu0 %v1608
      %1633 = vmatpush.msra.mxu0 %v1607
      %1634 = vmatpush.msra.mxu0 %v1606
      %1635 = vmatmul.f32.gmra.mxu0 %v1615
      %v1636 = vpop.f32.mrf.mxu0
      %v1637 = vadd.f32 0.0, %v1636
      %1638 = vmatmul.f32.gmra.mxu0 %v1617
      %v1639 = vpop.f32.mrf.mxu0
      %v1640 = vadd.f32 0.0, %v1639
      %1641 = vdwg.mxu0
      %v1642 = vadd.f32 %v1603, %v1637
      %v1643 = vadd.f32 %v1604, %v1640
      %v1645 = vperm.slane %v1080, 0
      %v1647 = vadd.f32 %v1642, %v1645
      %v1648 = vadd.f32 %v1643, %v1645
      %v1649 = vmax.f32 %v1647, 0.0
      %v1650 = vmax.f32 %v1648, 0.0
      %s1651 = sadd.s32 %s1372, 160
      %s1652 = scalar_lea.vmem [#allocation4], %s1651
      %vm1653 = vcmask 130048
      %1654 = vst.msk [vmem:[%s1652] sm:$0xff] %vm1653, %v1649
      %vm1655 = vcmask 123904
      %1656 = vst.msk [vmem:[%s1652 + $0x8] sm:$0x3] %vm1655, %v1650
    $region77: #{lenet_forward.1} parent=1 // loop_footer
      %s1371 = sadd.s32 1, %s1367
    $region78: #{lenet_forward.1} parent=1 // loop_footer_branch
      %1366 = sbr.rel target = $region74
    $region79: #{lenet_forward.1} parent=1 // loop_exit
      _
    loop: start=0, step=1, limit=5
    $region80: #{lenet_forward.1} parent=1 // loop_pre_header
      _
    $region81: #{lenet_forward.1} parent=1 // loop_header
      %s1658 = sphi 0, %s1662
      %p1659 = scmp.ge.s32.totalorder %s1658, 5
    $region82: #{lenet_forward.1} parent=1 // loop_header_branch
      %1661 = sbr.rel (%p1659) target = $region86
    $region83: #{lenet_forward.1} parent=1 // loop_body
      %s1663 = smul.u32 %s1658, 2
      %s1664 = smul.u32 %s1663, 16
      %s1665 = scalar_lea.vmem [#allocation4], %s1664
      %v1666 = vld [vmem:[%s1665] sm:$0xff]
      %v1667 = vld [vmem:[%s1665 + $0x8] sm:$0x3]
      %s1668 = sadd.s32 %s1663, 1
      %s1669 = smul.u32 %s1668, 16
      %s1670 = scalar_lea.vmem [#allocation4], %s1669
      %v1671 = vld [vmem:[%s1670] sm:$0xff]
      %v1672 = vld [vmem:[%s1670 + $0x8] sm:$0x3]
      %v1673 = vmax.f32 %v1666, %v1671
      %v1674 = vmax.f32 %v1667, %v1672
      %vm1675 = vcmask 80896
      %v1677 = vsel %vm1675, %v877, 0
      %vm1679 = vcmask 1041408
      %v1681 = vsel %vm1679, %v1674, 0
      %1683 = vmatpush.msra.mxu0 0.0
      %1684 = vmatpush.msra.mxu0 0.0
      %1685 = vmatpush.msra.mxu0 0.0
      %1686 = vmatpush.msra.mxu0 0.0
      %1687 = vmatpush.msra.mxu0 0.0
      %1688 = vmatpush.msra.mxu0 0.0
      %1689 = vmatpush.msra.mxu0 0.0
      %1690 = vmatpush.msra.mxu0 0.0
      %1691 = vmatpush.msra.mxu0 0.0
      %1692 = vmatpush.msra.mxu0 0.0
      %1693 = vmatpush.msra.mxu0 0.0
      %1694 = vmatpush.msra.mxu0 0.0
      %1695 = vmatpush.msra.mxu0 0.0
      %1696 = vmatpush.msra.mxu0 0.0
      %1697 = vmatpush.msra.mxu0 %v1681
      %1698 = vmatpush.msra.mxu0 %v1673
      %1699 = vmatmul.f32.gmra.mxu0 %v1677
      %v1700 = vpop.f32.mrf.mxu0
      %v1701 = vadd.f32 0.0, %v1700
      %1702 = vdwg.mxu0
      %v1704 = vsel %vm1675, %v885, 0
      %1706 = vmatpush.msra.mxu0 0.0
      %1707 = vmatpush.msra.mxu0 0.0
      %1708 = vmatpush.msra.mxu0 0.0
      %1709 = vmatpush.msra.mxu0 0.0
      %1710 = vmatpush.msra.mxu0 0.0
      %1711 = vmatpush.msra.mxu0 0.0
      %1712 = vmatpush.msra.mxu0 0.0
      %1713 = vmatpush.msra.mxu0 0.0
      %1714 = vmatpush.msra.mxu0 0.0
      %1715 = vmatpush.msra.mxu0 0.0
      %1716 = vmatpush.msra.mxu0 0.0
      %1717 = vmatpush.msra.mxu0 0.0
      %1718 = vmatpush.msra.mxu0 0.0
      %1719 = vmatpush.msra.mxu0 0.0
      %1720 = vmatpush.msra.mxu0 %v1681
      %1721 = vmatpush.msra.mxu0 %v1673
      %1722 = vmatmul.f32.gmra.mxu0 %v1704
      %v1723 = vpop.f32.mrf.mxu0
      %v1724 = vadd.f32 0.0, %v1723
      %1725 = vdwg.mxu0
      %v1726 = vmax.f32 %v1701, %v1724
      %s1727 = smul.u32 %s1658, 8
      %s1728 = scalar_lea.vmem [#allocation5], %s1727
      %vm1729 = vcmask 126976
      %1730 = vst.msk [vmem:[%s1728] sm:$0x1f] %vm1729, %v1726
    $region84: #{lenet_forward.1} parent=1 // loop_footer
      %s1662 = sadd.s32 1, %s1658
    $region85: #{lenet_forward.1} parent=1 // loop_footer_branch
      %1657 = sbr.rel target = $region81
    $region86: #{lenet_forward.1} parent=1 // loop_exit
      _
    loop: start=0, step=1, limit=5
    $region87: #{lenet_forward.1} parent=1 // loop_pre_header
      _
    $region88: #{lenet_forward.1} parent=1 // loop_header
      %s1732 = sphi 0, %s1736
      %p1733 = scmp.ge.s32.totalorder %s1732, 5
    $region89: #{lenet_forward.1} parent=1 // loop_header_branch
      %1735 = sbr.rel (%p1733) target = $region93
    $region90: #{lenet_forward.1} parent=1 // loop_body
      %s1737 = smul.u32 %s1732, 2
      %s1738 = smul.u32 %s1737, 16
      %s1739 = sadd.s32 %s1738, 160
      %s1740 = scalar_lea.vmem [#allocation4], %s1739
      %v1741 = vld [vmem:[%s1740] sm:$0xff]
      %v1742 = vld [vmem:[%s1740 + $0x8] sm:$0x3]
      %s1743 = sadd.s32 %s1737, 1
      %s1744 = smul.u32 %s1743, 16
      %s1745 = sadd.s32 %s1744, 160
      %s1746 = scalar_lea.vmem [#allocation4], %s1745
      %v1747 = vld [vmem:[%s1746] sm:$0xff]
      %v1748 = vld [vmem:[%s1746 + $0x8] sm:$0x3]
      %v1749 = vmax.f32 %v1741, %v1747
      %v1750 = vmax.f32 %v1742, %v1748
      %vm1751 = vcmask 80896
      %v1753 = vsel %vm1751, %v877, 0
      %vm1755 = vcmask 1041408
      %v1757 = vsel %vm1755, %v1750, 0
      %1759 = vmatpush.msra.mxu0 0.0
      %1760 = vmatpush.msra.mxu0 0.0
      %1761 = vmatpush.msra.mxu0 0.0
      %1762 = vmatpush.msra.mxu0 0.0
      %1763 = vmatpush.msra.mxu0 0.0
      %1764 = vmatpush.msra.mxu0 0.0
      %1765 = vmatpush.msra.mxu0 0.0
      %1766 = vmatpush.msra.mxu0 0.0
      %1767 = vmatpush.msra.mxu0 0.0
      %1768 = vmatpush.msra.mxu0 0.0
      %1769 = vmatpush.msra.mxu0 0.0
      %1770 = vmatpush.msra.mxu0 0.0
      %1771 = vmatpush.msra.mxu0 0.0
      %1772 = vmatpush.msra.mxu0 0.0
      %1773 = vmatpush.msra.mxu0 %v1757
      %1774 = vmatpush.msra.mxu0 %v1749
      %1775 = vmatmul.f32.gmra.mxu0 %v1753
      %v1776 = vpop.f32.mrf.mxu0
      %v1777 = vadd.f32 0.0, %v1776
      %1778 = vdwg.mxu0
      %v1780 = vsel %vm1751, %v885, 0
      %1782 = vmatpush.msra.mxu0 0.0
      %1783 = vmatpush.msra.mxu0 0.0
      %1784 = vmatpush.msra.mxu0 0.0
      %1785 = vmatpush.msra.mxu0 0.0
      %1786 = vmatpush.msra.mxu0 0.0
      %1787 = vmatpush.msra.mxu0 0.0
      %1788 = vmatpush.msra.mxu0 0.0
      %1789 = vmatpush.msra.mxu0 0.0
      %1790 = vmatpush.msra.mxu0 0.0
      %1791 = vmatpush.msra.mxu0 0.0
      %1792 = vmatpush.msra.mxu0 0.0
      %1793 = vmatpush.msra.mxu0 0.0
      %1794 = vmatpush.msra.mxu0 0.0
      %1795 = vmatpush.msra.mxu0 0.0
      %1796 = vmatpush.msra.mxu0 %v1757
      %1797 = vmatpush.msra.mxu0 %v1749
      %1798 = vmatmul.f32.gmra.mxu0 %v1780
      %v1799 = vpop.f32.mrf.mxu0
      %v1800 = vadd.f32 0.0, %v1799
      %1801 = vdwg.mxu0
      %v1802 = vmax.f32 %v1777, %v1800
      %s1803 = smul.u32 %s1732, 8
      %s1804 = sadd.s32 %s1803, 40
      %s1805 = scalar_lea.vmem [#allocation5], %s1804
      %vm1806 = vcmask 126976
      %1807 = vst.msk [vmem:[%s1805] sm:$0x1f] %vm1806, %v1802
    $region91: #{lenet_forward.1} parent=1 // loop_footer
      %s1736 = sadd.s32 1, %s1732
    $region92: #{lenet_forward.1} parent=1 // loop_footer_branch
      %1731 = sbr.rel target = $region88
    $region93: #{lenet_forward.1} parent=1 // loop_exit
      _
    %v1808 = vld [vmem:[#allocation5] sm:$0x1f]
    %vm1809 = vcmask 122880
    %1810 = vst.msk [vmem:[#allocation7] sm:$0x1] %vm1809, %v1808
    %v1812 = vrot.slane %v1808, 7
    %v1813 = vrot.slane %v1812, 2
    %1814 = vrot.lane.b32.xlu0 %v1813, 16
    %v1815 = vpop.permute.xlu0 %1814
    %vm1817 = vcmask 254080
    %1818 = vst.msk [vmem:[#allocation7] sm:$0x1] %vm1817, %v1815
    %1819 = vst.sshfl [vmem:[#allocation1] sm:$0xff pattern:$0x73625140] %v1808
    %s1820 = scalar_lea.vmem [#allocation1], 1
    %v1821 = vld [vmem:[%s1820] ss:$4 sm:$0xff]
    %1822 = vrot.lane.b32.xlu0 %v1821, 32
    %v1823 = vpop.permute.xlu0 %1822
    %vm1825 = vcmask 385280
    %1826 = vst.msk [vmem:[#allocation7] sm:$0x1] %vm1825, %v1823
    %1827 = vst.sshfl [vmem:[#allocation1] sm:$0xff pattern:$0x73625140] %v1808
    %s1828 = scalar_lea.vmem [#allocation1], 1
    %v1829 = vld [vmem:[%s1828] ss:$4 sm:$0xff]
    %v1830 = vrot.slane %v1829, 7
    %v1831 = vrot.slane %v1830, 2
    %1832 = vrot.lane.b32.xlu0 %v1831, 48
    %v1833 = vpop.permute.xlu0 %1832
    %vm1835 = vcmask 516480
    %1836 = vst.msk [vmem:[#allocation7] sm:$0x1] %vm1835, %v1833
    %1837 = vst.sshfl [vmem:[#allocation1] sm:$0xff pattern:$0x73625140] %v1808
    %s1838 = scalar_lea.vmem [#allocation1], 2
    %v1839 = vld [vmem:[%s1838] ss:$4 sm:$0xff]
    %1840 = vrot.lane.b32.xlu0 %v1839, 64
    %v1841 = vpop.permute.xlu0 %1840
    %vm1843 = vcmask 647680
    %1844 = vst.msk [vmem:[#allocation7] sm:$0x1] %vm1843, %v1841
    %s1845 = scalar_lea.vmem [#allocation5], 8
    %v1846 = vld [vmem:[%s1845] sm:$0x1f]
    %1848 = vrot.lane.b32.xlu0 %v1846, 80
    %v1849 = vpop.permute.xlu0 %1848
    %vm1851 = vcmask 778880
    %1852 = vst.msk [vmem:[#allocation7] sm:$0x1] %vm1851, %v1849
    %v1853 = vrot.slane %v1846, 7
    %v1854 = vrot.slane %v1853, 2
    %1855 = vrot.lane.b32.xlu0 %v1854, 96
    %v1856 = vpop.permute.xlu0 %1855
    %vm1858 = vcmask 910080
    %1859 = vst.msk [vmem:[#allocation7] sm:$0x1] %vm1858, %v1856
    %1860 = vst.sshfl [vmem:[#allocation1] sm:$0xff pattern:$0x73625140] %v1846
    %s1861 = scalar_lea.vmem [#allocation1], 1
    %v1862 = vld [vmem:[%s1861] ss:$4 sm:$0xff]
    %1863 = vrot.lane.b32.xlu0 %v1862, 112
    %v1864 = vpop.permute.xlu0 %1863
    %vm1866 = vcmask 1041280
    %1867 = vst.msk [vmem:[#allocation7] sm:$0x1] %vm1866, %v1864
    %1868 = vst.sshfl [vmem:[#allocation1] sm:$0xff pattern:$0x73625140] %v1846
    %s1869 = scalar_lea.vmem [#allocation1], 1
    %v1870 = vld [vmem:[%s1869] ss:$4 sm:$0xff]
    %v1871 = vrot.slane %v1870, 7
    %v1872 = vrot.slane %v1871, 2
    %1874 = vst.msk [vmem:[#allocation7 + $0x2] sm:$0x1] %vm1809, %v1872
    %1875 = vst.sshfl [vmem:[#allocation1] sm:$0xff pattern:$0x73625140] %v1846
    %s1876 = scalar_lea.vmem [#allocation1], 2
    %v1877 = vld [vmem:[%s1876] ss:$4 sm:$0xff]
    %1878 = vrot.lane.b32.xlu0 %v1877, 16
    %v1879 = vpop.permute.xlu0 %1878
    %1881 = vst.msk [vmem:[#allocation7 + $0x2] sm:$0x1] %vm1817, %v1879
    %s1882 = scalar_lea.vmem [#allocation5], 16
    %v1883 = vld [vmem:[%s1882] sm:$0x1f]
    %1885 = vrot.lane.b32.xlu0 %v1883, 32
    %v1886 = vpop.permute.xlu0 %1885
    %1888 = vst.msk [vmem:[#allocation7 + $0x2] sm:$0x1] %vm1825, %v1886
    %v1889 = vrot.slane %v1883, 7
    %v1890 = vrot.slane %v1889, 2
    %1891 = vrot.lane.b32.xlu0 %v1890, 48
    %v1892 = vpop.permute.xlu0 %1891
    %1894 = vst.msk [vmem:[#allocation7 + $0x2] sm:$0x1] %vm1835, %v1892
    %1895 = vst.sshfl [vmem:[#allocation1] sm:$0xff pattern:$0x73625140] %v1883
    %s1896 = scalar_lea.vmem [#allocation1], 1
    %v1897 = vld [vmem:[%s1896] ss:$4 sm:$0xff]
    %1898 = vrot.lane.b32.xlu0 %v1897, 64
    %v1899 = vpop.permute.xlu0 %1898
    %1901 = vst.msk [vmem:[#allocation7 + $0x2] sm:$0x1] %vm1843, %v1899
    %1902 = vst.sshfl [vmem:[#allocation1] sm:$0xff pattern:$0x73625140] %v1883
    %s1903 = scalar_lea.vmem [#allocation1], 1
    %v1904 = vld [vmem:[%s1903] ss:$4 sm:$0xff]
    %v1905 = vrot.slane %v1904, 7
    %v1906 = vrot.slane %v1905, 2
    %1907 = vrot.lane.b32.xlu0 %v1906, 80
    %v1908 = vpop.permute.xlu0 %1907
    %1910 = vst.msk [vmem:[#allocation7 + $0x2] sm:$0x1] %vm1851, %v1908
    %1911 = vst.sshfl [vmem:[#allocation1] sm:$0xff pattern:$0x73625140] %v1883
    %s1912 = scalar_lea.vmem [#allocation1], 2
    %v1913 = vld [vmem:[%s1912] ss:$4 sm:$0xff]
    %1914 = vrot.lane.b32.xlu0 %v1913, 96
    %v1915 = vpop.permute.xlu0 %1914
    %1917 = vst.msk [vmem:[#allocation7 + $0x2] sm:$0x1] %vm1858, %v1915
    %s1918 = scalar_lea.vmem [#allocation5], 24
    %v1919 = vld [vmem:[%s1918] sm:$0x1f]
    %1921 = vrot.lane.b32.xlu0 %v1919, 112
    %v1922 = vpop.permute.xlu0 %1921
    %1924 = vst.msk [vmem:[#allocation7 + $0x2] sm:$0x1] %vm1866, %v1922
    %v1925 = vrot.slane %v1919, 7
    %v1926 = vrot.slane %v1925, 2
    %1928 = vst.msk [vmem:[#allocation7 + $0x4] sm:$0x1] %vm1809, %v1926
    %1929 = vst.sshfl [vmem:[#allocation1] sm:$0xff pattern:$0x73625140] %v1919
    %s1930 = scalar_lea.vmem [#allocation1], 1
    %v1931 = vld [vmem:[%s1930] ss:$4 sm:$0xff]
    %1932 = vrot.lane.b32.xlu0 %v1931, 16
    %v1933 = vpop.permute.xlu0 %1932
    %1935 = vst.msk [vmem:[#allocation7 + $0x4] sm:$0x1] %vm1817, %v1933
    %1936 = vst.sshfl [vmem:[#allocation1] sm:$0xff pattern:$0x73625140] %v1919
    %s1937 = scalar_lea.vmem [#allocation1], 1
    %v1938 = vld [vmem:[%s1937] ss:$4 sm:$0xff]
    %v1939 = vrot.slane %v1938, 7
    %v1940 = vrot.slane %v1939, 2
    %1941 = vrot.lane.b32.xlu0 %v1940, 32
    %v1942 = vpop.permute.xlu0 %1941
    %1944 = vst.msk [vmem:[#allocation7 + $0x4] sm:$0x1] %vm1825, %v1942
    %1945 = vst.sshfl [vmem:[#allocation1] sm:$0xff pattern:$0x73625140] %v1919
    %s1946 = scalar_lea.vmem [#allocation1], 2
    %v1947 = vld [vmem:[%s1946] ss:$4 sm:$0xff]
    %1948 = vrot.lane.b32.xlu0 %v1947, 48
    %v1949 = vpop.permute.xlu0 %1948
    %1951 = vst.msk [vmem:[#allocation7 + $0x4] sm:$0x1] %vm1835, %v1949
    %s1952 = scalar_lea.vmem [#allocation5], 32
    %v1953 = vld [vmem:[%s1952] sm:$0x1f]
    %1955 = vrot.lane.b32.xlu0 %v1953, 64
    %v1956 = vpop.permute.xlu0 %1955
    %1958 = vst.msk [vmem:[#allocation7 + $0x4] sm:$0x1] %vm1843, %v1956
    %v1959 = vrot.slane %v1953, 7
    %v1960 = vrot.slane %v1959, 2
    %1961 = vrot.lane.b32.xlu0 %v1960, 80
    %v1962 = vpop.permute.xlu0 %1961
    %1964 = vst.msk [vmem:[#allocation7 + $0x4] sm:$0x1] %vm1851, %v1962
    %1965 = vst.sshfl [vmem:[#allocation1] sm:$0xff pattern:$0x73625140] %v1953
    %s1966 = scalar_lea.vmem [#allocation1], 1
    %v1967 = vld [vmem:[%s1966] ss:$4 sm:$0xff]
    %1968 = vrot.lane.b32.xlu0 %v1967, 96
    %v1969 = vpop.permute.xlu0 %1968
    %1971 = vst.msk [vmem:[#allocation7 + $0x4] sm:$0x1] %vm1858, %v1969
    %1972 = vst.sshfl [vmem:[#allocation1] sm:$0xff pattern:$0x73625140] %v1953
    %s1973 = scalar_lea.vmem [#allocation1], 1
    %v1974 = vld [vmem:[%s1973] ss:$4 sm:$0xff]
    %v1975 = vrot.slane %v1974, 7
    %v1976 = vrot.slane %v1975, 2
    %1977 = vrot.lane.b32.xlu0 %v1976, 112
    %v1978 = vpop.permute.xlu0 %1977
    %1980 = vst.msk [vmem:[#allocation7 + $0x4] sm:$0x1] %vm1866, %v1978
    %1981 = vst.sshfl [vmem:[#allocation1] sm:$0xff pattern:$0x73625140] %v1953
    %s1982 = scalar_lea.vmem [#allocation1], 2
    %v1983 = vld [vmem:[%s1982] ss:$4 sm:$0xff]
    %1985 = vst.msk [vmem:[#allocation7 + $0x6] sm:$0x1] %vm1809, %v1983
    %s1986 = scalar_lea.vmem [#allocation5], 40
    %v1987 = vld [vmem:[%s1986] sm:$0x1f]
    %1988 = vst.msk [vmem:[#allocation7 + $0x1] sm:$0x1] %vm1809, %v1987
    %v1990 = vrot.slane %v1987, 7
    %v1991 = vrot.slane %v1990, 2
    %1992 = vrot.lane.b32.xlu0 %v1991, 16
    %v1993 = vpop.permute.xlu0 %1992
    %1995 = vst.msk [vmem:[#allocation7 + $0x1] sm:$0x1] %vm1817, %v1993
    %1996 = vst.sshfl [vmem:[#allocation1] sm:$0xff pattern:$0x73625140] %v1987
    %s1997 = scalar_lea.vmem [#allocation1], 1
    %v1998 = vld [vmem:[%s1997] ss:$4 sm:$0xff]
    %1999 = vrot.lane.b32.xlu0 %v1998, 32
    %v2000 = vpop.permute.xlu0 %1999
    %2002 = vst.msk [vmem:[#allocation7 + $0x1] sm:$0x1] %vm1825, %v2000
    %2003 = vst.sshfl [vmem:[#allocation1] sm:$0xff pattern:$0x73625140] %v1987
    %s2004 = scalar_lea.vmem [#allocation1], 1
    %v2005 = vld [vmem:[%s2004] ss:$4 sm:$0xff]
    %v2006 = vrot.slane %v2005, 7
    %v2007 = vrot.slane %v2006, 2
    %2008 = vrot.lane.b32.xlu0 %v2007, 48
    %v2009 = vpop.permute.xlu0 %2008
    %2011 = vst.msk [vmem:[#allocation7 + $0x1] sm:$0x1] %vm1835, %v2009
    %2012 = vst.sshfl [vmem:[#allocation1] sm:$0xff pattern:$0x73625140] %v1987
    %s2013 = scalar_lea.vmem [#allocation1], 2
    %v2014 = vld [vmem:[%s2013] ss:$4 sm:$0xff]
    %2015 = vrot.lane.b32.xlu0 %v2014, 64
    %v2016 = vpop.permute.xlu0 %2015
    %2018 = vst.msk [vmem:[#allocation7 + $0x1] sm:$0x1] %vm1843, %v2016
    %s2019 = scalar_lea.vmem [#allocation5], 48
    %v2020 = vld [vmem:[%s2019] sm:$0x1f]
    %2022 = vrot.lane.b32.xlu0 %v2020, 80
    %v2023 = vpop.permute.xlu0 %2022
    %2025 = vst.msk [vmem:[#allocation7 + $0x1] sm:$0x1] %vm1851, %v2023
    %v2026 = vrot.slane %v2020, 7
    %v2027 = vrot.slane %v2026, 2
    %2028 = vrot.lane.b32.xlu0 %v2027, 96
    %v2029 = vpop.permute.xlu0 %2028
    %2031 = vst.msk [vmem:[#allocation7 + $0x1] sm:$0x1] %vm1858, %v2029
    %2032 = vst.sshfl [vmem:[#allocation1] sm:$0xff pattern:$0x73625140] %v2020
    %s2033 = scalar_lea.vmem [#allocation1], 1
    %v2034 = vld [vmem:[%s2033] ss:$4 sm:$0xff]
    %2035 = vrot.lane.b32.xlu0 %v2034, 112
    %v2036 = vpop.permute.xlu0 %2035
    %2038 = vst.msk [vmem:[#allocation7 + $0x1] sm:$0x1] %vm1866, %v2036
    %2039 = vst.sshfl [vmem:[#allocation1] sm:$0xff pattern:$0x73625140] %v2020
    %s2040 = scalar_lea.vmem [#allocation1], 1
    %v2041 = vld [vmem:[%s2040] ss:$4 sm:$0xff]
    %v2042 = vrot.slane %v2041, 7
    %v2043 = vrot.slane %v2042, 2
    %2045 = vst.msk [vmem:[#allocation7 + $0x3] sm:$0x1] %vm1809, %v2043
    %2046 = vst.sshfl [vmem:[#allocation1] sm:$0xff pattern:$0x73625140] %v2020
    %s2047 = scalar_lea.vmem [#allocation1], 2
    %v2048 = vld [vmem:[%s2047] ss:$4 sm:$0xff]
    %2049 = vrot.lane.b32.xlu0 %v2048, 16
    %v2050 = vpop.permute.xlu0 %2049
    %2052 = vst.msk [vmem:[#allocation7 + $0x3] sm:$0x1] %vm1817, %v2050
    %s2053 = scalar_lea.vmem [#allocation5], 56
    %v2054 = vld [vmem:[%s2053] sm:$0x1f]
    %2056 = vrot.lane.b32.xlu0 %v2054, 32
    %v2057 = vpop.permute.xlu0 %2056
    %2059 = vst.msk [vmem:[#allocation7 + $0x3] sm:$0x1] %vm1825, %v2057
    %v2060 = vrot.slane %v2054, 7
    %v2061 = vrot.slane %v2060, 2
    %2062 = vrot.lane.b32.xlu0 %v2061, 48
    %v2063 = vpop.permute.xlu0 %2062
    %2065 = vst.msk [vmem:[#allocation7 + $0x3] sm:$0x1] %vm1835, %v2063
    %2066 = vst.sshfl [vmem:[#allocation1] sm:$0xff pattern:$0x73625140] %v2054
    %s2067 = scalar_lea.vmem [#allocation1], 1
    %v2068 = vld [vmem:[%s2067] ss:$4 sm:$0xff]
    %2069 = vrot.lane.b32.xlu0 %v2068, 64
    %v2070 = vpop.permute.xlu0 %2069
    %2072 = vst.msk [vmem:[#allocation7 + $0x3] sm:$0x1] %vm1843, %v2070
    %2073 = vst.sshfl [vmem:[#allocation1] sm:$0xff pattern:$0x73625140] %v2054
    %s2074 = scalar_lea.vmem [#allocation1], 1
    %v2075 = vld [vmem:[%s2074] ss:$4 sm:$0xff]
    %v2076 = vrot.slane %v2075, 7
    %v2077 = vrot.slane %v2076, 2
    %2078 = vrot.lane.b32.xlu0 %v2077, 80
    %v2079 = vpop.permute.xlu0 %2078
    %2081 = vst.msk [vmem:[#allocation7 + $0x3] sm:$0x1] %vm1851, %v2079
    %2082 = vst.sshfl [vmem:[#allocation1] sm:$0xff pattern:$0x73625140] %v2054
    %s2083 = scalar_lea.vmem [#allocation1], 2
    %v2084 = vld [vmem:[%s2083] ss:$4 sm:$0xff]
    %2085 = vrot.lane.b32.xlu0 %v2084, 96
    %v2086 = vpop.permute.xlu0 %2085
    %2088 = vst.msk [vmem:[#allocation7 + $0x3] sm:$0x1] %vm1858, %v2086
    %s2089 = scalar_lea.vmem [#allocation5], 64
    %v2090 = vld [vmem:[%s2089] sm:$0x1f]
    %2092 = vrot.lane.b32.xlu0 %v2090, 112
    %v2093 = vpop.permute.xlu0 %2092
    %2095 = vst.msk [vmem:[#allocation7 + $0x3] sm:$0x1] %vm1866, %v2093
    %v2096 = vrot.slane %v2090, 7
    %v2097 = vrot.slane %v2096, 2
    %2099 = vst.msk [vmem:[#allocation7 + $0x5] sm:$0x1] %vm1809, %v2097
    %2100 = vst.sshfl [vmem:[#allocation1] sm:$0xff pattern:$0x73625140] %v2090
    %s2101 = scalar_lea.vmem [#allocation1], 1
    %v2102 = vld [vmem:[%s2101] ss:$4 sm:$0xff]
    %2103 = vrot.lane.b32.xlu0 %v2102, 16
    %v2104 = vpop.permute.xlu0 %2103
    %2106 = vst.msk [vmem:[#allocation7 + $0x5] sm:$0x1] %vm1817, %v2104
    %2107 = vst.sshfl [vmem:[#allocation1] sm:$0xff pattern:$0x73625140] %v2090
    %s2108 = scalar_lea.vmem [#allocation1], 1
    %v2109 = vld [vmem:[%s2108] ss:$4 sm:$0xff]
    %v2110 = vrot.slane %v2109, 7
    %v2111 = vrot.slane %v2110, 2
    %2112 = vrot.lane.b32.xlu0 %v2111, 32
    %v2113 = vpop.permute.xlu0 %2112
    %2115 = vst.msk [vmem:[#allocation7 + $0x5] sm:$0x1] %vm1825, %v2113
    %2116 = vst.sshfl [vmem:[#allocation1] sm:$0xff pattern:$0x73625140] %v2090
    %s2117 = scalar_lea.vmem [#allocation1], 2
    %v2118 = vld [vmem:[%s2117] ss:$4 sm:$0xff]
    %2119 = vrot.lane.b32.xlu0 %v2118, 48
    %v2120 = vpop.permute.xlu0 %2119
    %2122 = vst.msk [vmem:[#allocation7 + $0x5] sm:$0x1] %vm1835, %v2120
    %s2123 = scalar_lea.vmem [#allocation5], 72
    %v2124 = vld [vmem:[%s2123] sm:$0x1f]
    %2126 = vrot.lane.b32.xlu0 %v2124, 64
    %v2127 = vpop.permute.xlu0 %2126
    %2129 = vst.msk [vmem:[#allocation7 + $0x5] sm:$0x1] %vm1843, %v2127
    %v2130 = vrot.slane %v2124, 7
    %v2131 = vrot.slane %v2130, 2
    %2132 = vrot.lane.b32.xlu0 %v2131, 80
    %v2133 = vpop.permute.xlu0 %2132
    %2135 = vst.msk [vmem:[#allocation7 + $0x5] sm:$0x1] %vm1851, %v2133
    %2136 = vst.sshfl [vmem:[#allocation1] sm:$0xff pattern:$0x73625140] %v2124
    %s2137 = scalar_lea.vmem [#allocation1], 1
    %v2138 = vld [vmem:[%s2137] ss:$4 sm:$0xff]
    %2139 = vrot.lane.b32.xlu0 %v2138, 96
    %v2140 = vpop.permute.xlu0 %2139
    %2142 = vst.msk [vmem:[#allocation7 + $0x5] sm:$0x1] %vm1858, %v2140
    %2143 = vst.sshfl [vmem:[#allocation1] sm:$0xff pattern:$0x73625140] %v2124
    %s2144 = scalar_lea.vmem [#allocation1], 1
    %v2145 = vld [vmem:[%s2144] ss:$4 sm:$0xff]
    %v2146 = vrot.slane %v2145, 7
    %v2147 = vrot.slane %v2146, 2
    %2148 = vrot.lane.b32.xlu0 %v2147, 112
    %v2149 = vpop.permute.xlu0 %2148
    %2151 = vst.msk [vmem:[#allocation7 + $0x5] sm:$0x1] %vm1866, %v2149
    %2152 = vst.sshfl [vmem:[#allocation1] sm:$0xff pattern:$0x73625140] %v2124
    %s2153 = scalar_lea.vmem [#allocation1], 2
    %v2154 = vld [vmem:[%s2153] ss:$4 sm:$0xff]
    %2156 = vst.msk [vmem:[#allocation7 + $0x7] sm:$0x1] %vm1809, %v2154
    %v2157 = vld [vmem:[#allocation7] sm:$0xff]
    %v2158 = vld [vmem:[%s5] sm:$0xff]
    %v2159 = vld [vmem:[%s5 + $0x8] sm:$0xff]
    %v2160 = vld [vmem:[%s5 + $0x10] sm:$0xff]
    %v2161 = vld [vmem:[%s5 + $0x18] sm:$0xff]
    %v2162 = vld [vmem:[%s5 + $0x20] sm:$0xff]
    %v2163 = vld [vmem:[%s5 + $0x28] sm:$0xff]
    %v2164 = vld [vmem:[%s5 + $0x30] sm:$0xff]
    %v2165 = vld [vmem:[%s5 + $0x38] sm:$0xff]
    %v2166 = vld [vmem:[%s5 + $0x40] sm:$0xff]
    %v2167 = vld [vmem:[%s5 + $0x48] sm:$0xff]
    %v2168 = vld [vmem:[%s5 + $0x50] sm:$0xff]
    %v2169 = vld [vmem:[%s5 + $0x58] sm:$0xff]
    %v2170 = vld [vmem:[%s5 + $0x60] sm:$0xff]
    %v2171 = vld [vmem:[%s5 + $0x68] sm:$0xff]
    %v2172 = vld [vmem:[%s5 + $0x70] sm:$0xff]
    %v2173 = vld [vmem:[%s5 + $0x78] sm:$0xff]
    %v2174 = vld [vmem:[%s5 + $0x80] sm:$0xff]
    %v2175 = vld [vmem:[%s5 + $0x88] sm:$0xff]
    %v2176 = vld [vmem:[%s5 + $0x90] sm:$0xff]
    %v2177 = vld [vmem:[%s5 + $0x98] sm:$0xff]
    %v2178 = vld [vmem:[%s5 + $0xa0] sm:$0xff]
    %v2179 = vld [vmem:[%s5 + $0xa8] sm:$0xff]
    %v2180 = vld [vmem:[%s5 + $0xb0] sm:$0xff]
    %v2181 = vld [vmem:[%s5 + $0xb8] sm:$0xff]
    %v2182 = vld [vmem:[%s5 + $0xc0] sm:$0xff]
    %v2183 = vld [vmem:[%s5 + $0xc8] sm:$0xff]
    %v2184 = vld [vmem:[%s5 + $0xd0] sm:$0xff]
    %v2185 = vld [vmem:[%s5 + $0xd8] sm:$0xff]
    %v2186 = vld [vmem:[%s5 + $0xe0] sm:$0xff]
    %v2187 = vld [vmem:[%s5 + $0xe8] sm:$0xff]
    %v2188 = vld [vmem:[%s5 + $0xf0] sm:$0xff]
    %v2189 = vld [vmem:[%s5 + $0xf8] sm:$0xff]
    %v2190 = vld [vmem:[%s5 + $0x100] sm:$0xff]
    %v2191 = vld [vmem:[%s5 + $0x108] sm:$0xff]
    %v2192 = vld [vmem:[%s5 + $0x110] sm:$0xff]
    %v2193 = vld [vmem:[%s5 + $0x118] sm:$0xff]
    %v2194 = vld [vmem:[%s5 + $0x120] sm:$0xff]
    %v2195 = vld [vmem:[%s5 + $0x128] sm:$0xff]
    %v2196 = vld [vmem:[%s5 + $0x130] sm:$0xff]
    %v2197 = vld [vmem:[%s5 + $0x138] sm:$0xff]
    %v2198 = vld [vmem:[%s5 + $0x140] sm:$0xff]
    %v2199 = vld [vmem:[%s5 + $0x148] sm:$0xff]
    %v2200 = vld [vmem:[%s5 + $0x150] sm:$0xff]
    %v2201 = vld [vmem:[%s5 + $0x158] sm:$0xff]
    %v2202 = vld [vmem:[%s5 + $0x160] sm:$0xff]
    %v2203 = vld [vmem:[%s5 + $0x168] sm:$0xff]
    %v2204 = vld [vmem:[%s5 + $0x170] sm:$0xff]
    %v2205 = vld [vmem:[%s5 + $0x178] sm:$0xff]
    %v2206 = vld [vmem:[%s5 + $0x180] sm:$0xff]
    %v2207 = vld [vmem:[%s5 + $0x188] sm:$0xff]
    %v2208 = vld [vmem:[%s6] sm:$0x1]
    %v2210 = vperm.slane %v2208, 0
    %2213 = vst [vmem:[#allocation1] ss:$4 sm:$0xff] %v2157
    %v2214 = vld.sshfl [vmem:[#allocation1] sm:$0xff pattern:$0x73625140]
    %v2215 = vld.sshfl [vmem:[#allocation1 + $0x8] sm:$0xff pattern:$0x73625140]
    %v2216 = vld.sshfl [vmem:[#allocation1 + $0x10] sm:$0xff pattern:$0x73625140]
    %v2217 = vld.sshfl [vmem:[#allocation1 + $0x18] sm:$0xff pattern:$0x73625140]
    %vm2221 = vcmask 130048
    %v2222 = vsel %vm2221, %v2217, 0
    %2224 = vmatpush.msra.mxu0 %v2173
    %2225 = vmatpush.msra.mxu0 %v2172
    %2226 = vmatpush.msra.mxu0 %v2171
    %2227 = vmatpush.msra.mxu0 %v2170
    %2228 = vmatpush.msra.mxu0 %v2169
    %2229 = vmatpush.msra.mxu0 %v2168
    %2230 = vmatpush.msra.mxu0 %v2167
    %2231 = vmatpush.msra.mxu0 %v2166
    %2232 = vmatpush.msra.mxu0 %v2165
    %2233 = vmatpush.msra.mxu0 %v2164
    %2234 = vmatpush.msra.mxu0 %v2163
    %2235 = vmatpush.msra.mxu0 %v2162
    %2236 = vmatpush.msra.mxu0 %v2161
    %2237 = vmatpush.msra.mxu0 %v2160
    %2238 = vmatpush.msra.mxu0 %v2159
    %2239 = vmatpush.msra.mxu0 %v2158
    %2240 = vmatmul.f32.gmra.mxu0 %v2214
    %v2241 = vpop.f32.mrf.mxu0
    %v2242 = vadd.f32 %v2210, %v2241
    %2243 = vdwg.mxu0
    %2244 = vmatpush.msra.mxu0 %v2189
    %2245 = vmatpush.msra.mxu0 %v2188
    %2246 = vmatpush.msra.mxu0 %v2187
    %2247 = vmatpush.msra.mxu0 %v2186
    %2248 = vmatpush.msra.mxu0 %v2185
    %2249 = vmatpush.msra.mxu0 %v2184
    %2250 = vmatpush.msra.mxu0 %v2183
    %2251 = vmatpush.msra.mxu0 %v2182
    %2252 = vmatpush.msra.mxu0 %v2181
    %2253 = vmatpush.msra.mxu0 %v2180
    %2254 = vmatpush.msra.mxu0 %v2179
    %2255 = vmatpush.msra.mxu0 %v2178
    %2256 = vmatpush.msra.mxu0 %v2177
    %2257 = vmatpush.msra.mxu0 %v2176
    %2258 = vmatpush.msra.mxu0 %v2175
    %2259 = vmatpush.msra.mxu0 %v2174
    %2260 = vmatmul.f32.gmra.mxu0 %v2215
    %v2261 = vpop.f32.mrf.mxu0
    %v2262 = vadd.f32 %v2242, %v2261
    %2263 = vdwg.mxu0
    %2264 = vmatpush.msra.mxu0 %v2205
    %2265 = vmatpush.msra.mxu0 %v2204
    %2266 = vmatpush.msra.mxu0 %v2203
    %2267 = vmatpush.msra.mxu0 %v2202
    %2268 = vmatpush.msra.mxu0 %v2201
    %2269 = vmatpush.msra.mxu0 %v2200
    %2270 = vmatpush.msra.mxu0 %v2199
    %2271 = vmatpush.msra.mxu0 %v2198
    %2272 = vmatpush.msra.mxu0 %v2197
    %2273 = vmatpush.msra.mxu0 %v2196
    %2274 = vmatpush.msra.mxu0 %v2195
    %2275 = vmatpush.msra.mxu0 %v2194
    %2276 = vmatpush.msra.mxu0 %v2193
    %2277 = vmatpush.msra.mxu0 %v2192
    %2278 = vmatpush.msra.mxu0 %v2191
    %2279 = vmatpush.msra.mxu0 %v2190
    %2280 = vmatmul.f32.gmra.mxu0 %v2216
    %v2281 = vpop.f32.mrf.mxu0
    %v2282 = vadd.f32 %v2262, %v2281
    %2283 = vdwg.mxu0
    %2284 = vmatpush.msra.mxu0 0.0
    %2285 = vmatpush.msra.mxu0 0.0
    %2286 = vmatpush.msra.mxu0 0.0
    %2287 = vmatpush.msra.mxu0 0.0
    %2288 = vmatpush.msra.mxu0 0.0
    %2289 = vmatpush.msra.mxu0 0.0
    %2290 = vmatpush.msra.mxu0 0.0
    %2291 = vmatpush.msra.mxu0 0.0
    %2292 = vmatpush.msra.mxu0 0.0
    %2293 = vmatpush.msra.mxu0 0.0
    %2294 = vmatpush.msra.mxu0 0.0
    %2295 = vmatpush.msra.mxu0 0.0
    %2296 = vmatpush.msra.mxu0 0.0
    %2297 = vmatpush.msra.mxu0 0.0
    %2298 = vmatpush.msra.mxu0 %v2207
    %2299 = vmatpush.msra.mxu0 %v2206
    %2300 = vmatmul.f32.gmra.mxu0 %v2222
    %v2301 = vpop.f32.mrf.mxu0
    %v2302 = vadd.f32 %v2282, %v2301
    %2303 = vdwg.mxu0
    %v2304 = vmax.f32 %v2302, 0.0
    %v2305 = vld [vmem:[%s7] sm:$0xff]
    %v2306 = vld [vmem:[%s7 + $0x8] sm:$0xff]
    %v2307 = vld [vmem:[%s7 + $0x10] sm:$0xff]
    %v2308 = vld [vmem:[%s7 + $0x18] sm:$0xff]
    %v2309 = vld [vmem:[%s7 + $0x20] sm:$0xff]
    %v2310 = vld [vmem:[%s7 + $0x28] sm:$0xff]
    %v2311 = vld [vmem:[%s7 + $0x30] sm:$0xff]
    %v2312 = vld [vmem:[%s7 + $0x38] sm:$0xff]
    %v2313 = vld [vmem:[%s7 + $0x40] sm:$0xff]
    %v2314 = vld [vmem:[%s7 + $0x48] sm:$0xff]
    %v2315 = vld [vmem:[%s7 + $0x50] sm:$0xff]
    %v2316 = vld [vmem:[%s7 + $0x58] sm:$0xff]
    %v2317 = vld [vmem:[%s7 + $0x60] sm:$0xff]
    %v2318 = vld [vmem:[%s7 + $0x68] sm:$0xff]
    %v2319 = vld [vmem:[%s7 + $0x70] sm:$0xff]
    %v2320 = vld [vmem:[%s7 + $0x78] sm:$0xff]
    %v2321 = vld [vmem:[%s8] sm:$0x1]
    %v2323 = vperm.slane %v2321, 0
    %2325 = vmatpush.msra.mxu0 %v2320
    %2326 = vmatpush.msra.mxu0 %v2319
    %2327 = vmatpush.msra.mxu0 %v2318
    %2328 = vmatpush.msra.mxu0 %v2317
    %2329 = vmatpush.msra.mxu0 %v2316
    %2330 = vmatpush.msra.mxu0 %v2315
    %2331 = vmatpush.msra.mxu0 %v2314
    %2332 = vmatpush.msra.mxu0 %v2313
    %2333 = vmatpush.msra.mxu0 %v2312
    %2334 = vmatpush.msra.mxu0 %v2311
    %2335 = vmatpush.msra.mxu0 %v2310
    %2336 = vmatpush.msra.mxu0 %v2309
    %2337 = vmatpush.msra.mxu0 %v2308
    %2338 = vmatpush.msra.mxu0 %v2307
    %2339 = vmatpush.msra.mxu0 %v2306
    %2340 = vmatpush.msra.mxu0 %v2305
    %2341 = vmatmul.f32.gmra.mxu0 %v2304
    %v2342 = vpop.f32.mrf.mxu0
    %v2343 = vadd.f32 %v2323, %v2342
    %2344 = vdwg.mxu0
    %2345 = vst [vmem:[#allocation8] sm:$0x3] %v2343
    // Predicated region
    $region94: #{lenet_forward.1} parent=1 // pred_check
      _
    $region95: #{lenet_forward.1} parent=1 // pred_check_branch
      %2347 = sbr.rel (0) target = $region97
    $region96: #{lenet_forward.1} parent=1 // pred_region
      %2349 = vsyncadd [#allocation9], 0
      %s2351 = sshll.u32 [#allocation8], 4
      %s2352 = int_to_ptr.vmem [resolvable:$true] %s2351
      %s2353 = sshll.u32 %s9, 4
      %s2354 = int_to_ptr.hbm [resolvable:$true] %s2353
      %2356 = dma.vmem_to_hbm [thread:$0]  %s2352, 32, %s2354, [#allocation9]
    $region97: #{lenet_forward.1} parent=1 // pred_fallthru
      _
    // Predicated region
    $region98: #{lenet_forward.1} parent=1 // pred_check
      _
    $region99: #{lenet_forward.1} parent=1 // pred_check_branch
      %2358 = sbr.rel (0) target = $region101
    $region100: #{lenet_forward.1} parent=1 // pred_region
      %2360 = dma.done [#allocation9], 32
    $region101: #{lenet_forward.1} parent=1 // pred_fallthru
      _
    %2361 = vsyncpa [#allocation9], 1

</llo_original>
